<compile_context>
chip_gen: v7x
topology: tpu7x:2x2x1
jax: 0.10.0
libtpu: 0.0.40
codegen_flags: <defaults>
</compile_context>

<pallas_src>
import functools
import math

import jax
import jax.numpy as jnp
from jax.experimental import pallas as pl
from jax.experimental.pallas import tpu as pltpu


# -----------------------------------------------------------------------------
# Tile pickers (always return exact divisors; fall back to the full dim)
# -----------------------------------------------------------------------------
def _pick_cout_tile(c):
    for t in (256, 128):
        if c >= t and c % t == 0:
            return t
    return c


def _pick_cin_tile(c):
    if c > 128 and c % 128 == 0:
        return 128
    return c


def _pick_row_tile(oh):
    tr = oh
    for d in range(min(16, oh), 0, -1):
        if oh % d == 0:
            tr = d
            break
    if tr < 8:          # degenerate divisors -> single full-height tile
        tr = oh
    return tr


# -----------------------------------------------------------------------------
# Fused Conv2d + folded BatchNorm (+ residual) (+ ReLU) Pallas kernel
# -----------------------------------------------------------------------------
def conv_bn_act(x, w, scale, shift, *, stride=1, padding=0, relu=False,
                residual=None, out_dtype=jnp.float32):
    """Fused conv + per-channel scale/shift (+residual) (+ReLU).

    x        : (N, H, W, Cin)  NHWC activation (float32 or bfloat16).
    w        : (KH, KW, Cin, Cout) conv weight.
    scale    : (1, Cout) folded BN scale  (gamma / sqrt(var + eps)).
    shift    : (1, Cout) folded BN shift  (beta - mean * scale).
    residual : optional (N, OH, OW, Cout) tensor added before the ReLU.
    Returns  : (N, OH, OW, Cout) in `out_dtype`.
    """
    N, H, W, Cin = x.shape
    KH, KW, Cin2, Cout = w.shape
    assert Cin == Cin2
    s, p = stride, padding

    # 1x1 / pad-0 convs (the ResNet downsample): fold the stride into a
    # wrapper slice so only the (0,0) stride phase ever reaches the kernel.
    if KH == 1 and KW == 1 and p == 0 and s > 1:
        x = x[:, ::s, ::s, :]
        N, H, W, Cin = x.shape
        s = 1

    OH = (H + 2 * p - KH) // s + 1
    OW = (W + 2 * p - KW) // s + 1
    halo_h = (KH - 1) // s
    halo_w = (KW - 1) // s
    Hq, Wq = OH + halo_h, OW + halo_w
    Hp, Wp = Hq * s, Wq * s

    # --- wrapper glue: one bf16 cast, one pad, one space-to-depth view -------
    xb = x.astype(jnp.bfloat16)
    xb = xb[:, :min(H, Hp - p), :min(W, Wp - p), :]       # crop never-read rows
    xp = jnp.pad(xb, ((0, 0),
                      (p, Hp - xb.shape[1] - p),
                      (p, Wp - xb.shape[2] - p),
                      (0, 0)))
    # (N, Hq, s, Wq, s, C) -> (N, s*s, Hq, Wq, C): tap (kh, kw) becomes the
    # *static* window [kh//s : kh//s+TR, kw//s : kw//s+OW] of phase
    # (kh%s)*s + (kw%s).  For s == 1 this is just a reshape.
    a = (xp.reshape(N, Hq, s, Wq, s, Cin)
           .transpose(0, 2, 4, 1, 3, 5)
           .reshape(N, s * s, Hq, Wq, Cin))

    # Spatial row tiling (halo rows duplicated once, in the wrapper).
    TR = _pick_row_tile(OH)
    n_rt = OH // TR
    a_t = jnp.stack([a[:, :, i * TR:i * TR + TR + halo_h] for i in range(n_rt)],
                    axis=2)                # (N, s*s, n_rt, TR+halo, Wq, Cin)

    cout_t = _pick_cout_tile(Cout)
    cin_t = _pick_cin_tile(Cin)
    n_jt = Cout // cout_t
    n_kt = Cin // cin_t
    n_taps = KH * KW
    has_res = residual is not None
    use_acc = n_kt > 1

    # Weight with the taps folded into the matmul K dim, grouped per Cin tile:
    # (n_kt, KH*KW*cin_t, Cout), row order (kh, kw, cin) to match the slab.
    wr = (w.astype(jnp.bfloat16)
           .reshape(KH, KW, n_kt, cin_t, Cout)
           .transpose(2, 0, 1, 3, 4)
           .reshape(n_kt, n_taps * cin_t, Cout))

    def kernel(*refs):
        a_ref, w_ref, sc_ref, sh_ref = refs[:4]
        pos = 4
        r_ref = None
        if has_res:
            r_ref = refs[pos]
            pos += 1
        o_ref = refs[pos]
        pos += 1
        scr = list(refs[pos:])
        slab_ref = scr.pop(0) if n_taps > 1 else None
        acc_ref = scr.pop(0) if use_acc else None

        def _store(acc):
            # Fused epilogue: folded BN, residual add, ReLU, one store.
            z = acc * sc_ref[...] + sh_ref[...]
            z = z.reshape(TR, OW, cout_t)
            if has_res:
                z = z + r_ref[0].astype(jnp.float32)
            if relu:
                z = jnp.maximum(z, 0.0)
            o_ref[0] = z.astype(o_ref.dtype)

        # --- build the K-folded im2col slab in VMEM, then ONE big MXU dot ----
        if n_taps > 1:
            for kh in range(KH):
                for kw in range(KW):
                    t = kh * KW + kw
                    patch = a_ref[0, (kh % s) * s + (kw % s), 0,
                                  kh // s: kh // s + TR,
                                  kw // s: kw // s + OW, :]
                    slab_ref[:, t * cin_t:(t + 1) * cin_t] = (
                        patch.reshape(TR * OW, cin_t))
            lhs = slab_ref[...]
        else:
            lhs = a_ref[0, 0, 0].reshape(TR * OW, cin_t)

        y = jnp.dot(lhs, w_ref[0], preferred_element_type=jnp.float32)

        if use_acc:
            kk = pl.program_id(3)

            @pl.when(kk == 0)
            def _():
                acc_ref[...] = y          # first k-step writes (no zero-init)

            @pl.when(kk > 0)
            def _():
                acc_ref[...] += y

            @pl.when(kk == pl.num_programs(3) - 1)
            def _():
                _store(acc_ref[...])
        else:
            _store(y)

    act_spec = pl.BlockSpec((1, s * s, 1, TR + halo_h, Wq, cin_t),
                            lambda n, r, j, k: (n, 0, r, 0, 0, k))
    w_spec = pl.BlockSpec((1, n_taps * cin_t, cout_t),
                          lambda n, r, j, k: (k, 0, j))
    vec_spec = pl.BlockSpec((1, cout_t), lambda n, r, j, k: (0, j))
    out_spec = pl.BlockSpec((1, TR, OW, cout_t),
                            lambda n, r, j, k: (n, r, 0, j))

    in_specs = [act_spec, w_spec, vec_spec, vec_spec]
    inputs = [a_t, wr, scale, shift]
    if has_res:
        in_specs.append(pl.BlockSpec((1, TR, OW, cout_t),
                                     lambda n, r, j, k: (n, r, 0, j)))
        inputs.append(residual.astype(jnp.bfloat16))

    scratch = []
    if n_taps > 1:
        scratch.append(pltpu.VMEM((TR * OW, n_taps * cin_t), jnp.bfloat16))
    if use_acc:
        scratch.append(pltpu.VMEM((TR * OW, cout_t), jnp.float32))

    flops = 2 * N * OH * OW * Cout * KH * KW * Cin
    bytes_accessed = (a_t.size * 2 + wr.size * 2
                      + N * OH * OW * Cout * jnp.dtype(out_dtype).itemsize
                      + (N * OH * OW * Cout * 2 if has_res else 0)
                      + scale.size * 4 + shift.size * 4)

    return pl.pallas_call(
        kernel,
        out_shape=jax.ShapeDtypeStruct((N, OH, OW, Cout), out_dtype),
        grid_spec=pltpu.PrefetchScalarGridSpec(
            num_scalar_prefetch=0,
            grid=(N, n_rt, n_jt, n_kt),
            in_specs=in_specs,
            out_specs=out_spec,
            scratch_shapes=scratch),
        compiler_params=pltpu.CompilerParams(
            dimension_semantics=("parallel", "parallel", "parallel",
                                 "arbitrary")),
        cost_estimate=pl.CostEstimate(flops=int(flops), transcendentals=0,
                                      bytes_accessed=int(bytes_accessed)),
    )(*inputs)


# -----------------------------------------------------------------------------
# BasicBlock: params + forward
# -----------------------------------------------------------------------------
def _kaiming(key, shape):
    fan_in = shape[0] * shape[1] * shape[2]
    return jax.random.normal(key, shape, jnp.float32) * math.sqrt(2.0 / fan_in)


def _bn_params(key, c):
    # Non-trivial (but deterministic) eval-mode BN parameters.
    kg, kb, km, kv = jax.random.split(key, 4)
    return {'gamma': 1.0 + 0.3 * jax.random.normal(kg, (c,), jnp.float32),
            'beta': 0.1 * jax.random.normal(kb, (c,), jnp.float32),
            'mean': 0.1 * jax.random.normal(km, (c,), jnp.float32),
            'var': 1.0 + 0.3 * jax.random.uniform(kv, (c,), jnp.float32)}


def _fold_bn(prm, eps=1e-5):
    scale = prm['gamma'] * jax.lax.rsqrt(prm['var'] + eps)
    shift = prm['beta'] - prm['mean'] * scale
    return (scale.reshape(1, -1).astype(jnp.float32),
            shift.reshape(1, -1).astype(jnp.float32))


def init_basic_block(key, inplanes, planes, stride=1):
    k1, k2, k3, kb1, kb2, kb3 = jax.random.split(key, 6)
    params = {'conv1_w': _kaiming(k1, (3, 3, inplanes, planes)),
              'bn1': _bn_params(kb1, planes),
              'conv2_w': _kaiming(k2, (3, 3, planes, planes)),
              'bn2': _bn_params(kb2, planes)}
    if stride != 1 or inplanes != planes:
        params['down_w'] = _kaiming(k3, (1, 1, inplanes, planes))
        params['down_bn'] = _bn_params(kb3, planes)
    return params


def basic_block_fwd(params, x_nchw, *, stride=1):
    """BasicBlock forward.  x: NCHW float32 (PyTorch layout); returns NCHW."""
    x = jnp.transpose(x_nchw, (0, 2, 3, 1))          # -> NHWC
    xb = x.astype(jnp.bfloat16)                      # single cast, shared
    s1, b1 = _fold_bn(params['bn1'])
    s2, b2 = _fold_bn(params['bn2'])

    if 'down_w' in params:
        sd, bd = _fold_bn(params['down_bn'])
        residual = conv_bn_act(xb, params['down_w'], sd, bd,
                               stride=stride, padding=0, relu=False,
                               out_dtype=jnp.bfloat16)
    else:
        residual = xb

    # conv1 -> BN1 -> ReLU   (intermediate kept in bf16)
    out = conv_bn_act(xb, params['conv1_w'], s1, b1,
                      stride=stride, padding=1, relu=True,
                      out_dtype=jnp.bfloat16)
    # conv2 -> BN2 -> (+ residual) -> ReLU, fused in one epilogue
    out = conv_bn_act(out, params['conv2_w'], s2, b2,
                      stride=1, padding=1, relu=True,
                      residual=residual, out_dtype=jnp.float32)
    return jnp.transpose(out, (0, 3, 1, 2))          # -> NCHW


# -----------------------------------------------------------------------------
# Pure-JAX reference (f32, XLA convs) for a correctness sanity check
# -----------------------------------------------------------------------------
def _reference_basic_block(params, x_nchw, stride):
    x = jnp.transpose(x_nchw, (0, 2, 3, 1)).astype(jnp.float32)

    def conv(h, w, s, p):
        return jax.lax.conv_general_dilated(
            h, w, window_strides=(s, s), padding=[(p, p), (p, p)],
            dimension_numbers=('NHWC', 'HWIO', 'NHWC'))

    def bn_eval(h, prm):
        return ((h - prm['mean']) * jax.lax.rsqrt(prm['var'] + 1e-5)
                * prm['gamma'] + prm['beta'])

    out = jax.nn.relu(bn_eval(conv(x, params['conv1_w'], stride, 1),
                              params['bn1']))
    out = bn_eval(conv(out, params['conv2_w'], 1, 1), params['bn2'])
    if 'down_w' in params:
        residual = bn_eval(conv(x, params['down_w'], stride, 0),
                           params['down_bn'])
    else:
        residual = x
    out = jax.nn.relu(out + residual)
    return jnp.transpose(out, (0, 3, 1, 2))


# -----------------------------------------------------------------------------
if __name__ == "__main__":
    key = jax.random.PRNGKey(0)
    k_x, k_p = jax.random.split(key)

    # Small shapes consistent with a ResNet BasicBlock that downsamples:
    # inplanes=32 -> planes=64, stride=2 (so the downsample branch is used).
    N, Cin, H, W = 2, 32, 16, 16
    planes, stride = 64, 2

    x = jax.random.normal(k_x, (N, Cin, H, W), jnp.float32)
    params = init_basic_block(k_p, Cin, planes, stride)

    fwd = jax.jit(functools.partial(basic_block_fwd, stride=stride))
    out = fwd(params, x)
    jax.block_until_ready(out)

    assert out.shape == (N, planes, H // stride, W // stride), out.shape
    assert bool(jnp.all(jnp.isfinite(out)))

    # Correctness check against the f32 XLA reference (bf16 MXU tolerance).
    ref = _reference_basic_block(params, x, stride)
    err = float(jnp.max(jnp.abs(out - ref)) / (jnp.max(jnp.abs(ref)) + 1e-6))
    assert err < 5e-2, f"max error (relative to peak) = {err}"

    print("KERNEL_OK")
</pallas_src>

<mosaic_0001>
module attributes {stable_mosaic.version = 11 : i64} {
  func.func @kernel(%arg0: i32, %arg1: i32, %arg2: i32, %arg3: i32, %arg4: memref<1x1x1x8x8x32xbf16, #tpu.memory_space<vmem>>, %arg5: memref<1x32x64xbf16, #tpu.memory_space<vmem>>, %arg6: memref<1x64xf32, #tpu.memory_space<vmem>>, %arg7: memref<1x64xf32, #tpu.memory_space<vmem>>, %arg8: memref<1x8x8x64xbf16, #tpu.memory_space<vmem>>) attributes {dimension_semantics = [#tpu.dimension_semantics<parallel>, #tpu.dimension_semantics<parallel>, #tpu.dimension_semantics<parallel>, #tpu.dimension_semantics<arbitrary>], iteration_bounds = array<i64: 2, 1, 1, 1>, scalar_prefetch = 0 : i64, scratch_operands = 0 : i64, tpu.core_type = #tpu.core_type<tc>, window_params = [{transform_indices = @transform_0, window_bounds = array<i64: 1, 1, 1, 8, 8, 32>}, {transform_indices = @transform_1, window_bounds = array<i64: 1, 32, 64>}, {transform_indices = @transform_2, window_bounds = array<i64: 1, 64>}, {transform_indices = @transform_3, window_bounds = array<i64: 1, 64>}, {transform_indices = @transform_4, window_bounds = array<i64: 1, 8, 8, 64>}]} {
    %c0 = arith.constant 0 : index
    %c0_0 = arith.constant 0 : index
    %c0_1 = arith.constant 0 : index
    %c0_2 = arith.constant 0 : index
    %c0_3 = arith.constant 0 : index
    %c0_4 = arith.constant 0 : index
    %0 = vector.load %arg4[%c0, %c0_0, %c0_1, %c0_2, %c0_3, %c0_4] : memref<1x1x1x8x8x32xbf16, #tpu.memory_space<vmem>>, vector<1x1x1x8x8x32xbf16>
    %1 = vector.shape_cast %0 : vector<1x1x1x8x8x32xbf16> to vector<8x8x32xbf16>
    %2 = vector.shape_cast %1 : vector<8x8x32xbf16> to vector<64x32xbf16>
    %c0_5 = arith.constant 0 : index
    %c0_6 = arith.constant 0 : index
    %c0_7 = arith.constant 0 : index
    %3 = vector.load %arg5[%c0_5, %c0_6, %c0_7] : memref<1x32x64xbf16, #tpu.memory_space<vmem>>, vector<1x32x64xbf16>
    %4 = vector.shape_cast %3 : vector<1x32x64xbf16> to vector<32x64xbf16>
    %cst = arith.constant dense<0.000000e+00> : vector<64x64xf32>
    %5 = tpu.matmul %2, %4, %cst {dimension_numbers = #tpu.dot_dimension_numbers<[1], [0], [0], [1], [0, 0, 1, 1], [], []>} : vector<64x32xbf16>, vector<32x64xbf16>, vector<64x64xf32> -> vector<64x64xf32>
    %c0_8 = arith.constant 0 : index
    %c0_9 = arith.constant 0 : index
    %6 = vector.load %arg6[%c0_8, %c0_9] : memref<1x64xf32, #tpu.memory_space<vmem>>, vector<1x64xf32>
    %7 = vector.broadcast %6 : vector<1x64xf32> to vector<64x64xf32>
    %8 = arith.mulf %5, %7 : vector<64x64xf32>
    %c0_10 = arith.constant 0 : index
    %c0_11 = arith.constant 0 : index
    %9 = vector.load %arg7[%c0_10, %c0_11] : memref<1x64xf32, #tpu.memory_space<vmem>>, vector<1x64xf32>
    %10 = vector.broadcast %9 : vector<1x64xf32> to vector<64x64xf32>
    %11 = arith.addf %8, %10 : vector<64x64xf32>
    %12 = vector.shape_cast %11 : vector<64x64xf32> to vector<8x8x64xf32>
    %13 = arith.truncf %12 : vector<8x8x64xf32> to vector<8x8x64xbf16>
    %c0_12 = arith.constant 0 : index
    %c0_13 = arith.constant 0 : index
    %c0_14 = arith.constant 0 : index
    %c0_15 = arith.constant 0 : index
    %14 = vector.load %arg8[%c0_12, %c0_13, %c0_14, %c0_15] : memref<1x8x8x64xbf16, #tpu.memory_space<vmem>>, vector<1x8x8x64xbf16>
    %15 = vector.shape_cast %14 : vector<1x8x8x64xbf16> to vector<8x8x64xbf16>
    %16 = vector.shape_cast %13 : vector<8x8x64xbf16> to vector<1x8x8x64xbf16>
    tpu.vector_store %arg8[%c0_12, %c0_13, %c0_14, %c0_15], %16 {strides = array<i32>} : memref<1x8x8x64xbf16, #tpu.memory_space<vmem>>, vector<1x8x8x64xbf16>,
    return
  }
  func.func @transform_0(%arg0: i32, %arg1: i32, %arg2: i32, %arg3: i32) -> (i32, i32, i32, i32, i32, i32) {
    %c0_i32 = arith.constant 0 : i32
    %c0_i32_0 = arith.constant 0 : i32
    %c0_i32_1 = arith.constant 0 : i32
    %c0_i32_2 = arith.constant 0 : i32
    return %arg0, %c0_i32, %arg1, %c0_i32_0, %c0_i32_1, %arg3 : i32, i32, i32, i32, i32, i32
  }
  func.func @transform_1(%arg0: i32, %arg1: i32, %arg2: i32, %arg3: i32) -> (i32, i32, i32) {
    %c0_i32 = arith.constant 0 : i32
    %c0_i32_0 = arith.constant 0 : i32
    return %arg3, %c0_i32, %arg2 : i32, i32, i32
  }
  func.func @transform_2(%arg0: i32, %arg1: i32, %arg2: i32, %arg3: i32) -> (i32, i32) {
    %c0_i32 = arith.constant 0 : i32
    %c0_i32_0 = arith.constant 0 : i32
    return %c0_i32, %arg2 : i32, i32
  }
  func.func @transform_3(%arg0: i32, %arg1: i32, %arg2: i32, %arg3: i32) -> (i32, i32) {
    %c0_i32 = arith.constant 0 : i32
    %c0_i32_0 = arith.constant 0 : i32
    return %c0_i32, %arg2 : i32, i32
  }
  func.func @transform_4(%arg0: i32, %arg1: i32, %arg2: i32, %arg3: i32) -> (i32, i32, i32, i32) {
    %c0_i32 = arith.constant 0 : i32
    %c0_i32_0 = arith.constant 0 : i32
    return %arg0, %arg1, %c0_i32, %arg2 : i32, i32, i32, i32
  }
}

module attributes {stable_mosaic.version = 11 : i64} {
  func.func @kernel(%arg0: i32, %arg1: i32, %arg2: i32, %arg3: i32, %arg4: memref<1x4x1x9x9x32xbf16, #tpu.memory_space<vmem>>, %arg5: memref<1x288x64xbf16, #tpu.memory_space<vmem>>, %arg6: memref<1x64xf32, #tpu.memory_space<vmem>>, %arg7: memref<1x64xf32, #tpu.memory_space<vmem>>, %arg8: memref<1x8x8x64xbf16, #tpu.memory_space<vmem>>, %arg9: memref<64x288xbf16, #tpu.memory_space<vmem>>) attributes {dimension_semantics = [#tpu.dimension_semantics<parallel>, #tpu.dimension_semantics<parallel>, #tpu.dimension_semantics<parallel>, #tpu.dimension_semantics<arbitrary>], iteration_bounds = array<i64: 2, 1, 1, 1>, scalar_prefetch = 0 : i64, scratch_operands = 1 : i64, tpu.core_type = #tpu.core_type<tc>, window_params = [{transform_indices = @transform_0, window_bounds = array<i64: 1, 4, 1, 9, 9, 32>}, {transform_indices = @transform_1, window_bounds = array<i64: 1, 288, 64>}, {transform_indices = @transform_2, window_bounds = array<i64: 1, 64>}, {transform_indices = @transform_3, window_bounds = array<i64: 1, 64>}, {transform_indices = @transform_4, window_bounds = array<i64: 1, 8, 8, 64>}]} {
    %c0 = arith.constant 0 : index
    %c0_0 = arith.constant 0 : index
    %c0_1 = arith.constant 0 : index
    %c0_2 = arith.constant 0 : index
    %c0_3 = arith.constant 0 : index
    %c0_4 = arith.constant 0 : index
    %0 = vector.load %arg4[%c0, %c0_0, %c0_1, %c0_2, %c0_3, %c0_4] : memref<1x4x1x9x9x32xbf16, #tpu.memory_space<vmem>>, vector<1x1x1x8x8x32xbf16>
    %1 = vector.shape_cast %0 : vector<1x1x1x8x8x32xbf16> to vector<8x8x32xbf16>
    %2 = vector.shape_cast %1 : vector<8x8x32xbf16> to vector<64x32xbf16>
    %c0_5 = arith.constant 0 : index
    %c0_6 = arith.constant 0 : index
    %3 = vector.load %arg9[%c0_5, %c0_6] : memref<64x288xbf16, #tpu.memory_space<vmem>>, vector<64x32xbf16>
    tpu.vector_store %arg9[%c0_5, %c0_6], %2 {strides = array<i32>} : memref<64x288xbf16, #tpu.memory_space<vmem>>, vector<64x32xbf16>,
    %c0_7 = arith.constant 0 : index
    %c1 = arith.constant 1 : index
    %c0_8 = arith.constant 0 : index
    %c0_9 = arith.constant 0 : index
    %c0_10 = arith.constant 0 : index
    %c0_11 = arith.constant 0 : index
    %4 = vector.load %arg4[%c0_7, %c1, %c0_8, %c0_9, %c0_10, %c0_11] : memref<1x4x1x9x9x32xbf16, #tpu.memory_space<vmem>>, vector<1x1x1x8x8x32xbf16>
    %5 = vector.shape_cast %4 : vector<1x1x1x8x8x32xbf16> to vector<8x8x32xbf16>
    %6 = vector.shape_cast %5 : vector<8x8x32xbf16> to vector<64x32xbf16>
    %c0_12 = arith.constant 0 : index
    %c32 = arith.constant 32 : index
    %7 = vector.load %arg9[%c0_12, %c32] : memref<64x288xbf16, #tpu.memory_space<vmem>>, vector<64x32xbf16>
    tpu.vector_store %arg9[%c0_12, %c32], %6 {strides = array<i32>} : memref<64x288xbf16, #tpu.memory_space<vmem>>, vector<64x32xbf16>,
    %c0_13 = arith.constant 0 : index
    %c0_14 = arith.constant 0 : index
    %c0_15 = arith.constant 0 : index
    %c0_16 = arith.constant 0 : index
    %c1_17 = arith.constant 1 : index
    %c0_18 = arith.constant 0 : index
    %8 = vector.load %arg4[%c0_13, %c0_14, %c0_15, %c0_16, %c1_17, %c0_18] : memref<1x4x1x9x9x32xbf16, #tpu.memory_space<vmem>>, vector<1x1x1x8x8x32xbf16>
    %9 = vector.shape_cast %8 : vector<1x1x1x8x8x32xbf16> to vector<8x8x32xbf16>
    %10 = vector.shape_cast %9 : vector<8x8x32xbf16> to vector<64x32xbf16>
    %c0_19 = arith.constant 0 : index
    %c64 = arith.constant 64 : index
    %11 = vector.load %arg9[%c0_19, %c64] : memref<64x288xbf16, #tpu.memory_space<vmem>>, vector<64x32xbf16>
    tpu.vector_store %arg9[%c0_19, %c64], %10 {strides = array<i32>} : memref<64x288xbf16, #tpu.memory_space<vmem>>, vector<64x32xbf16>,
    %c0_20 = arith.constant 0 : index
    %c2 = arith.constant 2 : index
    %c0_21 = arith.constant 0 : index
    %c0_22 = arith.constant 0 : index
    %c0_23 = arith.constant 0 : index
    %c0_24 = arith.constant 0 : index
    %12 = vector.load %arg4[%c0_20, %c2, %c0_21, %c0_22, %c0_23, %c0_24] : memref<1x4x1x9x9x32xbf16, #tpu.memory_space<vmem>>, vector<1x1x1x8x8x32xbf16>
    %13 = vector.shape_cast %12 : vector<1x1x1x8x8x32xbf16> to vector<8x8x32xbf16>
    %14 = vector.shape_cast %13 : vector<8x8x32xbf16> to vector<64x32xbf16>
    %c0_25 = arith.constant 0 : index
    %c96 = arith.constant 96 : index
    %15 = vector.load %arg9[%c0_25, %c96] : memref<64x288xbf16, #tpu.memory_space<vmem>>, vector<64x32xbf16>
    tpu.vector_store %arg9[%c0_25, %c96], %14 {strides = array<i32>} : memref<64x288xbf16, #tpu.memory_space<vmem>>, vector<64x32xbf16>,
    %c0_26 = arith.constant 0 : index
    %c3 = arith.constant 3 : index
    %c0_27 = arith.constant 0 : index
    %c0_28 = arith.constant 0 : index
    %c0_29 = arith.constant 0 : index
    %c0_30 = arith.constant 0 : index
    %16 = vector.load %arg4[%c0_26, %c3, %c0_27, %c0_28, %c0_29, %c0_30] : memref<1x4x1x9x9x32xbf16, #tpu.memory_space<vmem>>, vector<1x1x1x8x8x32xbf16>
    %17 = vector.shape_cast %16 : vector<1x1x1x8x8x32xbf16> to vector<8x8x32xbf16>
    %18 = vector.shape_cast %17 : vector<8x8x32xbf16> to vector<64x32xbf16>
    %c0_31 = arith.constant 0 : index
    %c128 = arith.constant 128 : index
    %19 = vector.load %arg9[%c0_31, %c128] : memref<64x288xbf16, #tpu.memory_space<vmem>>, vector<64x32xbf16>
    tpu.vector_store %arg9[%c0_31, %c128], %18 {strides = array<i32>} : memref<64x288xbf16, #tpu.memory_space<vmem>>, vector<64x32xbf16>,
    %c0_32 = arith.constant 0 : index
    %c2_33 = arith.constant 2 : index
    %c0_34 = arith.constant 0 : index
    %c0_35 = arith.constant 0 : index
    %c1_36 = arith.constant 1 : index
    %c0_37 = arith.constant 0 : index
    %20 = vector.load %arg4[%c0_32, %c2_33, %c0_34, %c0_35, %c1_36, %c0_37] : memref<1x4x1x9x9x32xbf16, #tpu.memory_space<vmem>>, vector<1x1x1x8x8x32xbf16>
    %21 = vector.shape_cast %20 : vector<1x1x1x8x8x32xbf16> to vector<8x8x32xbf16>
    %22 = vector.shape_cast %21 : vector<8x8x32xbf16> to vector<64x32xbf16>
    %c0_38 = arith.constant 0 : index
    %c160 = arith.constant 160 : index
    %23 = vector.load %arg9[%c0_38, %c160] : memref<64x288xbf16, #tpu.memory_space<vmem>>, vector<64x32xbf16>
    tpu.vector_store %arg9[%c0_38, %c160], %22 {strides = array<i32>} : memref<64x288xbf16, #tpu.memory_space<vmem>>, vector<64x32xbf16>,
    %c0_39 = arith.constant 0 : index
    %c0_40 = arith.constant 0 : index
    %c0_41 = arith.constant 0 : index
    %c1_42 = arith.constant 1 : index
    %c0_43 = arith.constant 0 : index
    %c0_44 = arith.constant 0 : index
    %24 = vector.load %arg4[%c0_39, %c0_40, %c0_41, %c1_42, %c0_43, %c0_44] : memref<1x4x1x9x9x32xbf16, #tpu.memory_space<vmem>>, vector<1x1x1x8x8x32xbf16>
    %25 = vector.shape_cast %24 : vector<1x1x1x8x8x32xbf16> to vector<8x8x32xbf16>
    %26 = vector.shape_cast %25 : vector<8x8x32xbf16> to vector<64x32xbf16>
    %c0_45 = arith.constant 0 : index
    %c192 = arith.constant 192 : index
    %27 = vector.load %arg9[%c0_45, %c192] : memref<64x288xbf16, #tpu.memory_space<vmem>>, vector<64x32xbf16>
    tpu.vector_store %arg9[%c0_45, %c192], %26 {strides = array<i32>} : memref<64x288xbf16, #tpu.memory_space<vmem>>, vector<64x32xbf16>,
    %c0_46 = arith.constant 0 : index
    %c1_47 = arith.constant 1 : index
    %c0_48 = arith.constant 0 : index
    %c1_49 = arith.constant 1 : index
    %c0_50 = arith.constant 0 : index
    %c0_51 = arith.constant 0 : index
    %28 = vector.load %arg4[%c0_46, %c1_47, %c0_48, %c1_49, %c0_50, %c0_51] : memref<1x4x1x9x9x32xbf16, #tpu.memory_space<vmem>>, vector<1x1x1x8x8x32xbf16>
    %29 = vector.shape_cast %28 : vector<1x1x1x8x8x32xbf16> to vector<8x8x32xbf16>
    %30 = vector.shape_cast %29 : vector<8x8x32xbf16> to vector<64x32xbf16>
    %c0_52 = arith.constant 0 : index
    %c224 = arith.constant 224 : index
    %31 = vector.load %arg9[%c0_52, %c224] : memref<64x288xbf16, #tpu.memory_space<vmem>>, vector<64x32xbf16>
    tpu.vector_store %arg9[%c0_52, %c224], %30 {strides = array<i32>} : memref<64x288xbf16, #tpu.memory_space<vmem>>, vector<64x32xbf16>,
    %c0_53 = arith.constant 0 : index
    %c0_54 = arith.constant 0 : index
    %c0_55 = arith.constant 0 : index
    %c1_56 = arith.constant 1 : index
    %c1_57 = arith.constant 1 : index
    %c0_58 = arith.constant 0 : index
    %32 = vector.load %arg4[%c0_53, %c0_54, %c0_55, %c1_56, %c1_57, %c0_58] : memref<1x4x1x9x9x32xbf16, #tpu.memory_space<vmem>>, vector<1x1x1x8x8x32xbf16>
    %33 = vector.shape_cast %32 : vector<1x1x1x8x8x32xbf16> to vector<8x8x32xbf16>
    %34 = vector.shape_cast %33 : vector<8x8x32xbf16> to vector<64x32xbf16>
    %c0_59 = arith.constant 0 : index
    %c256 = arith.constant 256 : index
    %35 = vector.load %arg9[%c0_59, %c256] : memref<64x288xbf16, #tpu.memory_space<vmem>>, vector<64x32xbf16>
    tpu.vector_store %arg9[%c0_59, %c256], %34 {strides = array<i32>} : memref<64x288xbf16, #tpu.memory_space<vmem>>, vector<64x32xbf16>,
    %c0_60 = arith.constant 0 : index
    %c0_61 = arith.constant 0 : index
    %36 = vector.load %arg9[%c0_60, %c0_61] : memref<64x288xbf16, #tpu.memory_space<vmem>>, vector<64x288xbf16>
    %c0_62 = arith.constant 0 : index
    %c0_63 = arith.constant 0 : index
    %c0_64 = arith.constant 0 : index
    %37 = vector.load %arg5[%c0_62, %c0_63, %c0_64] : memref<1x288x64xbf16, #tpu.memory_space<vmem>>, vector<1x288x64xbf16>
    %38 = vector.shape_cast %37 : vector<1x288x64xbf16> to vector<288x64xbf16>
    %cst = arith.constant dense<0.000000e+00> : vector<64x64xf32>
    %39 = tpu.matmul %36, %38, %cst {dimension_numbers = #tpu.dot_dimension_numbers<[1], [0], [0], [1], [0, 0, 1, 1], [], []>} : vector<64x288xbf16>, vector<288x64xbf16>, vector<64x64xf32> -> vector<64x64xf32>
    %c0_65 = arith.constant 0 : index
    %c0_66 = arith.constant 0 : index
    %40 = vector.load %arg6[%c0_65, %c0_66] : memref<1x64xf32, #tpu.memory_space<vmem>>, vector<1x64xf32>
    %41 = vector.broadcast %40 : vector<1x64xf32> to vector<64x64xf32>
    %42 = arith.mulf %39, %41 : vector<64x64xf32>
    %c0_67 = arith.constant 0 : index
    %c0_68 = arith.constant 0 : index
    %43 = vector.load %arg7[%c0_67, %c0_68] : memref<1x64xf32, #tpu.memory_space<vmem>>, vector<1x64xf32>
    %44 = vector.broadcast %43 : vector<1x64xf32> to vector<64x64xf32>
    %45 = arith.addf %42, %44 : vector<64x64xf32>
    %46 = vector.shape_cast %45 : vector<64x64xf32> to vector<8x8x64xf32>
    %cst_69 = arith.constant 0.000000e+00 : f32
    %47 = vector.broadcast %cst_69 : f32 to vector<8x8x64xf32>
    %48 = arith.maximumf %46, %47 : vector<8x8x64xf32>
    %49 = arith.truncf %48 : vector<8x8x64xf32> to vector<8x8x64xbf16>
    %c0_70 = arith.constant 0 : index
    %c0_71 = arith.constant 0 : index
    %c0_72 = arith.constant 0 : index
    %c0_73 = arith.constant 0 : index
    %50 = vector.load %arg8[%c0_70, %c0_71, %c0_72, %c0_73] : memref<1x8x8x64xbf16, #tpu.memory_space<vmem>>, vector<1x8x8x64xbf16>
    %51 = vector.shape_cast %50 : vector<1x8x8x64xbf16> to vector<8x8x64xbf16>
    %52 = vector.shape_cast %49 : vector<8x8x64xbf16> to vector<1x8x8x64xbf16>
    tpu.vector_store %arg8[%c0_70, %c0_71, %c0_72, %c0_73], %52 {strides = array<i32>} : memref<1x8x8x64xbf16, #tpu.memory_space<vmem>>, vector<1x8x8x64xbf16>,
    return
  }
  func.func @transform_0(%arg0: i32, %arg1: i32, %arg2: i32, %arg3: i32) -> (i32, i32, i32, i32, i32, i32) {
    %c0_i32 = arith.constant 0 : i32
    %c0_i32_0 = arith.constant 0 : i32
    %c0_i32_1 = arith.constant 0 : i32
    %c0_i32_2 = arith.constant 0 : i32
    return %arg0, %c0_i32, %arg1, %c0_i32_0, %c0_i32_1, %arg3 : i32, i32, i32, i32, i32, i32
  }
  func.func @transform_1(%arg0: i32, %arg1: i32, %arg2: i32, %arg3: i32) -> (i32, i32, i32) {
    %c0_i32 = arith.constant 0 : i32
    %c0_i32_0 = arith.constant 0 : i32
    return %arg3, %c0_i32, %arg2 : i32, i32, i32
  }
  func.func @transform_2(%arg0: i32, %arg1: i32, %arg2: i32, %arg3: i32) -> (i32, i32) {
    %c0_i32 = arith.constant 0 : i32
    %c0_i32_0 = arith.constant 0 : i32
    return %c0_i32, %arg2 : i32, i32
  }
  func.func @transform_3(%arg0: i32, %arg1: i32, %arg2: i32, %arg3: i32) -> (i32, i32) {
    %c0_i32 = arith.constant 0 : i32
    %c0_i32_0 = arith.constant 0 : i32
    return %c0_i32, %arg2 : i32, i32
  }
  func.func @transform_4(%arg0: i32, %arg1: i32, %arg2: i32, %arg3: i32) -> (i32, i32, i32, i32) {
    %c0_i32 = arith.constant 0 : i32
    %c0_i32_0 = arith.constant 0 : i32
    return %arg0, %arg1, %c0_i32, %arg2 : i32, i32, i32, i32
  }
}

module attributes {stable_mosaic.version = 11 : i64} {
  func.func @kernel(%arg0: i32, %arg1: i32, %arg2: i32, %arg3: i32, %arg4: memref<1x1x1x10x10x64xbf16, #tpu.memory_space<vmem>>, %arg5: memref<1x576x64xbf16, #tpu.memory_space<vmem>>, %arg6: memref<1x64xf32, #tpu.memory_space<vmem>>, %arg7: memref<1x64xf32, #tpu.memory_space<vmem>>, %arg8: memref<1x8x8x64xbf16, #tpu.memory_space<vmem>>, %arg9: memref<1x8x8x64xf32, #tpu.memory_space<vmem>>, %arg10: memref<64x576xbf16, #tpu.memory_space<vmem>>) attributes {dimension_semantics = [#tpu.dimension_semantics<parallel>, #tpu.dimension_semantics<parallel>, #tpu.dimension_semantics<parallel>, #tpu.dimension_semantics<arbitrary>], iteration_bounds = array<i64: 2, 1, 1, 1>, scalar_prefetch = 0 : i64, scratch_operands = 1 : i64, tpu.core_type = #tpu.core_type<tc>, window_params = [{transform_indices = @transform_0, window_bounds = array<i64: 1, 1, 1, 10, 10, 64>}, {transform_indices = @transform_1, window_bounds = array<i64: 1, 576, 64>}, {transform_indices = @transform_2, window_bounds = array<i64: 1, 64>}, {transform_indices = @transform_3, window_bounds = array<i64: 1, 64>}, {transform_indices = @transform_4, window_bounds = array<i64: 1, 8, 8, 64>}, {transform_indices = @transform_5, window_bounds = array<i64: 1, 8, 8, 64>}]} {
    %c0 = arith.constant 0 : index
    %c0_0 = arith.constant 0 : index
    %c0_1 = arith.constant 0 : index
    %c0_2 = arith.constant 0 : index
    %c0_3 = arith.constant 0 : index
    %c0_4 = arith.constant 0 : index
    %0 = vector.load %arg4[%c0, %c0_0, %c0_1, %c0_2, %c0_3, %c0_4] : memref<1x1x1x10x10x64xbf16, #tpu.memory_space<vmem>>, vector<1x1x1x8x8x64xbf16>
    %1 = vector.shape_cast %0 : vector<1x1x1x8x8x64xbf16> to vector<8x8x64xbf16>
    %2 = vector.shape_cast %1 : vector<8x8x64xbf16> to vector<64x64xbf16>
    %c0_5 = arith.constant 0 : index
    %c0_6 = arith.constant 0 : index
    %3 = vector.load %arg10[%c0_5, %c0_6] : memref<64x576xbf16, #tpu.memory_space<vmem>>, vector<64x64xbf16>
    tpu.vector_store %arg10[%c0_5, %c0_6], %2 {strides = array<i32>} : memref<64x576xbf16, #tpu.memory_space<vmem>>, vector<64x64xbf16>,
    %c0_7 = arith.constant 0 : index
    %c0_8 = arith.constant 0 : index
    %c0_9 = arith.constant 0 : index
    %c0_10 = arith.constant 0 : index
    %c1 = arith.constant 1 : index
    %c0_11 = arith.constant 0 : index
    %4 = vector.load %arg4[%c0_7, %c0_8, %c0_9, %c0_10, %c1, %c0_11] : memref<1x1x1x10x10x64xbf16, #tpu.memory_space<vmem>>, vector<1x1x1x8x8x64xbf16>
    %5 = vector.shape_cast %4 : vector<1x1x1x8x8x64xbf16> to vector<8x8x64xbf16>
    %6 = vector.shape_cast %5 : vector<8x8x64xbf16> to vector<64x64xbf16>
    %c0_12 = arith.constant 0 : index
    %c64 = arith.constant 64 : index
    %7 = vector.load %arg10[%c0_12, %c64] : memref<64x576xbf16, #tpu.memory_space<vmem>>, vector<64x64xbf16>
    tpu.vector_store %arg10[%c0_12, %c64], %6 {strides = array<i32>} : memref<64x576xbf16, #tpu.memory_space<vmem>>, vector<64x64xbf16>,
    %c0_13 = arith.constant 0 : index
    %c0_14 = arith.constant 0 : index
    %c0_15 = arith.constant 0 : index
    %c0_16 = arith.constant 0 : index
    %c2 = arith.constant 2 : index
    %c0_17 = arith.constant 0 : index
    %8 = vector.load %arg4[%c0_13, %c0_14, %c0_15, %c0_16, %c2, %c0_17] : memref<1x1x1x10x10x64xbf16, #tpu.memory_space<vmem>>, vector<1x1x1x8x8x64xbf16>
    %9 = vector.shape_cast %8 : vector<1x1x1x8x8x64xbf16> to vector<8x8x64xbf16>
    %10 = vector.shape_cast %9 : vector<8x8x64xbf16> to vector<64x64xbf16>
    %c0_18 = arith.constant 0 : index
    %c128 = arith.constant 128 : index
    %11 = vector.load %arg10[%c0_18, %c128] : memref<64x576xbf16, #tpu.memory_space<vmem>>, vector<64x64xbf16>
    tpu.vector_store %arg10[%c0_18, %c128], %10 {strides = array<i32>} : memref<64x576xbf16, #tpu.memory_space<vmem>>, vector<64x64xbf16>,
    %c0_19 = arith.constant 0 : index
    %c0_20 = arith.constant 0 : index
    %c0_21 = arith.constant 0 : index
    %c1_22 = arith.constant 1 : index
    %c0_23 = arith.constant 0 : index
    %c0_24 = arith.constant 0 : index
    %12 = vector.load %arg4[%c0_19, %c0_20, %c0_21, %c1_22, %c0_23, %c0_24] : memref<1x1x1x10x10x64xbf16, #tpu.memory_space<vmem>>, vector<1x1x1x8x8x64xbf16>
    %13 = vector.shape_cast %12 : vector<1x1x1x8x8x64xbf16> to vector<8x8x64xbf16>
    %14 = vector.shape_cast %13 : vector<8x8x64xbf16> to vector<64x64xbf16>
    %c0_25 = arith.constant 0 : index
    %c192 = arith.constant 192 : index
    %15 = vector.load %arg10[%c0_25, %c192] : memref<64x576xbf16, #tpu.memory_space<vmem>>, vector<64x64xbf16>
    tpu.vector_store %arg10[%c0_25, %c192], %14 {strides = array<i32>} : memref<64x576xbf16, #tpu.memory_space<vmem>>, vector<64x64xbf16>,
    %c0_26 = arith.constant 0 : index
    %c0_27 = arith.constant 0 : index
    %c0_28 = arith.constant 0 : index
    %c1_29 = arith.constant 1 : index
    %c1_30 = arith.constant 1 : index
    %c0_31 = arith.constant 0 : index
    %16 = vector.load %arg4[%c0_26, %c0_27, %c0_28, %c1_29, %c1_30, %c0_31] : memref<1x1x1x10x10x64xbf16, #tpu.memory_space<vmem>>, vector<1x1x1x8x8x64xbf16>
    %17 = vector.shape_cast %16 : vector<1x1x1x8x8x64xbf16> to vector<8x8x64xbf16>
    %18 = vector.shape_cast %17 : vector<8x8x64xbf16> to vector<64x64xbf16>
    %c0_32 = arith.constant 0 : index
    %c256 = arith.constant 256 : index
    %19 = vector.load %arg10[%c0_32, %c256] : memref<64x576xbf16, #tpu.memory_space<vmem>>, vector<64x64xbf16>
    tpu.vector_store %arg10[%c0_32, %c256], %18 {strides = array<i32>} : memref<64x576xbf16, #tpu.memory_space<vmem>>, vector<64x64xbf16>,
    %c0_33 = arith.constant 0 : index
    %c0_34 = arith.constant 0 : index
    %c0_35 = arith.constant 0 : index
    %c1_36 = arith.constant 1 : index
    %c2_37 = arith.constant 2 : index
    %c0_38 = arith.constant 0 : index
    %20 = vector.load %arg4[%c0_33, %c0_34, %c0_35, %c1_36, %c2_37, %c0_38] : memref<1x1x1x10x10x64xbf16, #tpu.memory_space<vmem>>, vector<1x1x1x8x8x64xbf16>
    %21 = vector.shape_cast %20 : vector<1x1x1x8x8x64xbf16> to vector<8x8x64xbf16>
    %22 = vector.shape_cast %21 : vector<8x8x64xbf16> to vector<64x64xbf16>
    %c0_39 = arith.constant 0 : index
    %c320 = arith.constant 320 : index
    %23 = vector.load %arg10[%c0_39, %c320] : memref<64x576xbf16, #tpu.memory_space<vmem>>, vector<64x64xbf16>
    tpu.vector_store %arg10[%c0_39, %c320], %22 {strides = array<i32>} : memref<64x576xbf16, #tpu.memory_space<vmem>>, vector<64x64xbf16>,
    %c0_40 = arith.constant 0 : index
    %c0_41 = arith.constant 0 : index
    %c0_42 = arith.constant 0 : index
    %c2_43 = arith.constant 2 : index
    %c0_44 = arith.constant 0 : index
    %c0_45 = arith.constant 0 : index
    %24 = vector.load %arg4[%c0_40, %c0_41, %c0_42, %c2_43, %c0_44, %c0_45] : memref<1x1x1x10x10x64xbf16, #tpu.memory_space<vmem>>, vector<1x1x1x8x8x64xbf16>
    %25 = vector.shape_cast %24 : vector<1x1x1x8x8x64xbf16> to vector<8x8x64xbf16>
    %26 = vector.shape_cast %25 : vector<8x8x64xbf16> to vector<64x64xbf16>
    %c0_46 = arith.constant 0 : index
    %c384 = arith.constant 384 : index
    %27 = vector.load %arg10[%c0_46, %c384] : memref<64x576xbf16, #tpu.memory_space<vmem>>, vector<64x64xbf16>
    tpu.vector_store %arg10[%c0_46, %c384], %26 {strides = array<i32>} : memref<64x576xbf16, #tpu.memory_space<vmem>>, vector<64x64xbf16>,
    %c0_47 = arith.constant 0 : index
    %c0_48 = arith.constant 0 : index
    %c0_49 = arith.constant 0 : index
    %c2_50 = arith.constant 2 : index
    %c1_51 = arith.constant 1 : index
    %c0_52 = arith.constant 0 : index
    %28 = vector.load %arg4[%c0_47, %c0_48, %c0_49, %c2_50, %c1_51, %c0_52] : memref<1x1x1x10x10x64xbf16, #tpu.memory_space<vmem>>, vector<1x1x1x8x8x64xbf16>
    %29 = vector.shape_cast %28 : vector<1x1x1x8x8x64xbf16> to vector<8x8x64xbf16>
    %30 = vector.shape_cast %29 : vector<8x8x64xbf16> to vector<64x64xbf16>
    %c0_53 = arith.constant 0 : index
    %c448 = arith.constant 448 : index
    %31 = vector.load %arg10[%c0_53, %c448] : memref<64x576xbf16, #tpu.memory_space<vmem>>, vector<64x64xbf16>
    tpu.vector_store %arg10[%c0_53, %c448], %30 {strides = array<i32>} : memref<64x576xbf16, #tpu.memory_space<vmem>>, vector<64x64xbf16>,
    %c0_54 = arith.constant 0 : index
    %c0_55 = arith.constant 0 : index
    %c0_56 = arith.constant 0 : index
    %c2_57 = arith.constant 2 : index
    %c2_58 = arith.constant 2 : index
    %c0_59 = arith.constant 0 : index
    %32 = vector.load %arg4[%c0_54, %c0_55, %c0_56, %c2_57, %c2_58, %c0_59] : memref<1x1x1x10x10x64xbf16, #tpu.memory_space<vmem>>, vector<1x1x1x8x8x64xbf16>
    %33 = vector.shape_cast %32 : vector<1x1x1x8x8x64xbf16> to vector<8x8x64xbf16>
    %34 = vector.shape_cast %33 : vector<8x8x64xbf16> to vector<64x64xbf16>
    %c0_60 = arith.constant 0 : index
    %c512 = arith.constant 512 : index
    %35 = vector.load %arg10[%c0_60, %c512] : memref<64x576xbf16, #tpu.memory_space<vmem>>, vector<64x64xbf16>
    tpu.vector_store %arg10[%c0_60, %c512], %34 {strides = array<i32>} : memref<64x576xbf16, #tpu.memory_space<vmem>>, vector<64x64xbf16>,
    %c0_61 = arith.constant 0 : index
    %c0_62 = arith.constant 0 : index
    %36 = vector.load %arg10[%c0_61, %c0_62] : memref<64x576xbf16, #tpu.memory_space<vmem>>, vector<64x576xbf16>
    %c0_63 = arith.constant 0 : index
    %c0_64 = arith.constant 0 : index
    %c0_65 = arith.constant 0 : index
    %37 = vector.load %arg5[%c0_63, %c0_64, %c0_65] : memref<1x576x64xbf16, #tpu.memory_space<vmem>>, vector<1x576x64xbf16>
    %38 = vector.shape_cast %37 : vector<1x576x64xbf16> to vector<576x64xbf16>
    %cst = arith.constant dense<0.000000e+00> : vector<64x64xf32>
    %39 = tpu.matmul %36, %38, %cst {dimension_numbers = #tpu.dot_dimension_numbers<[1], [0], [0], [1], [0, 0, 1, 1], [], []>} : vector<64x576xbf16>, vector<576x64xbf16>, vector<64x64xf32> -> vector<64x64xf32>
    %c0_66 = arith.constant 0 : index
    %c0_67 = arith.constant 0 : index
    %40 = vector.load %arg6[%c0_66, %c0_67] : memref<1x64xf32, #tpu.memory_space<vmem>>, vector<1x64xf32>
    %41 = vector.broadcast %40 : vector<1x64xf32> to vector<64x64xf32>
    %42 = arith.mulf %39, %41 : vector<64x64xf32>
    %c0_68 = arith.constant 0 : index
    %c0_69 = arith.constant 0 : index
    %43 = vector.load %arg7[%c0_68, %c0_69] : memref<1x64xf32, #tpu.memory_space<vmem>>, vector<1x64xf32>
    %44 = vector.broadcast %43 : vector<1x64xf32> to vector<64x64xf32>
    %45 = arith.addf %42, %44 : vector<64x64xf32>
    %46 = vector.shape_cast %45 : vector<64x64xf32> to vector<8x8x64xf32>
    %c0_70 = arith.constant 0 : index
    %c0_71 = arith.constant 0 : index
    %c0_72 = arith.constant 0 : index
    %c0_73 = arith.constant 0 : index
    %47 = vector.load %arg8[%c0_70, %c0_71, %c0_72, %c0_73] : memref<1x8x8x64xbf16, #tpu.memory_space<vmem>>, vector<1x8x8x64xbf16>
    %48 = vector.shape_cast %47 : vector<1x8x8x64xbf16> to vector<8x8x64xbf16>
    %49 = arith.extf %48 : vector<8x8x64xbf16> to vector<8x8x64xf32>
    %50 = arith.addf %46, %49 : vector<8x8x64xf32>
    %cst_74 = arith.constant 0.000000e+00 : f32
    %51 = vector.broadcast %cst_74 : f32 to vector<8x8x64xf32>
    %52 = arith.maximumf %50, %51 : vector<8x8x64xf32>
    %c0_75 = arith.constant 0 : index
    %c0_76 = arith.constant 0 : index
    %c0_77 = arith.constant 0 : index
    %c0_78 = arith.constant 0 : index
    %53 = vector.load %arg9[%c0_75, %c0_76, %c0_77, %c0_78] : memref<1x8x8x64xf32, #tpu.memory_space<vmem>>, vector<1x8x8x64xf32>
    %54 = vector.shape_cast %53 : vector<1x8x8x64xf32> to vector<8x8x64xf32>
    %55 = vector.shape_cast %52 : vector<8x8x64xf32> to vector<1x8x8x64xf32>
    tpu.vector_store %arg9[%c0_75, %c0_76, %c0_77, %c0_78], %55 {strides = array<i32>} : memref<1x8x8x64xf32, #tpu.memory_space<vmem>>, vector<1x8x8x64xf32>,
    return
  }
  func.func @transform_0(%arg0: i32, %arg1: i32, %arg2: i32, %arg3: i32) -> (i32, i32, i32, i32, i32, i32) {
    %c0_i32 = arith.constant 0 : i32
    %c0_i32_0 = arith.constant 0 : i32
    %c0_i32_1 = arith.constant 0 : i32
    %c0_i32_2 = arith.constant 0 : i32
    return %arg0, %c0_i32, %arg1, %c0_i32_0, %c0_i32_1, %arg3 : i32, i32, i32, i32, i32, i32
  }
  func.func @transform_1(%arg0: i32, %arg1: i32, %arg2: i32, %arg3: i32) -> (i32, i32, i32) {
    %c0_i32 = arith.constant 0 : i32
    %c0_i32_0 = arith.constant 0 : i32
    return %arg3, %c0_i32, %arg2 : i32, i32, i32
  }
  func.func @transform_2(%arg0: i32, %arg1: i32, %arg2: i32, %arg3: i32) -> (i32, i32) {
    %c0_i32 = arith.constant 0 : i32
    %c0_i32_0 = arith.constant 0 : i32
    return %c0_i32, %arg2 : i32, i32
  }
  func.func @transform_3(%arg0: i32, %arg1: i32, %arg2: i32, %arg3: i32) -> (i32, i32) {
    %c0_i32 = arith.constant 0 : i32
    %c0_i32_0 = arith.constant 0 : i32
    return %c0_i32, %arg2 : i32, i32
  }
  func.func @transform_4(%arg0: i32, %arg1: i32, %arg2: i32, %arg3: i32) -> (i32, i32, i32, i32) {
    %c0_i32 = arith.constant 0 : i32
    %c0_i32_0 = arith.constant 0 : i32
    return %arg0, %arg1, %c0_i32, %arg2 : i32, i32, i32, i32
  }
  func.func @transform_5(%arg0: i32, %arg1: i32, %arg2: i32, %arg3: i32) -> (i32, i32, i32, i32) {
    %c0_i32 = arith.constant 0 : i32
    %c0_i32_0 = arith.constant 0 : i32
    return %arg0, %arg1, %c0_i32, %arg2 : i32, i32, i32, i32
  }
}

</mosaic_0001>

<llo_original>
// kernel: basic_block_fwd.3
$region0: #{basic_block_fwd.3}
  #allocation0 [shape = 'u32[]', space=smem, size = 0x4, offset = 0x4, fixed_abs, tag = 'smem constant byte address 0x4 - core index']
  #allocation1 [shape = 'u32[144,128]{1,0:T(1,128)}', space=vmem, size = 0x12000, scoped, tag = 'internal scratch']
  %s0 = inlined_call_operand.vmem [shape: bf16[2,1,1,8,8,32], index: 0, kind: input, shape index: {}]
  %s1 = inlined_call_operand.vmem [shape: bf16[1,32,64], index: 1, kind: input, shape index: {}]
  %s2 = inlined_call_operand.vmem [shape: f32[1,64], index: 2, kind: input, shape index: {}]
  %s3 = inlined_call_operand.vmem [shape: f32[1,64], index: 3, kind: input, shape index: {}]
  %s4 = inlined_call_operand.vmem [shape: bf16[2,8,8,64], index: 4, kind: output, shape index: {}]
  %s5 = sld [smem:[#allocation0]]
  $region49: #{basic_block_fwd.3} parent=0
    _
  %s7 = ssub.s32 1, %s5
  %s8 = scalar_select 0, %s7, %s5
  loop: start=0, step=1, limit=4
  $region2: #{basic_block_fwd.3} parent=0 // loop_pre_header
    _
  $region3: #{basic_block_fwd.3} parent=0 // loop_header
    %s10 = sphi 0, %s14
    %p11 = scmp.ge.s32.totalorder %s10, 4
    %s17 = sphi 0, %s43
    %s18 = sphi 0, %s39
    %s19 = sphi 0, %s35
    %s20 = sphi 0, %s31
    %s21 = sphi 0, %s17
    %s22 = sphi 0, %s18
    %s23 = sphi 0, %s19
    %s24 = sphi 0, %s20
    %s25 = sphi 0, %s21
    %s26 = sphi 0, %s22
    %s27 = sphi 0, %s23
    %s28 = sphi 0, %s24
    %s50 = sphi 0, %s52
    %s53 = sphi 0, %s50
    %s54 = sphi 0, %s53
    %s70 = sphi 0, %s54
    %s78 = sphi 0, %s80
    %s81 = sphi 0, %s78
    %s82 = sphi 0, %s81
    %s98 = sphi 0, %s82
    %s104 = sphi 0, %s106
    %s107 = sphi 0, %s104
    %s108 = sphi 0, %s107
    %s124 = sphi 0, %s108
    %s130 = sphi 0, %s132
    %s133 = sphi 0, %s130
    %s134 = sphi 0, %s133
    %s150 = sphi 0, %s134
    %s160 = sphi 0, %s162
    %s163 = sphi 0, %s160
    %s164 = sphi 0, %s163
    %s180 = sphi 0, %s164
  $region4: #{basic_block_fwd.3} parent=0 // loop_header_branch
    %13 = sbr.rel (%p11) target = $region8
  $region5: #{basic_block_fwd.3} parent=0 // loop_body
    %s15 = ssub.s32 %s10, 1
    %s16 = ssub.s32 %s10, 2
    %s29 = sadd.s32 1, %s20
    %p30 = scmp.ge.s32.totalorder %s29, 1
    %s31 = scalar_select %p30, 0, %s29
    %s32 = sadd.s32 1, %s19
    %s33 = scalar_select %p30, %s32, %s19
    %p34 = scmp.ge.s32.totalorder %s33, 1
    %s35 = scalar_select %p34, 0, %s33
    %s36 = sadd.s32 1, %s18
    %s37 = scalar_select %p34, %s36, %s18
    %p38 = scmp.ge.s32.totalorder %s37, 1
    %s39 = scalar_select %p38, 0, %s37
    %s40 = sadd.s32 1, %s17
    %s41 = scalar_select %p38, %s40, %s17
    %p42 = scmp.ge.s32.totalorder %s41, 2
    %s43 = scalar_select %p42, 0, %s41
    %s44 = ssub.s32 %s17, %s43
    %s45 = ssub.s32 %s18, %s39
    %s46 = sor.u32 %s44, %s45
    %s47 = ssub.s32 %s20, %s31
    %s48 = sor.u32 %s46, %s47
    %p49 = scmp.eq.s32.totalorder %s48, 0
    %s51 = sadd.s32 %s50, 1
    %s52 = scalar_select %p49, %s50, %s51
    %p55 = pneg %p49
    %p56 = scmp.eq.s32.totalorder %s10, 1
    %p57 = por %p55, %p56
    %p58 = scmp.ne.s32.totalorder %s50, %s53
    %p59 = scmp.eq.s32.totalorder %s10, 0
    %p60 = por %p58, %p59
    %p61 = scmp.ne.s32.totalorder %s50, %s53
    %p62 = scmp.eq.s32.totalorder %s15, 1
    %p63 = por %p61, %p62
    %p64 = scmp.ne.s32.totalorder %s53, %s54
    %p65 = scmp.eq.s32.totalorder %s15, 0
    %p66 = por %p64, %p65
    %p67 = scmp.ne.s32.totalorder %s53, %s54
    %p68 = scmp.eq.s32.totalorder %s16, 1
    %p69 = por %p67, %p68
    %p71 = scmp.ne.s32.totalorder %s54, %s70
    %p72 = scmp.eq.s32.totalorder %s16, 0
    %p73 = por %p71, %p72
    %s74 = ssub.s32 %s20, %s31
    %s75 = ssub.s32 %s19, %s35
    %s76 = sor.u32 %s74, %s75
    %p77 = scmp.eq.s32.totalorder %s76, 0
    %s79 = sadd.s32 %s78, 1
    %s80 = scalar_select %p77, %s78, %s79
    %p83 = pneg %p77
    %p84 = scmp.eq.s32.totalorder %s10, 1
    %p85 = por %p83, %p84
    %p86 = scmp.ne.s32.totalorder %s78, %s81
    %p87 = scmp.eq.s32.totalorder %s10, 0
    %p88 = por %p86, %p87
    %p89 = scmp.ne.s32.totalorder %s78, %s81
    %p90 = scmp.eq.s32.totalorder %s15, 1
    %p91 = por %p89, %p90
    %p92 = scmp.ne.s32.totalorder %s81, %s82
    %p93 = scmp.eq.s32.totalorder %s15, 0
    %p94 = por %p92, %p93
    %p95 = scmp.ne.s32.totalorder %s81, %s82
    %p96 = scmp.eq.s32.totalorder %s16, 1
    %p97 = por %p95, %p96
    %p99 = scmp.ne.s32.totalorder %s82, %s98
    %p100 = scmp.eq.s32.totalorder %s16, 0
    %p101 = por %p99, %p100
    %s102 = ssub.s32 %s19, %s35
    %p103 = scmp.eq.s32.totalorder %s102, 0
    %s105 = sadd.s32 %s104, 1
    %s106 = scalar_select %p103, %s104, %s105
    %p109 = pneg %p103
    %p110 = scmp.eq.s32.totalorder %s10, 1
    %p111 = por %p109, %p110
    %p112 = scmp.ne.s32.totalorder %s104, %s107
    %p113 = scmp.eq.s32.totalorder %s10, 0
    %p114 = por %p112, %p113
    %p115 = scmp.ne.s32.totalorder %s104, %s107
    %p116 = scmp.eq.s32.totalorder %s15, 1
    %p117 = por %p115, %p116
    %p118 = scmp.ne.s32.totalorder %s107, %s108
    %p119 = scmp.eq.s32.totalorder %s15, 0
    %p120 = por %p118, %p119
    %p121 = scmp.ne.s32.totalorder %s107, %s108
    %p122 = scmp.eq.s32.totalorder %s16, 1
    %p123 = por %p121, %p122
    %p125 = scmp.ne.s32.totalorder %s108, %s124
    %p126 = scmp.eq.s32.totalorder %s16, 0
    %p127 = por %p125, %p126
    %s128 = ssub.s32 %s19, %s35
    %p129 = scmp.eq.s32.totalorder %s128, 0
    %s131 = sadd.s32 %s130, 1
    %s132 = scalar_select %p129, %s130, %s131
    %p135 = pneg %p129
    %p136 = scmp.eq.s32.totalorder %s10, 1
    %p137 = por %p135, %p136
    %p138 = scmp.ne.s32.totalorder %s130, %s133
    %p139 = scmp.eq.s32.totalorder %s10, 0
    %p140 = por %p138, %p139
    %p141 = scmp.ne.s32.totalorder %s130, %s133
    %p142 = scmp.eq.s32.totalorder %s15, 1
    %p143 = por %p141, %p142
    %p144 = scmp.ne.s32.totalorder %s133, %s134
    %p145 = scmp.eq.s32.totalorder %s15, 0
    %p146 = por %p144, %p145
    %p147 = scmp.ne.s32.totalorder %s133, %s134
    %p148 = scmp.eq.s32.totalorder %s16, 1
    %p149 = por %p147, %p148
    %p151 = scmp.ne.s32.totalorder %s134, %s150
    %p152 = scmp.eq.s32.totalorder %s16, 0
    %p153 = por %p151, %p152
    %s154 = ssub.s32 %s17, %s43
    %s155 = ssub.s32 %s18, %s39
    %s156 = sor.u32 %s154, %s155
    %s157 = ssub.s32 %s19, %s35
    %s158 = sor.u32 %s156, %s157
    %p159 = scmp.eq.s32.totalorder %s158, 0
    %s161 = sadd.s32 %s160, 1
    %s162 = scalar_select %p159, %s160, %s161
    %p165 = pneg %p159
    %p166 = scmp.eq.s32.totalorder %s10, 1
    %p167 = por %p165, %p166
    %p168 = scmp.ne.s32.totalorder %s160, %s163
    %p169 = scmp.eq.s32.totalorder %s10, 0
    %p170 = por %p168, %p169
    %p171 = scmp.ne.s32.totalorder %s160, %s163
    %p172 = scmp.eq.s32.totalorder %s15, 1
    %p173 = por %p171, %p172
    %p174 = scmp.ne.s32.totalorder %s163, %s164
    %p175 = scmp.eq.s32.totalorder %s15, 0
    %p176 = por %p174, %p175
    %p177 = scmp.ne.s32.totalorder %s163, %s164
    %p178 = scmp.eq.s32.totalorder %s16, 1
    %p179 = por %p177, %p178
    %p181 = scmp.ne.s32.totalorder %s164, %s180
    %p182 = scmp.eq.s32.totalorder %s16, 0
    %p183 = por %p181, %p182
    %p184 = scmp.le.s32.totalorder 1, %s10
    %p185 = scmp.lt.s32.totalorder %s10, 3
    %p186 = pnand %p184, %p185
    %p187 = pneg %p186
    // Predicated region
    $region9: #{basic_block_fwd.3} parent=5 // pred_check
      _
    $region10: #{basic_block_fwd.3} parent=5 // pred_check_branch
      %189 = sbr.rel (%p186) target = $region12
    $region11: #{basic_block_fwd.3} parent=5 // pred_region
      %s190 = ssub.s32 %s10, 1
      // Predicated region
      $region13: #{basic_block_fwd.3} parent=11 // pred_check
        %p191 = pneg %p94
      $region14: #{basic_block_fwd.3} parent=11 // pred_check_branch
        %193 = sbr.rel (%p191) target = $region16
      $region15: #{basic_block_fwd.3} parent=11 // pred_region
        %p194 = scmp.lt.s32.totalorder %s24, 0
        %s195 = scalar_select %p194, %s24, 0
        %p196 = scmp.lt.s32.totalorder %s23, 0
        %s197 = scalar_select %p196, %s23, 0
        %s198 = smul.addr %s195, 4
        %s199 = sadd.s32 %s197, %s198
        %s200 = smul.addr %s199, 4
        %s201 = scalar_lea.vmem %s1, %s200
      $region16: #{basic_block_fwd.3} parent=11 // pred_fallthru
        _
      // Predicated region
      $region17: #{basic_block_fwd.3} parent=11 // pred_check
        %p202 = pneg %p120
      $region18: #{basic_block_fwd.3} parent=11 // pred_check_branch
        %204 = sbr.rel (%p202) target = $region20
      $region19: #{basic_block_fwd.3} parent=11 // pred_region
        %p205 = scmp.lt.s32.totalorder %s23, 0
        %s206 = scalar_select %p205, %s23, 0
        %s207 = scalar_lea.vmem %s2, %s206
      $region20: #{basic_block_fwd.3} parent=11 // pred_fallthru
        _
      // Predicated region
      $region21: #{basic_block_fwd.3} parent=11 // pred_check
        %p208 = pneg %p146
      $region22: #{basic_block_fwd.3} parent=11 // pred_check_branch
        %210 = sbr.rel (%p208) target = $region24
      $region23: #{basic_block_fwd.3} parent=11 // pred_region
        %p211 = scmp.lt.s32.totalorder %s23, 0
        %s212 = scalar_select %p211, %s23, 0
        %s213 = scalar_lea.vmem %s3, %s212
      $region24: #{basic_block_fwd.3} parent=11 // pred_fallthru
        _
    $region12: #{basic_block_fwd.3} parent=5 // pred_fallthru
      _
    %p214 = scmp.lt.s32.totalorder %s10, 2
    // Predicated region
    $region25: #{basic_block_fwd.3} parent=5 // pred_check
      %p215 = pneg %p214
    $region26: #{basic_block_fwd.3} parent=5 // pred_check_branch
      %217 = sbr.rel (%p215) target = $region28
    $region27: #{basic_block_fwd.3} parent=5 // pred_region
      // Predicated region
      $region29: #{basic_block_fwd.3} parent=27 // pred_check
        %p218 = pneg %p60
      $region30: #{basic_block_fwd.3} parent=27 // pred_check_branch
        %220 = sbr.rel (%p218) target = $region32
      $region31: #{basic_block_fwd.3} parent=27 // pred_region
        %p221 = scmp.lt.s32.totalorder %s17, 1
        %s222 = scalar_select %p221, %s17, 1
        %p223 = scmp.lt.s32.totalorder %s18, 0
        %s224 = scalar_select %p223, %s18, 0
        %p225 = scmp.lt.s32.totalorder %s20, 0
        %s226 = scalar_select %p225, %s20, 0
        %s227 = smul.addr %s224, 8
        %s228 = sadd.s32 %s226, %s227
        %s229 = smul.addr %s222, 8
        %s230 = sadd.s32 %s228, %s229
        %s231 = smul.addr %s230, 4
        %s232 = scalar_lea.vmem %s0, %s231
      $region32: #{basic_block_fwd.3} parent=27 // pred_fallthru
        _
    $region28: #{basic_block_fwd.3} parent=5 // pred_fallthru
      _
    %p233 = scmp.le.s32.totalorder 1, %s10
    %p234 = scmp.lt.s32.totalorder %s10, 3
    %p235 = pnand %p233, %p234
    %p236 = pneg %p235
    // Predicated region
    $region33: #{basic_block_fwd.3} parent=5 // pred_check
      _
    $region34: #{basic_block_fwd.3} parent=5 // pred_check_branch
      %238 = sbr.rel (%p235) target = $region36
    $region35: #{basic_block_fwd.3} parent=5 // pred_region
      %s239 = ssub.s32 %s10, 1
      %p240 = scmp.lt.s32.totalorder %s21, 1
      %s241 = scalar_select %p240, %s21, 1
      %p242 = scmp.lt.s32.totalorder %s22, 0
      %s243 = scalar_select %p242, %s22, 0
      %p244 = scmp.lt.s32.totalorder %s24, 0
      %s245 = scalar_select %p244, %s24, 0
      %s246 = smul.addr %s243, 8
      %s247 = sadd.s32 %s245, %s246
      %s248 = smul.addr %s241, 8
      %s249 = sadd.s32 %s247, %s248
      %s250 = smul.addr %s249, 4
      %s251 = scalar_lea.vmem %s0, %s250
      %p252 = pneg %p66
      %p253 = pneg %p63
      %p254 = scmp.lt.s32.totalorder %s24, 0
      %s255 = scalar_select %p254, %s24, 0
      %p256 = scmp.lt.s32.totalorder %s23, 0
      %s257 = scalar_select %p256, %s23, 0
      %s258 = smul.addr %s255, 4
      %s259 = sadd.s32 %s257, %s258
      %s260 = smul.addr %s259, 4
      %s261 = scalar_lea.vmem %s1, %s260
      %p262 = pneg %p94
      %p263 = pneg %p91
      %p264 = scmp.lt.s32.totalorder %s23, 0
      %s265 = scalar_select %p264, %s23, 0
      %s266 = scalar_lea.vmem %s2, %s265
      %p267 = pneg %p120
      %p268 = pneg %p117
      %p269 = scmp.lt.s32.totalorder %s23, 0
      %s270 = scalar_select %p269, %s23, 0
      %s271 = scalar_lea.vmem %s3, %s270
      %p272 = pneg %p146
      %p273 = pneg %p143
      %p274 = pneg %p176
      %p275 = pneg %p173
      %s276 = smul.u32 8, %s22
      %p277 = scmp.lt.s32.totalorder %s21, 1
      %s278 = scalar_select %p277, %s21, 1
      %p279 = scmp.lt.s32.totalorder %s276, 7
      %s280 = scalar_select %p279, %s276, 7
      %p281 = scmp.lt.s32.totalorder %s23, 0
      %s282 = scalar_select %p281, %s23, 0
      %s283 = sadd.s32 %s282, %s280
      %s284 = smul.addr %s278, 8
      %s285 = sadd.s32 %s283, %s284
      %s286 = smul.addr %s285, 4
      %s287 = scalar_lea.vmem %s4, %s286
      %p288 = scmp.lt.s32.totalorder %s21, 1
      %s289 = scalar_select %p288, %s21, 1
      %p290 = scmp.lt.s32.totalorder %s22, 0
      %s291 = scalar_select %p290, %s22, 0
      %p292 = scmp.lt.s32.totalorder %s24, 0
      %s293 = scalar_select %p292, %s24, 0
      %s294 = smul.addr %s291, 8
      %s295 = sadd.s32 %s293, %s294
      %s296 = smul.addr %s289, 8
      %s297 = sadd.s32 %s295, %s296
      %s298 = smul.addr %s297, 4
      %s299 = scalar_lea.vmem %s0, %s298
      %p300 = scmp.lt.s32.totalorder %s24, 0
      %s301 = scalar_select %p300, %s24, 0
      %p302 = scmp.lt.s32.totalorder %s23, 0
      %s303 = scalar_select %p302, %s23, 0
      %s304 = smul.addr %s301, 4
      %s305 = sadd.s32 %s303, %s304
      %s306 = smul.addr %s305, 4
      %s307 = scalar_lea.vmem %s1, %s306
      %p308 = scmp.lt.s32.totalorder %s23, 0
      %s309 = scalar_select %p308, %s23, 0
      %s310 = scalar_lea.vmem %s2, %s309
      %p311 = scmp.lt.s32.totalorder %s23, 0
      %s312 = scalar_select %p311, %s23, 0
      %s313 = scalar_lea.vmem %s3, %s312
      %s314 = smul.u32 8, %s22
      %p315 = scmp.lt.s32.totalorder %s21, 1
      %s316 = scalar_select %p315, %s21, 1
      %p317 = scmp.lt.s32.totalorder %s314, 7
      %s318 = scalar_select %p317, %s314, 7
      %p319 = scmp.lt.s32.totalorder %s23, 0
      %s320 = scalar_select %p319, %s23, 0
      %s321 = sadd.s32 %s320, %s318
      %s322 = smul.addr %s316, 8
      %s323 = sadd.s32 %s321, %s322
      %s324 = smul.addr %s323, 4
      %s325 = scalar_lea.vmem %s4, %s324
      %s326 = smul.u32 8, %s22
      %v328 = vld [vmem:[%s299] sm:$0xf]
      %v329 = vld [vmem:[%s299 + $0x4] sm:$0xf]
      %v330 = vld [vmem:[%s299 + $0x8] sm:$0xf]
      %v331 = vld [vmem:[%s299 + $0xc] sm:$0xf]
      %v332 = vld [vmem:[%s299 + $0x10] sm:$0xf]
      %v333 = vld [vmem:[%s299 + $0x14] sm:$0xf]
      %v334 = vld [vmem:[%s299 + $0x18] sm:$0xf]
      %v335 = vld [vmem:[%s299 + $0x1c] sm:$0xf]
      %v336 = vld [vmem:[%s307] sm:$0xf]
      %v337 = vld [vmem:[%s307 + $0x4] sm:$0xf]
      %v338 = vld [vmem:[%s307 + $0x8] sm:$0xf]
      %v339 = vld [vmem:[%s307 + $0xc] sm:$0xf]
      %v348 = vunpack.c.l.b16 %v328
      %v349 = vunpack.c.l.b16 %v329
      %v350 = vunpack.c.l.b16 %v330
      %v351 = vunpack.c.l.b16 %v331
      %v352 = vunpack.c.l.b16 %v332
      %v353 = vunpack.c.l.b16 %v333
      %v354 = vunpack.c.l.b16 %v334
      %v355 = vunpack.c.l.b16 %v335
      %v356 = vpack.c.b16 %v349, %v348
      %v357 = vpack.c.b16 %v351, %v350
      %v358 = vpack.c.b16 %v353, %v352
      %v359 = vpack.c.b16 %v355, %v354
      %v364 = vunpack.c.l.b16 %v336
      %v365 = vunpack.c.l.b16 %v337
      %v366 = vunpack.c.l.b16 %v338
      %v367 = vunpack.c.l.b16 %v339
      %v368 = vpack.c.b16 %v365, %v364
      %v369 = vpack.c.b16 %v367, %v366
      %vm372 = vcmask 261120
      %v374 = vsel %vm372, %v356, 0
      %v377 = vsel %vm372, %v357, 0
      %v380 = vsel %vm372, %v358, 0
      %v383 = vsel %vm372, %v359, 0
      %385 = vmatprep.subr.bf16.mxu0 0
      %386 = vmatpush1.bf16.msra.mxu0 %v368
      %387 = vmatprep.subr.bf16.mxu0 0
      %388 = vmatpush1.bf16.msra.mxu0 %v369
      %389 = vmatprep.subr.bf16.mxu0 0
      %390 = vmatpush1.bf16.msra.mxu0 0
      %391 = vmatprep.subr.bf16.mxu0 0
      %392 = vmatpush1.bf16.msra.mxu0 0
      %393 = vmatprep.subr.bf16.mxu0 0
      %394 = vmatpush1.bf16.msra.mxu0 0
      %395 = vmatprep.subr.bf16.mxu0 0
      %396 = vmatpush1.bf16.msra.mxu0 0
      %397 = vmatprep.subr.bf16.mxu0 0
      %398 = vmatpush1.bf16.msra.mxu0 0
      %399 = vmatprep.subr.bf16.mxu0 0
      %400 = vmatpush1.bf16.msra.mxu0 0
      %401 = vmatprep.subr.bf16.mxu0 0
      %402 = vmatpush1.bf16.msra.mxu0 0
      %403 = vmatprep.subr.bf16.mxu0 0
      %404 = vmatpush1.bf16.msra.mxu0 0
      %405 = vmatprep.subr.bf16.mxu0 0
      %406 = vmatpush1.bf16.msra.mxu0 0
      %407 = vmatprep.subr.bf16.mxu0 0
      %408 = vmatpush1.bf16.msra.mxu0 0
      %409 = vmatprep.subr.bf16.mxu0 0
      %410 = vmatpush1.bf16.msra.mxu0 0
      %411 = vmatprep.subr.bf16.mxu0 0
      %412 = vmatpush1.bf16.msra.mxu0 0
      %413 = vmatprep.subr.bf16.mxu0 0
      %414 = vmatpush1.bf16.msra.mxu0 0
      %415 = vmatprep.subr.bf16.mxu0 0
      %416 = vmatpush1.bf16.msra.mxu0 0
      %417 = vmatprep.mubr.bf16.mxu0 0
      %418 = vmatmul.mubr.bf16.gmra.mrb[0].mxu0 %v374
      %v419 = vpop.f32.mrb[0].mxu0
      %v420 = vadd.f32 0.0, %v419
      %v421 = vpop.f32.mrb[0].mxu0
      %v422 = vpop.f32.mrb[0].mxu0
      %v423 = vadd.f32 0.0, %v422
      %v424 = vpop.f32.mrb[0].mxu0
      %425 = vmatprep.mubr.bf16.mxu0 0
      %426 = vmatmul.mubr.bf16.gmra.mrb[0].mxu0 %v377
      %v427 = vpop.f32.mrb[0].mxu0
      %v428 = vadd.f32 0.0, %v427
      %v429 = vpop.f32.mrb[0].mxu0
      %v430 = vpop.f32.mrb[0].mxu0
      %v431 = vadd.f32 0.0, %v430
      %v432 = vpop.f32.mrb[0].mxu0
      %433 = vmatprep.mubr.bf16.mxu0 0
      %434 = vmatmul.mubr.bf16.gmra.mrb[0].mxu0 %v380
      %v435 = vpop.f32.mrb[0].mxu0
      %v436 = vadd.f32 0.0, %v435
      %v437 = vpop.f32.mrb[0].mxu0
      %v438 = vpop.f32.mrb[0].mxu0
      %v439 = vadd.f32 0.0, %v438
      %v440 = vpop.f32.mrb[0].mxu0
      %441 = vmatprep.mubr.bf16.mxu0 0
      %442 = vmatmul.mubr.bf16.gmra.mrb[0].mxu0 %v383
      %v443 = vpop.f32.mrb[0].mxu0
      %v444 = vadd.f32 0.0, %v443
      %v445 = vpop.f32.mrb[0].mxu0
      %v446 = vpop.f32.mrb[0].mxu0
      %v447 = vadd.f32 0.0, %v446
      %v448 = vpop.f32.mrb[0].mxu0
      %449 = vdwg.mxu0
      %v450 = vld [vmem:[%s310] sm:$0x1]
      %v452 = vlaneseq
      %v453 = vshrl.u32 %v452, 7
      %v454 = vsub.s32 0, %v453
      %v455 = vrot.slane %v450, %v454
      %v457 = vmul.f32 %v420, %v455
      %v458 = vmul.f32 %v423, %v455
      %v459 = vmul.f32 %v428, %v455
      %v460 = vmul.f32 %v431, %v455
      %v461 = vmul.f32 %v436, %v455
      %v462 = vmul.f32 %v439, %v455
      %v463 = vmul.f32 %v444, %v455
      %v464 = vmul.f32 %v447, %v455
      %v465 = vld [vmem:[%s313] sm:$0x1]
      %v467 = vlaneseq
      %v468 = vshrl.u32 %v467, 7
      %v469 = vsub.s32 0, %v468
      %v470 = vrot.slane %v465, %v469
      %v472 = vadd.f32 %v457, %v470
      %v473 = vadd.f32 %v458, %v470
      %v474 = vadd.f32 %v459, %v470
      %v475 = vadd.f32 %v460, %v470
      %v476 = vadd.f32 %v461, %v470
      %v477 = vadd.f32 %v462, %v470
      %v478 = vadd.f32 %v463, %v470
      %v479 = vadd.f32 %v464, %v470
      %v480 = vpack.c.bf16 %v472, %v472
      %v481 = vpack.c.bf16 %v473, %v473
      %v482 = vpack.c.bf16 %v474, %v474
      %v483 = vpack.c.bf16 %v475, %v475
      %v484 = vpack.c.bf16 %v476, %v476
      %v485 = vpack.c.bf16 %v477, %v477
      %v486 = vpack.c.bf16 %v478, %v478
      %v487 = vpack.c.bf16 %v479, %v479
      %vm488 = vcmask 519168
      %489 = vst.msk [vmem:[%s325] sm:$0xf] %vm488, %v480
      %490 = vst.msk [vmem:[%s325 + $0x4] sm:$0xf] %vm488, %v481
      %491 = vst.msk [vmem:[%s325 + $0x8] sm:$0xf] %vm488, %v482
      %492 = vst.msk [vmem:[%s325 + $0xc] sm:$0xf] %vm488, %v483
      %493 = vst.msk [vmem:[%s325 + $0x10] sm:$0xf] %vm488, %v484
      %494 = vst.msk [vmem:[%s325 + $0x14] sm:$0xf] %vm488, %v485
      %495 = vst.msk [vmem:[%s325 + $0x18] sm:$0xf] %vm488, %v486
      %496 = vst.msk [vmem:[%s325 + $0x1c] sm:$0xf] %vm488, %v487
      %s497 = smul.u32 8, %s22
      %p498 = scmp.lt.s32.totalorder %s21, 1
      %s499 = scalar_select %p498, %s21, 1
      %p500 = scmp.lt.s32.totalorder %s497, 7
      %s501 = scalar_select %p500, %s497, 7
      %p502 = scmp.lt.s32.totalorder %s23, 0
      %s503 = scalar_select %p502, %s23, 0
      %s504 = sadd.s32 %s503, %s501
      %s505 = smul.addr %s499, 8
      %s506 = sadd.s32 %s504, %s505
      %s507 = smul.addr %s506, 4
      %s508 = scalar_lea.vmem %s4, %s507
      // Predicated region
      $region37: #{basic_block_fwd.3} parent=35 // pred_check
        %p509 = pneg %p173
      $region38: #{basic_block_fwd.3} parent=35 // pred_check_branch
        %511 = sbr.rel (%p509) target = $region40
      $region39: #{basic_block_fwd.3} parent=35 // pred_region
        %s512 = smul.u32 8, %s22
      $region40: #{basic_block_fwd.3} parent=35 // pred_fallthru
        _
    $region36: #{basic_block_fwd.3} parent=5 // pred_fallthru
      _
    %p513 = scmp.le.s32.totalorder 2, %s10
    // Predicated region
    $region41: #{basic_block_fwd.3} parent=5 // pred_check
      %p514 = pneg %p513
    $region42: #{basic_block_fwd.3} parent=5 // pred_check_branch
      %516 = sbr.rel (%p514) target = $region44
    $region43: #{basic_block_fwd.3} parent=5 // pred_region
      %s517 = ssub.s32 %s10, 2
      // Predicated region
      $region45: #{basic_block_fwd.3} parent=43 // pred_check
        %p518 = pneg %p179
      $region46: #{basic_block_fwd.3} parent=43 // pred_check_branch
        %520 = sbr.rel (%p518) target = $region48
      $region47: #{basic_block_fwd.3} parent=43 // pred_region
        %s521 = smul.u32 8, %s26
        %p522 = scmp.lt.s32.totalorder %s25, 1
        %s523 = scalar_select %p522, %s25, 1
        %p524 = scmp.lt.s32.totalorder %s521, 7
        %s525 = scalar_select %p524, %s521, 7
        %p526 = scmp.lt.s32.totalorder %s27, 0
        %s527 = scalar_select %p526, %s27, 0
        %s528 = sadd.s32 %s527, %s525
        %s529 = smul.addr %s523, 8
        %s530 = sadd.s32 %s528, %s529
        %s531 = smul.addr %s530, 4
        %s532 = scalar_lea.vmem %s4, %s531
      $region48: #{basic_block_fwd.3} parent=43 // pred_fallthru
        _
    $region44: #{basic_block_fwd.3} parent=5 // pred_fallthru
      _
  $region6: #{basic_block_fwd.3} parent=0 // loop_footer
    %s14 = sadd.s32 1, %s10
  $region7: #{basic_block_fwd.3} parent=0 // loop_footer_branch
    %9 = sbr.rel target = $region3
  $region8: #{basic_block_fwd.3} parent=0 // loop_exit
    _

// kernel: basic_block_fwd.4
$region0: #{basic_block_fwd.4}
  #allocation0 [shape = 'u32[]', space=smem, size = 0x4, offset = 0x4, fixed_abs, tag = 'smem constant byte address 0x4 - core index']
  #allocation1 [shape = 'u32[144,128]{1,0:T(1,128)}', space=vmem, size = 0x12000, scoped, tag = 'internal scratch']
  #allocation2 [shape = 'bf16[64,288]{1,0:T(16,128)(2,1)}', space=vmem, size = 0xc000, scoped, tag = 'scratch operand']
  %s0 = inlined_call_operand.vmem [shape: bf16[2,4,1,9,9,32], index: 0, kind: input, shape index: {}]
  %s1 = inlined_call_operand.vmem [shape: bf16[1,288,64], index: 1, kind: input, shape index: {}]
  %s2 = inlined_call_operand.vmem [shape: f32[1,64], index: 2, kind: input, shape index: {}]
  %s3 = inlined_call_operand.vmem [shape: f32[1,64], index: 3, kind: input, shape index: {}]
  %s4 = inlined_call_operand.vmem [shape: bf16[2,8,8,64], index: 4, kind: output, shape index: {}]
  %s5 = sld [smem:[#allocation0]]
  $region49: #{basic_block_fwd.4} parent=0
    _
  %s7 = ssub.s32 1, %s5
  %s8 = scalar_select 0, %s7, %s5
  loop: start=0, step=1, limit=4
  $region2: #{basic_block_fwd.4} parent=0 // loop_pre_header
    _
  $region3: #{basic_block_fwd.4} parent=0 // loop_header
    %s10 = sphi 0, %s14
    %p11 = scmp.ge.s32.totalorder %s10, 4
    %s17 = sphi 0, %s43
    %s18 = sphi 0, %s39
    %s19 = sphi 0, %s35
    %s20 = sphi 0, %s31
    %s21 = sphi 0, %s17
    %s22 = sphi 0, %s18
    %s23 = sphi 0, %s19
    %s24 = sphi 0, %s20
    %s25 = sphi 0, %s21
    %s26 = sphi 0, %s22
    %s27 = sphi 0, %s23
    %s28 = sphi 0, %s24
    %s50 = sphi 0, %s52
    %s53 = sphi 0, %s50
    %s54 = sphi 0, %s53
    %s70 = sphi 0, %s54
    %s78 = sphi 0, %s80
    %s81 = sphi 0, %s78
    %s82 = sphi 0, %s81
    %s98 = sphi 0, %s82
    %s104 = sphi 0, %s106
    %s107 = sphi 0, %s104
    %s108 = sphi 0, %s107
    %s124 = sphi 0, %s108
    %s130 = sphi 0, %s132
    %s133 = sphi 0, %s130
    %s134 = sphi 0, %s133
    %s150 = sphi 0, %s134
    %s160 = sphi 0, %s162
    %s163 = sphi 0, %s160
    %s164 = sphi 0, %s163
    %s180 = sphi 0, %s164
  $region4: #{basic_block_fwd.4} parent=0 // loop_header_branch
    %13 = sbr.rel (%p11) target = $region8
  $region5: #{basic_block_fwd.4} parent=0 // loop_body
    %s15 = ssub.s32 %s10, 1
    %s16 = ssub.s32 %s10, 2
    %s29 = sadd.s32 1, %s20
    %p30 = scmp.ge.s32.totalorder %s29, 1
    %s31 = scalar_select %p30, 0, %s29
    %s32 = sadd.s32 1, %s19
    %s33 = scalar_select %p30, %s32, %s19
    %p34 = scmp.ge.s32.totalorder %s33, 1
    %s35 = scalar_select %p34, 0, %s33
    %s36 = sadd.s32 1, %s18
    %s37 = scalar_select %p34, %s36, %s18
    %p38 = scmp.ge.s32.totalorder %s37, 1
    %s39 = scalar_select %p38, 0, %s37
    %s40 = sadd.s32 1, %s17
    %s41 = scalar_select %p38, %s40, %s17
    %p42 = scmp.ge.s32.totalorder %s41, 2
    %s43 = scalar_select %p42, 0, %s41
    %s44 = ssub.s32 %s17, %s43
    %s45 = ssub.s32 %s18, %s39
    %s46 = sor.u32 %s44, %s45
    %s47 = ssub.s32 %s20, %s31
    %s48 = sor.u32 %s46, %s47
    %p49 = scmp.eq.s32.totalorder %s48, 0
    %s51 = sadd.s32 %s50, 1
    %s52 = scalar_select %p49, %s50, %s51
    %p55 = pneg %p49
    %p56 = scmp.eq.s32.totalorder %s10, 1
    %p57 = por %p55, %p56
    %p58 = scmp.ne.s32.totalorder %s50, %s53
    %p59 = scmp.eq.s32.totalorder %s10, 0
    %p60 = por %p58, %p59
    %p61 = scmp.ne.s32.totalorder %s50, %s53
    %p62 = scmp.eq.s32.totalorder %s15, 1
    %p63 = por %p61, %p62
    %p64 = scmp.ne.s32.totalorder %s53, %s54
    %p65 = scmp.eq.s32.totalorder %s15, 0
    %p66 = por %p64, %p65
    %p67 = scmp.ne.s32.totalorder %s53, %s54
    %p68 = scmp.eq.s32.totalorder %s16, 1
    %p69 = por %p67, %p68
    %p71 = scmp.ne.s32.totalorder %s54, %s70
    %p72 = scmp.eq.s32.totalorder %s16, 0
    %p73 = por %p71, %p72
    %s74 = ssub.s32 %s20, %s31
    %s75 = ssub.s32 %s19, %s35
    %s76 = sor.u32 %s74, %s75
    %p77 = scmp.eq.s32.totalorder %s76, 0
    %s79 = sadd.s32 %s78, 1
    %s80 = scalar_select %p77, %s78, %s79
    %p83 = pneg %p77
    %p84 = scmp.eq.s32.totalorder %s10, 1
    %p85 = por %p83, %p84
    %p86 = scmp.ne.s32.totalorder %s78, %s81
    %p87 = scmp.eq.s32.totalorder %s10, 0
    %p88 = por %p86, %p87
    %p89 = scmp.ne.s32.totalorder %s78, %s81
    %p90 = scmp.eq.s32.totalorder %s15, 1
    %p91 = por %p89, %p90
    %p92 = scmp.ne.s32.totalorder %s81, %s82
    %p93 = scmp.eq.s32.totalorder %s15, 0
    %p94 = por %p92, %p93
    %p95 = scmp.ne.s32.totalorder %s81, %s82
    %p96 = scmp.eq.s32.totalorder %s16, 1
    %p97 = por %p95, %p96
    %p99 = scmp.ne.s32.totalorder %s82, %s98
    %p100 = scmp.eq.s32.totalorder %s16, 0
    %p101 = por %p99, %p100
    %s102 = ssub.s32 %s19, %s35
    %p103 = scmp.eq.s32.totalorder %s102, 0
    %s105 = sadd.s32 %s104, 1
    %s106 = scalar_select %p103, %s104, %s105
    %p109 = pneg %p103
    %p110 = scmp.eq.s32.totalorder %s10, 1
    %p111 = por %p109, %p110
    %p112 = scmp.ne.s32.totalorder %s104, %s107
    %p113 = scmp.eq.s32.totalorder %s10, 0
    %p114 = por %p112, %p113
    %p115 = scmp.ne.s32.totalorder %s104, %s107
    %p116 = scmp.eq.s32.totalorder %s15, 1
    %p117 = por %p115, %p116
    %p118 = scmp.ne.s32.totalorder %s107, %s108
    %p119 = scmp.eq.s32.totalorder %s15, 0
    %p120 = por %p118, %p119
    %p121 = scmp.ne.s32.totalorder %s107, %s108
    %p122 = scmp.eq.s32.totalorder %s16, 1
    %p123 = por %p121, %p122
    %p125 = scmp.ne.s32.totalorder %s108, %s124
    %p126 = scmp.eq.s32.totalorder %s16, 0
    %p127 = por %p125, %p126
    %s128 = ssub.s32 %s19, %s35
    %p129 = scmp.eq.s32.totalorder %s128, 0
    %s131 = sadd.s32 %s130, 1
    %s132 = scalar_select %p129, %s130, %s131
    %p135 = pneg %p129
    %p136 = scmp.eq.s32.totalorder %s10, 1
    %p137 = por %p135, %p136
    %p138 = scmp.ne.s32.totalorder %s130, %s133
    %p139 = scmp.eq.s32.totalorder %s10, 0
    %p140 = por %p138, %p139
    %p141 = scmp.ne.s32.totalorder %s130, %s133
    %p142 = scmp.eq.s32.totalorder %s15, 1
    %p143 = por %p141, %p142
    %p144 = scmp.ne.s32.totalorder %s133, %s134
    %p145 = scmp.eq.s32.totalorder %s15, 0
    %p146 = por %p144, %p145
    %p147 = scmp.ne.s32.totalorder %s133, %s134
    %p148 = scmp.eq.s32.totalorder %s16, 1
    %p149 = por %p147, %p148
    %p151 = scmp.ne.s32.totalorder %s134, %s150
    %p152 = scmp.eq.s32.totalorder %s16, 0
    %p153 = por %p151, %p152
    %s154 = ssub.s32 %s17, %s43
    %s155 = ssub.s32 %s18, %s39
    %s156 = sor.u32 %s154, %s155
    %s157 = ssub.s32 %s19, %s35
    %s158 = sor.u32 %s156, %s157
    %p159 = scmp.eq.s32.totalorder %s158, 0
    %s161 = sadd.s32 %s160, 1
    %s162 = scalar_select %p159, %s160, %s161
    %p165 = pneg %p159
    %p166 = scmp.eq.s32.totalorder %s10, 1
    %p167 = por %p165, %p166
    %p168 = scmp.ne.s32.totalorder %s160, %s163
    %p169 = scmp.eq.s32.totalorder %s10, 0
    %p170 = por %p168, %p169
    %p171 = scmp.ne.s32.totalorder %s160, %s163
    %p172 = scmp.eq.s32.totalorder %s15, 1
    %p173 = por %p171, %p172
    %p174 = scmp.ne.s32.totalorder %s163, %s164
    %p175 = scmp.eq.s32.totalorder %s15, 0
    %p176 = por %p174, %p175
    %p177 = scmp.ne.s32.totalorder %s163, %s164
    %p178 = scmp.eq.s32.totalorder %s16, 1
    %p179 = por %p177, %p178
    %p181 = scmp.ne.s32.totalorder %s164, %s180
    %p182 = scmp.eq.s32.totalorder %s16, 0
    %p183 = por %p181, %p182
    %p184 = scmp.le.s32.totalorder 1, %s10
    %p185 = scmp.lt.s32.totalorder %s10, 3
    %p186 = pnand %p184, %p185
    %p187 = pneg %p186
    // Predicated region
    $region9: #{basic_block_fwd.4} parent=5 // pred_check
      _
    $region10: #{basic_block_fwd.4} parent=5 // pred_check_branch
      %189 = sbr.rel (%p186) target = $region12
    $region11: #{basic_block_fwd.4} parent=5 // pred_region
      %s190 = ssub.s32 %s10, 1
      // Predicated region
      $region13: #{basic_block_fwd.4} parent=11 // pred_check
        %p191 = pneg %p94
      $region14: #{basic_block_fwd.4} parent=11 // pred_check_branch
        %193 = sbr.rel (%p191) target = $region16
      $region15: #{basic_block_fwd.4} parent=11 // pred_region
        %p194 = scmp.lt.s32.totalorder %s24, 0
        %s195 = scalar_select %p194, %s24, 0
        %p196 = scmp.lt.s32.totalorder %s23, 0
        %s197 = scalar_select %p196, %s23, 0
        %s198 = smul.addr %s195, 36
        %s199 = sadd.s32 %s197, %s198
        %s200 = smul.addr %s199, 4
        %s201 = scalar_lea.vmem %s1, %s200
      $region16: #{basic_block_fwd.4} parent=11 // pred_fallthru
        _
      // Predicated region
      $region17: #{basic_block_fwd.4} parent=11 // pred_check
        %p202 = pneg %p120
      $region18: #{basic_block_fwd.4} parent=11 // pred_check_branch
        %204 = sbr.rel (%p202) target = $region20
      $region19: #{basic_block_fwd.4} parent=11 // pred_region
        %p205 = scmp.lt.s32.totalorder %s23, 0
        %s206 = scalar_select %p205, %s23, 0
        %s207 = scalar_lea.vmem %s2, %s206
      $region20: #{basic_block_fwd.4} parent=11 // pred_fallthru
        _
      // Predicated region
      $region21: #{basic_block_fwd.4} parent=11 // pred_check
        %p208 = pneg %p146
      $region22: #{basic_block_fwd.4} parent=11 // pred_check_branch
        %210 = sbr.rel (%p208) target = $region24
      $region23: #{basic_block_fwd.4} parent=11 // pred_region
        %p211 = scmp.lt.s32.totalorder %s23, 0
        %s212 = scalar_select %p211, %s23, 0
        %s213 = scalar_lea.vmem %s3, %s212
      $region24: #{basic_block_fwd.4} parent=11 // pred_fallthru
        _
    $region12: #{basic_block_fwd.4} parent=5 // pred_fallthru
      _
    %p214 = scmp.lt.s32.totalorder %s10, 2
    // Predicated region
    $region25: #{basic_block_fwd.4} parent=5 // pred_check
      %p215 = pneg %p214
    $region26: #{basic_block_fwd.4} parent=5 // pred_check_branch
      %217 = sbr.rel (%p215) target = $region28
    $region27: #{basic_block_fwd.4} parent=5 // pred_region
      // Predicated region
      $region29: #{basic_block_fwd.4} parent=27 // pred_check
        %p218 = pneg %p60
      $region30: #{basic_block_fwd.4} parent=27 // pred_check_branch
        %220 = sbr.rel (%p218) target = $region32
      $region31: #{basic_block_fwd.4} parent=27 // pred_region
        %p221 = scmp.lt.s32.totalorder %s17, 1
        %s222 = scalar_select %p221, %s17, 1
        %p223 = scmp.lt.s32.totalorder %s18, 0
        %s224 = scalar_select %p223, %s18, 0
        %p225 = scmp.lt.s32.totalorder %s20, 0
        %s226 = scalar_select %p225, %s20, 0
        %s227 = smul.addr %s224, 18
        %s228 = sadd.s32 %s226, %s227
        %s229 = smul.addr %s222, 72
        %s230 = sadd.s32 %s228, %s229
        %s231 = smul.addr %s230, 4
        %s232 = scalar_lea.vmem %s0, %s231
      $region32: #{basic_block_fwd.4} parent=27 // pred_fallthru
        _
    $region28: #{basic_block_fwd.4} parent=5 // pred_fallthru
      _
    %p233 = scmp.le.s32.totalorder 1, %s10
    %p234 = scmp.lt.s32.totalorder %s10, 3
    %p235 = pnand %p233, %p234
    %p236 = pneg %p235
    // Predicated region
    $region33: #{basic_block_fwd.4} parent=5 // pred_check
      _
    $region34: #{basic_block_fwd.4} parent=5 // pred_check_branch
      %238 = sbr.rel (%p235) target = $region36
    $region35: #{basic_block_fwd.4} parent=5 // pred_region
      %s239 = ssub.s32 %s10, 1
      %p240 = scmp.lt.s32.totalorder %s21, 1
      %s241 = scalar_select %p240, %s21, 1
      %p242 = scmp.lt.s32.totalorder %s22, 0
      %s243 = scalar_select %p242, %s22, 0
      %p244 = scmp.lt.s32.totalorder %s24, 0
      %s245 = scalar_select %p244, %s24, 0
      %s246 = smul.addr %s243, 18
      %s247 = sadd.s32 %s245, %s246
      %s248 = smul.addr %s241, 72
      %s249 = sadd.s32 %s247, %s248
      %s250 = smul.addr %s249, 4
      %s251 = scalar_lea.vmem %s0, %s250
      %p252 = pneg %p66
      %p253 = pneg %p63
      %p254 = scmp.lt.s32.totalorder %s24, 0
      %s255 = scalar_select %p254, %s24, 0
      %p256 = scmp.lt.s32.totalorder %s23, 0
      %s257 = scalar_select %p256, %s23, 0
      %s258 = smul.addr %s255, 36
      %s259 = sadd.s32 %s257, %s258
      %s260 = smul.addr %s259, 4
      %s261 = scalar_lea.vmem %s1, %s260
      %p262 = pneg %p94
      %p263 = pneg %p91
      %p264 = scmp.lt.s32.totalorder %s23, 0
      %s265 = scalar_select %p264, %s23, 0
      %s266 = scalar_lea.vmem %s2, %s265
      %p267 = pneg %p120
      %p268 = pneg %p117
      %p269 = scmp.lt.s32.totalorder %s23, 0
      %s270 = scalar_select %p269, %s23, 0
      %s271 = scalar_lea.vmem %s3, %s270
      %p272 = pneg %p146
      %p273 = pneg %p143
      %p274 = pneg %p176
      %p275 = pneg %p173
      %s276 = smul.u32 8, %s22
      %p277 = scmp.lt.s32.totalorder %s21, 1
      %s278 = scalar_select %p277, %s21, 1
      %p279 = scmp.lt.s32.totalorder %s276, 7
      %s280 = scalar_select %p279, %s276, 7
      %p281 = scmp.lt.s32.totalorder %s23, 0
      %s282 = scalar_select %p281, %s23, 0
      %s283 = sadd.s32 %s282, %s280
      %s284 = smul.addr %s278, 8
      %s285 = sadd.s32 %s283, %s284
      %s286 = smul.addr %s285, 4
      %s287 = scalar_lea.vmem %s4, %s286
      %p288 = scmp.lt.s32.totalorder %s21, 1
      %s289 = scalar_select %p288, %s21, 1
      %p290 = scmp.lt.s32.totalorder %s22, 0
      %s291 = scalar_select %p290, %s22, 0
      %p292 = scmp.lt.s32.totalorder %s24, 0
      %s293 = scalar_select %p292, %s24, 0
      %s294 = smul.addr %s291, 18
      %s295 = sadd.s32 %s293, %s294
      %s296 = smul.addr %s289, 72
      %s297 = sadd.s32 %s295, %s296
      %s298 = smul.addr %s297, 4
      %s299 = scalar_lea.vmem %s0, %s298
      %p300 = scmp.lt.s32.totalorder %s24, 0
      %s301 = scalar_select %p300, %s24, 0
      %p302 = scmp.lt.s32.totalorder %s23, 0
      %s303 = scalar_select %p302, %s23, 0
      %s304 = smul.addr %s301, 36
      %s305 = sadd.s32 %s303, %s304
      %s306 = smul.addr %s305, 4
      %s307 = scalar_lea.vmem %s1, %s306
      %p308 = scmp.lt.s32.totalorder %s23, 0
      %s309 = scalar_select %p308, %s23, 0
      %s310 = scalar_lea.vmem %s2, %s309
      %p311 = scmp.lt.s32.totalorder %s23, 0
      %s312 = scalar_select %p311, %s23, 0
      %s313 = scalar_lea.vmem %s3, %s312
      %s314 = smul.u32 8, %s22
      %p315 = scmp.lt.s32.totalorder %s21, 1
      %s316 = scalar_select %p315, %s21, 1
      %p317 = scmp.lt.s32.totalorder %s314, 7
      %s318 = scalar_select %p317, %s314, 7
      %p319 = scmp.lt.s32.totalorder %s23, 0
      %s320 = scalar_select %p319, %s23, 0
      %s321 = sadd.s32 %s320, %s318
      %s322 = smul.addr %s316, 8
      %s323 = sadd.s32 %s321, %s322
      %s324 = smul.addr %s323, 4
      %s325 = scalar_lea.vmem %s4, %s324
      %s326 = smul.u32 8, %s22
      %v328 = vld [vmem:[%s299] sm:$0xf]
      %v329 = vld [vmem:[%s299 + $0x8] sm:$0xf]
      %v330 = vld [vmem:[%s299 + $0x10] sm:$0xf]
      %v331 = vld [vmem:[%s299 + $0x18] sm:$0xf]
      %v332 = vld [vmem:[%s299 + $0x20] sm:$0xf]
      %v333 = vld [vmem:[%s299 + $0x28] sm:$0xf]
      %v334 = vld [vmem:[%s299 + $0x30] sm:$0xf]
      %v335 = vld [vmem:[%s299 + $0x38] sm:$0xf]
      %v344 = vunpack.c.l.b16 %v328
      %v345 = vunpack.c.l.b16 %v329
      %v346 = vunpack.c.l.b16 %v330
      %v347 = vunpack.c.l.b16 %v331
      %v348 = vunpack.c.l.b16 %v332
      %v349 = vunpack.c.l.b16 %v333
      %v350 = vunpack.c.l.b16 %v334
      %v351 = vunpack.c.l.b16 %v335
      %v352 = vpack.c.b16 %v345, %v344
      %v353 = vpack.c.b16 %v347, %v346
      %v354 = vpack.c.b16 %v349, %v348
      %v355 = vpack.c.b16 %v351, %v350
      %vm360 = vcmask 261120
      %361 = vst.msk [vmem:[#allocation2] sm:$0xff] %vm360, %v352
      %362 = vst.msk [vmem:[#allocation2 + $0x18] sm:$0xff] %vm360, %v353
      %363 = vst.msk [vmem:[#allocation2 + $0x30] sm:$0xff] %vm360, %v354
      %364 = vst.msk [vmem:[#allocation2 + $0x48] sm:$0xff] %vm360, %v355
      %s365 = scalar_lea.vmem %s299, 72
      %v366 = vld [vmem:[%s365] sm:$0xf]
      %v367 = vld [vmem:[%s365 + $0x8] sm:$0xf]
      %v368 = vld [vmem:[%s365 + $0x10] sm:$0xf]
      %v369 = vld [vmem:[%s365 + $0x18] sm:$0xf]
      %v370 = vld [vmem:[%s365 + $0x20] sm:$0xf]
      %v371 = vld [vmem:[%s365 + $0x28] sm:$0xf]
      %v372 = vld [vmem:[%s365 + $0x30] sm:$0xf]
      %v373 = vld [vmem:[%s365 + $0x38] sm:$0xf]
      %v382 = vunpack.c.l.b16 %v366
      %v383 = vunpack.c.l.b16 %v367
      %v384 = vunpack.c.l.b16 %v368
      %v385 = vunpack.c.l.b16 %v369
      %v386 = vunpack.c.l.b16 %v370
      %v387 = vunpack.c.l.b16 %v371
      %v388 = vunpack.c.l.b16 %v372
      %v389 = vunpack.c.l.b16 %v373
      %v390 = vpack.c.b16 %v383, %v382
      %v391 = vpack.c.b16 %v385, %v384
      %v392 = vpack.c.b16 %v387, %v386
      %v393 = vpack.c.b16 %v389, %v388
      %394 = vrot.lane.b32.xlu0 %v390, 32
      %v395 = vpop.permute.xlu0 %394
      %396 = vrot.lane.b32.xlu0 %v391, 32
      %v397 = vpop.permute.xlu0 %396
      %398 = vrot.lane.b32.xlu0 %v392, 32
      %v399 = vpop.permute.xlu0 %398
      %400 = vrot.lane.b32.xlu0 %v393, 32
      %v401 = vpop.permute.xlu0 %400
      %vm406 = vcmask 523520
      %407 = vst.msk [vmem:[#allocation2] sm:$0xff] %vm406, %v395
      %408 = vst.msk [vmem:[#allocation2 + $0x18] sm:$0xff] %vm406, %v397
      %409 = vst.msk [vmem:[#allocation2 + $0x30] sm:$0xff] %vm406, %v399
      %410 = vst.msk [vmem:[#allocation2 + $0x48] sm:$0xff] %vm406, %v401
      %v411 = vld [vmem:[%s299] sm:$0xf]
      %v412 = vld [vmem:[%s299 + $0x4] sm:$0x1]
      %v413 = vld [vmem:[%s299 + $0x8] sm:$0xf]
      %v414 = vld [vmem:[%s299 + $0xc] sm:$0x1]
      %v415 = vld [vmem:[%s299 + $0x10] sm:$0xf]
      %v416 = vld [vmem:[%s299 + $0x14] sm:$0x1]
      %v417 = vld [vmem:[%s299 + $0x18] sm:$0xf]
      %v418 = vld [vmem:[%s299 + $0x1c] sm:$0x1]
      %v419 = vld [vmem:[%s299 + $0x20] sm:$0xf]
      %v420 = vld [vmem:[%s299 + $0x24] sm:$0x1]
      %v421 = vld [vmem:[%s299 + $0x28] sm:$0xf]
      %v422 = vld [vmem:[%s299 + $0x2c] sm:$0x1]
      %v423 = vld [vmem:[%s299 + $0x30] sm:$0xf]
      %v424 = vld [vmem:[%s299 + $0x34] sm:$0x1]
      %v425 = vld [vmem:[%s299 + $0x38] sm:$0xf]
      %v426 = vld [vmem:[%s299 + $0x3c] sm:$0x1]
      %vm427 = vsmask.f32 3328
      %vm428 = vsmask.f32 7440
      %vm429 = vmor %vm427, %vm428
      %v431 = vshrl.u32 %v411, 16
      %v433 = vrot.slane %v431, 4
      %v434 = vshll.u32 %v411, 16
      %v436 = vrot.slane %v434, 5
      %v437 = vor.u32 %v433, %v436
      %v438 = vrot.slane %v437, 4
      %v440 = vshll.u32 %v412, 16
      %v442 = vrot.slane %v440, 5
      %v443 = vsel %vm429, %v438, %v442
      %v445 = vshrl.u32 %v413, 16
      %v447 = vrot.slane %v445, 4
      %v448 = vshll.u32 %v413, 16
      %v450 = vrot.slane %v448, 5
      %v451 = vor.u32 %v447, %v450
      %v452 = vrot.slane %v451, 4
      %v454 = vshll.u32 %v414, 16
      %v456 = vrot.slane %v454, 5
      %v457 = vsel %vm429, %v452, %v456
      %v459 = vshrl.u32 %v415, 16
      %v461 = vrot.slane %v459, 4
      %v462 = vshll.u32 %v415, 16
      %v464 = vrot.slane %v462, 5
      %v465 = vor.u32 %v461, %v464
      %v466 = vrot.slane %v465, 4
      %v468 = vshll.u32 %v416, 16
      %v470 = vrot.slane %v468, 5
      %v471 = vsel %vm429, %v466, %v470
      %v473 = vshrl.u32 %v417, 16
      %v475 = vrot.slane %v473, 4
      %v476 = vshll.u32 %v417, 16
      %v478 = vrot.slane %v476, 5
      %v479 = vor.u32 %v475, %v478
      %v480 = vrot.slane %v479, 4
      %v482 = vshll.u32 %v418, 16
      %v484 = vrot.slane %v482, 5
      %v485 = vsel %vm429, %v480, %v484
      %v487 = vshrl.u32 %v419, 16
      %v489 = vrot.slane %v487, 4
      %v490 = vshll.u32 %v419, 16
      %v492 = vrot.slane %v490, 5
      %v493 = vor.u32 %v489, %v492
      %v494 = vrot.slane %v493, 4
      %v496 = vshll.u32 %v420, 16
      %v498 = vrot.slane %v496, 5
      %v499 = vsel %vm429, %v494, %v498
      %v501 = vshrl.u32 %v421, 16
      %v503 = vrot.slane %v501, 4
      %v504 = vshll.u32 %v421, 16
      %v506 = vrot.slane %v504, 5
      %v507 = vor.u32 %v503, %v506
      %v508 = vrot.slane %v507, 4
      %v510 = vshll.u32 %v422, 16
      %v512 = vrot.slane %v510, 5
      %v513 = vsel %vm429, %v508, %v512
      %v515 = vshrl.u32 %v423, 16
      %v517 = vrot.slane %v515, 4
      %v518 = vshll.u32 %v423, 16
      %v520 = vrot.slane %v518, 5
      %v521 = vor.u32 %v517, %v520
      %v522 = vrot.slane %v521, 4
      %v524 = vshll.u32 %v424, 16
      %v526 = vrot.slane %v524, 5
      %v527 = vsel %vm429, %v522, %v526
      %v529 = vshrl.u32 %v425, 16
      %v531 = vrot.slane %v529, 4
      %v532 = vshll.u32 %v425, 16
      %v534 = vrot.slane %v532, 5
      %v535 = vor.u32 %v531, %v534
      %v536 = vrot.slane %v535, 4
      %v538 = vshll.u32 %v426, 16
      %v540 = vrot.slane %v538, 5
      %v541 = vsel %vm429, %v536, %v540
      %v542 = vunpack.c.l.b16 %v443
      %v543 = vunpack.c.l.b16 %v457
      %v544 = vunpack.c.l.b16 %v471
      %v545 = vunpack.c.l.b16 %v485
      %v546 = vunpack.c.l.b16 %v499
      %v547 = vunpack.c.l.b16 %v513
      %v548 = vunpack.c.l.b16 %v527
      %v549 = vunpack.c.l.b16 %v541
      %v550 = vpack.c.b16 %v543, %v542
      %v551 = vpack.c.b16 %v545, %v544
      %v552 = vpack.c.b16 %v547, %v546
      %v553 = vpack.c.b16 %v549, %v548
      %554 = vrot.lane.b32.xlu0 %v550, 64
      %v555 = vpop.permute.xlu0 %554
      %556 = vrot.lane.b32.xlu0 %v551, 64
      %v557 = vpop.permute.xlu0 %556
      %558 = vrot.lane.b32.xlu0 %v552, 64
      %v559 = vpop.permute.xlu0 %558
      %560 = vrot.lane.b32.xlu0 %v553, 64
      %v561 = vpop.permute.xlu0 %560
      %vm566 = vcmask 785920
      %567 = vst.msk [vmem:[#allocation2] sm:$0xff] %vm566, %v555
      %568 = vst.msk [vmem:[#allocation2 + $0x18] sm:$0xff] %vm566, %v557
      %569 = vst.msk [vmem:[#allocation2 + $0x30] sm:$0xff] %vm566, %v559
      %570 = vst.msk [vmem:[#allocation2 + $0x48] sm:$0xff] %vm566, %v561
      %s571 = scalar_lea.vmem %s299, 144
      %v572 = vld [vmem:[%s571] sm:$0xf]
      %v573 = vld [vmem:[%s571 + $0x8] sm:$0xf]
      %v574 = vld [vmem:[%s571 + $0x10] sm:$0xf]
      %v575 = vld [vmem:[%s571 + $0x18] sm:$0xf]
      %v576 = vld [vmem:[%s571 + $0x20] sm:$0xf]
      %v577 = vld [vmem:[%s571 + $0x28] sm:$0xf]
      %v578 = vld [vmem:[%s571 + $0x30] sm:$0xf]
      %v579 = vld [vmem:[%s571 + $0x38] sm:$0xf]
      %v588 = vunpack.c.l.b16 %v572
      %v589 = vunpack.c.l.b16 %v573
      %v590 = vunpack.c.l.b16 %v574
      %v591 = vunpack.c.l.b16 %v575
      %v592 = vunpack.c.l.b16 %v576
      %v593 = vunpack.c.l.b16 %v577
      %v594 = vunpack.c.l.b16 %v578
      %v595 = vunpack.c.l.b16 %v579
      %v596 = vpack.c.b16 %v589, %v588
      %v597 = vpack.c.b16 %v591, %v590
      %v598 = vpack.c.b16 %v593, %v592
      %v599 = vpack.c.b16 %v595, %v594
      %600 = vrot.lane.b32.xlu0 %v596, 96
      %v601 = vpop.permute.xlu0 %600
      %602 = vrot.lane.b32.xlu0 %v597, 96
      %v603 = vpop.permute.xlu0 %602
      %604 = vrot.lane.b32.xlu0 %v598, 96
      %v605 = vpop.permute.xlu0 %604
      %606 = vrot.lane.b32.xlu0 %v599, 96
      %v607 = vpop.permute.xlu0 %606
      %vm612 = vcmask 1048320
      %613 = vst.msk [vmem:[#allocation2] sm:$0xff] %vm612, %v601
      %614 = vst.msk [vmem:[#allocation2 + $0x18] sm:$0xff] %vm612, %v603
      %615 = vst.msk [vmem:[#allocation2 + $0x30] sm:$0xff] %vm612, %v605
      %616 = vst.msk [vmem:[#allocation2 + $0x48] sm:$0xff] %vm612, %v607
      %s617 = scalar_lea.vmem %s299, 216
      %v618 = vld [vmem:[%s617] sm:$0xf]
      %v619 = vld [vmem:[%s617 + $0x8] sm:$0xf]
      %v620 = vld [vmem:[%s617 + $0x10] sm:$0xf]
      %v621 = vld [vmem:[%s617 + $0x18] sm:$0xf]
      %v622 = vld [vmem:[%s617 + $0x20] sm:$0xf]
      %v623 = vld [vmem:[%s617 + $0x28] sm:$0xf]
      %v624 = vld [vmem:[%s617 + $0x30] sm:$0xf]
      %v625 = vld [vmem:[%s617 + $0x38] sm:$0xf]
      %v634 = vunpack.c.l.b16 %v618
      %v635 = vunpack.c.l.b16 %v619
      %v636 = vunpack.c.l.b16 %v620
      %v637 = vunpack.c.l.b16 %v621
      %v638 = vunpack.c.l.b16 %v622
      %v639 = vunpack.c.l.b16 %v623
      %v640 = vunpack.c.l.b16 %v624
      %v641 = vunpack.c.l.b16 %v625
      %v642 = vpack.c.b16 %v635, %v634
      %v643 = vpack.c.b16 %v637, %v636
      %v644 = vpack.c.b16 %v639, %v638
      %v645 = vpack.c.b16 %v641, %v640
      %650 = vst.msk [vmem:[#allocation2 + $0x8] sm:$0xff] %vm360, %v642
      %651 = vst.msk [vmem:[#allocation2 + $0x20] sm:$0xff] %vm360, %v643
      %652 = vst.msk [vmem:[#allocation2 + $0x38] sm:$0xff] %vm360, %v644
      %653 = vst.msk [vmem:[#allocation2 + $0x50] sm:$0xff] %vm360, %v645
      %v654 = vld [vmem:[%s571] sm:$0xf]
      %v655 = vld [vmem:[%s571 + $0x4] sm:$0x1]
      %v656 = vld [vmem:[%s571 + $0x8] sm:$0xf]
      %v657 = vld [vmem:[%s571 + $0xc] sm:$0x1]
      %v658 = vld [vmem:[%s571 + $0x10] sm:$0xf]
      %v659 = vld [vmem:[%s571 + $0x14] sm:$0x1]
      %v660 = vld [vmem:[%s571 + $0x18] sm:$0xf]
      %v661 = vld [vmem:[%s571 + $0x1c] sm:$0x1]
      %v662 = vld [vmem:[%s571 + $0x20] sm:$0xf]
      %v663 = vld [vmem:[%s571 + $0x24] sm:$0x1]
      %v664 = vld [vmem:[%s571 + $0x28] sm:$0xf]
      %v665 = vld [vmem:[%s571 + $0x2c] sm:$0x1]
      %v666 = vld [vmem:[%s571 + $0x30] sm:$0xf]
      %v667 = vld [vmem:[%s571 + $0x34] sm:$0x1]
      %v668 = vld [vmem:[%s571 + $0x38] sm:$0xf]
      %v669 = vld [vmem:[%s571 + $0x3c] sm:$0x1]
      %v671 = vshrl.u32 %v654, 16
      %v673 = vrot.slane %v671, 4
      %v674 = vshll.u32 %v654, 16
      %v676 = vrot.slane %v674, 5
      %v677 = vor.u32 %v673, %v676
      %v678 = vrot.slane %v677, 4
      %v680 = vshll.u32 %v655, 16
      %v682 = vrot.slane %v680, 5
      %v683 = vsel %vm429, %v678, %v682
      %v685 = vshrl.u32 %v656, 16
      %v687 = vrot.slane %v685, 4
      %v688 = vshll.u32 %v656, 16
      %v690 = vrot.slane %v688, 5
      %v691 = vor.u32 %v687, %v690
      %v692 = vrot.slane %v691, 4
      %v694 = vshll.u32 %v657, 16
      %v696 = vrot.slane %v694, 5
      %v697 = vsel %vm429, %v692, %v696
      %v699 = vshrl.u32 %v658, 16
      %v701 = vrot.slane %v699, 4
      %v702 = vshll.u32 %v658, 16
      %v704 = vrot.slane %v702, 5
      %v705 = vor.u32 %v701, %v704
      %v706 = vrot.slane %v705, 4
      %v708 = vshll.u32 %v659, 16
      %v710 = vrot.slane %v708, 5
      %v711 = vsel %vm429, %v706, %v710
      %v713 = vshrl.u32 %v660, 16
      %v715 = vrot.slane %v713, 4
      %v716 = vshll.u32 %v660, 16
      %v718 = vrot.slane %v716, 5
      %v719 = vor.u32 %v715, %v718
      %v720 = vrot.slane %v719, 4
      %v722 = vshll.u32 %v661, 16
      %v724 = vrot.slane %v722, 5
      %v725 = vsel %vm429, %v720, %v724
      %v727 = vshrl.u32 %v662, 16
      %v729 = vrot.slane %v727, 4
      %v730 = vshll.u32 %v662, 16
      %v732 = vrot.slane %v730, 5
      %v733 = vor.u32 %v729, %v732
      %v734 = vrot.slane %v733, 4
      %v736 = vshll.u32 %v663, 16
      %v738 = vrot.slane %v736, 5
      %v739 = vsel %vm429, %v734, %v738
      %v741 = vshrl.u32 %v664, 16
      %v743 = vrot.slane %v741, 4
      %v744 = vshll.u32 %v664, 16
      %v746 = vrot.slane %v744, 5
      %v747 = vor.u32 %v743, %v746
      %v748 = vrot.slane %v747, 4
      %v750 = vshll.u32 %v665, 16
      %v752 = vrot.slane %v750, 5
      %v753 = vsel %vm429, %v748, %v752
      %v755 = vshrl.u32 %v666, 16
      %v757 = vrot.slane %v755, 4
      %v758 = vshll.u32 %v666, 16
      %v760 = vrot.slane %v758, 5
      %v761 = vor.u32 %v757, %v760
      %v762 = vrot.slane %v761, 4
      %v764 = vshll.u32 %v667, 16
      %v766 = vrot.slane %v764, 5
      %v767 = vsel %vm429, %v762, %v766
      %v769 = vshrl.u32 %v668, 16
      %v771 = vrot.slane %v769, 4
      %v772 = vshll.u32 %v668, 16
      %v774 = vrot.slane %v772, 5
      %v775 = vor.u32 %v771, %v774
      %v776 = vrot.slane %v775, 4
      %v778 = vshll.u32 %v669, 16
      %v780 = vrot.slane %v778, 5
      %v781 = vsel %vm429, %v776, %v780
      %v782 = vunpack.c.l.b16 %v683
      %v783 = vunpack.c.l.b16 %v697
      %v784 = vunpack.c.l.b16 %v711
      %v785 = vunpack.c.l.b16 %v725
      %v786 = vunpack.c.l.b16 %v739
      %v787 = vunpack.c.l.b16 %v753
      %v788 = vunpack.c.l.b16 %v767
      %v789 = vunpack.c.l.b16 %v781
      %v790 = vpack.c.b16 %v783, %v782
      %v791 = vpack.c.b16 %v785, %v784
      %v792 = vpack.c.b16 %v787, %v786
      %v793 = vpack.c.b16 %v789, %v788
      %794 = vrot.lane.b32.xlu0 %v790, 32
      %v795 = vpop.permute.xlu0 %794
      %796 = vrot.lane.b32.xlu0 %v791, 32
      %v797 = vpop.permute.xlu0 %796
      %798 = vrot.lane.b32.xlu0 %v792, 32
      %v799 = vpop.permute.xlu0 %798
      %800 = vrot.lane.b32.xlu0 %v793, 32
      %v801 = vpop.permute.xlu0 %800
      %806 = vst.msk [vmem:[#allocation2 + $0x8] sm:$0xff] %vm406, %v795
      %807 = vst.msk [vmem:[#allocation2 + $0x20] sm:$0xff] %vm406, %v797
      %808 = vst.msk [vmem:[#allocation2 + $0x38] sm:$0xff] %vm406, %v799
      %809 = vst.msk [vmem:[#allocation2 + $0x50] sm:$0xff] %vm406, %v801
      %s810 = scalar_lea.vmem %s299, 8
      %v811 = vld [vmem:[%s810] sm:$0xf]
      %v812 = vld [vmem:[%s810 + $0x8] sm:$0xf]
      %v813 = vld [vmem:[%s810 + $0x10] sm:$0xf]
      %v814 = vld [vmem:[%s810 + $0x18] sm:$0xf]
      %v815 = vld [vmem:[%s810 + $0x20] sm:$0xf]
      %v816 = vld [vmem:[%s810 + $0x28] sm:$0xf]
      %v817 = vld [vmem:[%s810 + $0x30] sm:$0xf]
      %v818 = vld [vmem:[%s810 + $0x38] sm:$0xf]
      %v827 = vunpack.c.l.b16 %v811
      %v828 = vunpack.c.l.b16 %v812
      %v829 = vunpack.c.l.b16 %v813
      %v830 = vunpack.c.l.b16 %v814
      %v831 = vunpack.c.l.b16 %v815
      %v832 = vunpack.c.l.b16 %v816
      %v833 = vunpack.c.l.b16 %v817
      %v834 = vunpack.c.l.b16 %v818
      %v835 = vpack.c.b16 %v828, %v827
      %v836 = vpack.c.b16 %v830, %v829
      %v837 = vpack.c.b16 %v832, %v831
      %v838 = vpack.c.b16 %v834, %v833
      %839 = vrot.lane.b32.xlu0 %v835, 64
      %v840 = vpop.permute.xlu0 %839
      %841 = vrot.lane.b32.xlu0 %v836, 64
      %v842 = vpop.permute.xlu0 %841
      %843 = vrot.lane.b32.xlu0 %v837, 64
      %v844 = vpop.permute.xlu0 %843
      %845 = vrot.lane.b32.xlu0 %v838, 64
      %v846 = vpop.permute.xlu0 %845
      %851 = vst.msk [vmem:[#allocation2 + $0x8] sm:$0xff] %vm566, %v840
      %852 = vst.msk [vmem:[#allocation2 + $0x20] sm:$0xff] %vm566, %v842
      %853 = vst.msk [vmem:[#allocation2 + $0x38] sm:$0xff] %vm566, %v844
      %854 = vst.msk [vmem:[#allocation2 + $0x50] sm:$0xff] %vm566, %v846
      %s855 = scalar_lea.vmem %s299, 80
      %v856 = vld [vmem:[%s855] sm:$0xf]
      %v857 = vld [vmem:[%s855 + $0x8] sm:$0xf]
      %v858 = vld [vmem:[%s855 + $0x10] sm:$0xf]
      %v859 = vld [vmem:[%s855 + $0x18] sm:$0xf]
      %v860 = vld [vmem:[%s855 + $0x20] sm:$0xf]
      %v861 = vld [vmem:[%s855 + $0x28] sm:$0xf]
      %v862 = vld [vmem:[%s855 + $0x30] sm:$0xf]
      %v863 = vld [vmem:[%s855 + $0x38] sm:$0xf]
      %v872 = vunpack.c.l.b16 %v856
      %v873 = vunpack.c.l.b16 %v857
      %v874 = vunpack.c.l.b16 %v858
      %v875 = vunpack.c.l.b16 %v859
      %v876 = vunpack.c.l.b16 %v860
      %v877 = vunpack.c.l.b16 %v861
      %v878 = vunpack.c.l.b16 %v862
      %v879 = vunpack.c.l.b16 %v863
      %v880 = vpack.c.b16 %v873, %v872
      %v881 = vpack.c.b16 %v875, %v874
      %v882 = vpack.c.b16 %v877, %v876
      %v883 = vpack.c.b16 %v879, %v878
      %884 = vrot.lane.b32.xlu0 %v880, 96
      %v885 = vpop.permute.xlu0 %884
      %886 = vrot.lane.b32.xlu0 %v881, 96
      %v887 = vpop.permute.xlu0 %886
      %888 = vrot.lane.b32.xlu0 %v882, 96
      %v889 = vpop.permute.xlu0 %888
      %890 = vrot.lane.b32.xlu0 %v883, 96
      %v891 = vpop.permute.xlu0 %890
      %896 = vst.msk [vmem:[#allocation2 + $0x8] sm:$0xff] %vm612, %v885
      %897 = vst.msk [vmem:[#allocation2 + $0x20] sm:$0xff] %vm612, %v887
      %898 = vst.msk [vmem:[#allocation2 + $0x38] sm:$0xff] %vm612, %v889
      %899 = vst.msk [vmem:[#allocation2 + $0x50] sm:$0xff] %vm612, %v891
      %v900 = vld [vmem:[%s810] sm:$0xf]
      %v901 = vld [vmem:[%s810 + $0x4] sm:$0x1]
      %v902 = vld [vmem:[%s810 + $0x8] sm:$0xf]
      %v903 = vld [vmem:[%s810 + $0xc] sm:$0x1]
      %v904 = vld [vmem:[%s810 + $0x10] sm:$0xf]
      %v905 = vld [vmem:[%s810 + $0x14] sm:$0x1]
      %v906 = vld [vmem:[%s810 + $0x18] sm:$0xf]
      %v907 = vld [vmem:[%s810 + $0x1c] sm:$0x1]
      %v908 = vld [vmem:[%s810 + $0x20] sm:$0xf]
      %v909 = vld [vmem:[%s810 + $0x24] sm:$0x1]
      %v910 = vld [vmem:[%s810 + $0x28] sm:$0xf]
      %v911 = vld [vmem:[%s810 + $0x2c] sm:$0x1]
      %v912 = vld [vmem:[%s810 + $0x30] sm:$0xf]
      %v913 = vld [vmem:[%s810 + $0x34] sm:$0x1]
      %v914 = vld [vmem:[%s810 + $0x38] sm:$0xf]
      %v915 = vld [vmem:[%s810 + $0x3c] sm:$0x1]
      %v917 = vshrl.u32 %v900, 16
      %v919 = vrot.slane %v917, 4
      %v920 = vshll.u32 %v900, 16
      %v922 = vrot.slane %v920, 5
      %v923 = vor.u32 %v919, %v922
      %v924 = vrot.slane %v923, 4
      %v926 = vshll.u32 %v901, 16
      %v928 = vrot.slane %v926, 5
      %v929 = vsel %vm429, %v924, %v928
      %v931 = vshrl.u32 %v902, 16
      %v933 = vrot.slane %v931, 4
      %v934 = vshll.u32 %v902, 16
      %v936 = vrot.slane %v934, 5
      %v937 = vor.u32 %v933, %v936
      %v938 = vrot.slane %v937, 4
      %v940 = vshll.u32 %v903, 16
      %v942 = vrot.slane %v940, 5
      %v943 = vsel %vm429, %v938, %v942
      %v945 = vshrl.u32 %v904, 16
      %v947 = vrot.slane %v945, 4
      %v948 = vshll.u32 %v904, 16
      %v950 = vrot.slane %v948, 5
      %v951 = vor.u32 %v947, %v950
      %v952 = vrot.slane %v951, 4
      %v954 = vshll.u32 %v905, 16
      %v956 = vrot.slane %v954, 5
      %v957 = vsel %vm429, %v952, %v956
      %v959 = vshrl.u32 %v906, 16
      %v961 = vrot.slane %v959, 4
      %v962 = vshll.u32 %v906, 16
      %v964 = vrot.slane %v962, 5
      %v965 = vor.u32 %v961, %v964
      %v966 = vrot.slane %v965, 4
      %v968 = vshll.u32 %v907, 16
      %v970 = vrot.slane %v968, 5
      %v971 = vsel %vm429, %v966, %v970
      %v973 = vshrl.u32 %v908, 16
      %v975 = vrot.slane %v973, 4
      %v976 = vshll.u32 %v908, 16
      %v978 = vrot.slane %v976, 5
      %v979 = vor.u32 %v975, %v978
      %v980 = vrot.slane %v979, 4
      %v982 = vshll.u32 %v909, 16
      %v984 = vrot.slane %v982, 5
      %v985 = vsel %vm429, %v980, %v984
      %v987 = vshrl.u32 %v910, 16
      %v989 = vrot.slane %v987, 4
      %v990 = vshll.u32 %v910, 16
      %v992 = vrot.slane %v990, 5
      %v993 = vor.u32 %v989, %v992
      %v994 = vrot.slane %v993, 4
      %v996 = vshll.u32 %v911, 16
      %v998 = vrot.slane %v996, 5
      %v999 = vsel %vm429, %v994, %v998
      %v1001 = vshrl.u32 %v912, 16
      %v1003 = vrot.slane %v1001, 4
      %v1004 = vshll.u32 %v912, 16
      %v1006 = vrot.slane %v1004, 5
      %v1007 = vor.u32 %v1003, %v1006
      %v1008 = vrot.slane %v1007, 4
      %v1010 = vshll.u32 %v913, 16
      %v1012 = vrot.slane %v1010, 5
      %v1013 = vsel %vm429, %v1008, %v1012
      %v1015 = vshrl.u32 %v914, 16
      %v1017 = vrot.slane %v1015, 4
      %v1018 = vshll.u32 %v914, 16
      %v1020 = vrot.slane %v1018, 5
      %v1021 = vor.u32 %v1017, %v1020
      %v1022 = vrot.slane %v1021, 4
      %v1024 = vshll.u32 %v915, 16
      %v1026 = vrot.slane %v1024, 5
      %v1027 = vsel %vm429, %v1022, %v1026
      %v1028 = vunpack.c.l.b16 %v929
      %v1029 = vunpack.c.l.b16 %v943
      %v1030 = vunpack.c.l.b16 %v957
      %v1031 = vunpack.c.l.b16 %v971
      %v1032 = vunpack.c.l.b16 %v985
      %v1033 = vunpack.c.l.b16 %v999
      %v1034 = vunpack.c.l.b16 %v1013
      %v1035 = vunpack.c.l.b16 %v1027
      %v1036 = vpack.c.b16 %v1029, %v1028
      %v1037 = vpack.c.b16 %v1031, %v1030
      %v1038 = vpack.c.b16 %v1033, %v1032
      %v1039 = vpack.c.b16 %v1035, %v1034
      %1044 = vst.msk [vmem:[#allocation2 + $0x10] sm:$0xff] %vm360, %v1036
      %1045 = vst.msk [vmem:[#allocation2 + $0x28] sm:$0xff] %vm360, %v1037
      %1046 = vst.msk [vmem:[#allocation2 + $0x40] sm:$0xff] %vm360, %v1038
      %1047 = vst.msk [vmem:[#allocation2 + $0x58] sm:$0xff] %vm360, %v1039
      %v1048 = vld [vmem:[#allocation2] sm:$0xff]
      %v1049 = vld [vmem:[#allocation2 + $0x8] sm:$0xff]
      %v1050 = vld [vmem:[#allocation2 + $0x10] sm:$0xff]
      %v1051 = vld [vmem:[#allocation2 + $0x18] sm:$0xff]
      %v1052 = vld [vmem:[#allocation2 + $0x20] sm:$0xff]
      %v1053 = vld [vmem:[#allocation2 + $0x28] sm:$0xff]
      %v1054 = vld [vmem:[#allocation2 + $0x30] sm:$0xff]
      %v1055 = vld [vmem:[#allocation2 + $0x38] sm:$0xff]
      %v1056 = vld [vmem:[#allocation2 + $0x40] sm:$0xff]
      %v1057 = vld [vmem:[#allocation2 + $0x48] sm:$0xff]
      %v1058 = vld [vmem:[#allocation2 + $0x50] sm:$0xff]
      %v1059 = vld [vmem:[#allocation2 + $0x58] sm:$0xff]
      %v1060 = vld [vmem:[%s307] sm:$0xf]
      %v1061 = vld [vmem:[%s307 + $0x4] sm:$0xf]
      %v1062 = vld [vmem:[%s307 + $0x8] sm:$0xf]
      %v1063 = vld [vmem:[%s307 + $0xc] sm:$0xf]
      %v1064 = vld [vmem:[%s307 + $0x10] sm:$0xf]
      %v1065 = vld [vmem:[%s307 + $0x14] sm:$0xf]
      %v1066 = vld [vmem:[%s307 + $0x18] sm:$0xf]
      %v1067 = vld [vmem:[%s307 + $0x1c] sm:$0xf]
      %v1068 = vld [vmem:[%s307 + $0x20] sm:$0xf]
      %v1069 = vld [vmem:[%s307 + $0x24] sm:$0xf]
      %v1070 = vld [vmem:[%s307 + $0x28] sm:$0xf]
      %v1071 = vld [vmem:[%s307 + $0x2c] sm:$0xf]
      %v1072 = vld [vmem:[%s307 + $0x30] sm:$0xf]
      %v1073 = vld [vmem:[%s307 + $0x34] sm:$0xf]
      %v1074 = vld [vmem:[%s307 + $0x38] sm:$0xf]
      %v1075 = vld [vmem:[%s307 + $0x3c] sm:$0xf]
      %v1076 = vld [vmem:[%s307 + $0x40] sm:$0xf]
      %v1077 = vld [vmem:[%s307 + $0x44] sm:$0xf]
      %v1078 = vld [vmem:[%s307 + $0x48] sm:$0xf]
      %v1079 = vld [vmem:[%s307 + $0x4c] sm:$0xf]
      %v1080 = vld [vmem:[%s307 + $0x50] sm:$0xf]
      %v1081 = vld [vmem:[%s307 + $0x54] sm:$0xf]
      %v1082 = vld [vmem:[%s307 + $0x58] sm:$0xf]
      %v1083 = vld [vmem:[%s307 + $0x5c] sm:$0xf]
      %v1084 = vld [vmem:[%s307 + $0x60] sm:$0xf]
      %v1085 = vld [vmem:[%s307 + $0x64] sm:$0xf]
      %v1086 = vld [vmem:[%s307 + $0x68] sm:$0xf]
      %v1087 = vld [vmem:[%s307 + $0x6c] sm:$0xf]
      %v1088 = vld [vmem:[%s307 + $0x70] sm:$0xf]
      %v1089 = vld [vmem:[%s307 + $0x74] sm:$0xf]
      %v1090 = vld [vmem:[%s307 + $0x78] sm:$0xf]
      %v1091 = vld [vmem:[%s307 + $0x7c] sm:$0xf]
      %v1092 = vld [vmem:[%s307 + $0x80] sm:$0xf]
      %v1093 = vld [vmem:[%s307 + $0x84] sm:$0xf]
      %v1094 = vld [vmem:[%s307 + $0x88] sm:$0xf]
      %v1095 = vld [vmem:[%s307 + $0x8c] sm:$0xf]
      %v1132 = vunpack.c.l.b16 %v1060
      %v1133 = vunpack.c.l.b16 %v1061
      %v1134 = vunpack.c.l.b16 %v1062
      %v1135 = vunpack.c.l.b16 %v1063
      %v1136 = vunpack.c.l.b16 %v1064
      %v1137 = vunpack.c.l.b16 %v1065
      %v1138 = vunpack.c.l.b16 %v1066
      %v1139 = vunpack.c.l.b16 %v1067
      %v1140 = vunpack.c.l.b16 %v1068
      %v1141 = vunpack.c.l.b16 %v1069
      %v1142 = vunpack.c.l.b16 %v1070
      %v1143 = vunpack.c.l.b16 %v1071
      %v1144 = vunpack.c.l.b16 %v1072
      %v1145 = vunpack.c.l.b16 %v1073
      %v1146 = vunpack.c.l.b16 %v1074
      %v1147 = vunpack.c.l.b16 %v1075
      %v1148 = vunpack.c.l.b16 %v1076
      %v1149 = vunpack.c.l.b16 %v1077
      %v1150 = vunpack.c.l.b16 %v1078
      %v1151 = vunpack.c.l.b16 %v1079
      %v1152 = vunpack.c.l.b16 %v1080
      %v1153 = vunpack.c.l.b16 %v1081
      %v1154 = vunpack.c.l.b16 %v1082
      %v1155 = vunpack.c.l.b16 %v1083
      %v1156 = vunpack.c.l.b16 %v1084
      %v1157 = vunpack.c.l.b16 %v1085
      %v1158 = vunpack.c.l.b16 %v1086
      %v1159 = vunpack.c.l.b16 %v1087
      %v1160 = vunpack.c.l.b16 %v1088
      %v1161 = vunpack.c.l.b16 %v1089
      %v1162 = vunpack.c.l.b16 %v1090
      %v1163 = vunpack.c.l.b16 %v1091
      %v1164 = vunpack.c.l.b16 %v1092
      %v1165 = vunpack.c.l.b16 %v1093
      %v1166 = vunpack.c.l.b16 %v1094
      %v1167 = vunpack.c.l.b16 %v1095
      %v1168 = vpack.c.b16 %v1133, %v1132
      %v1169 = vpack.c.b16 %v1135, %v1134
      %v1170 = vpack.c.b16 %v1137, %v1136
      %v1171 = vpack.c.b16 %v1139, %v1138
      %v1172 = vpack.c.b16 %v1141, %v1140
      %v1173 = vpack.c.b16 %v1143, %v1142
      %v1174 = vpack.c.b16 %v1145, %v1144
      %v1175 = vpack.c.b16 %v1147, %v1146
      %v1176 = vpack.c.b16 %v1149, %v1148
      %v1177 = vpack.c.b16 %v1151, %v1150
      %v1178 = vpack.c.b16 %v1153, %v1152
      %v1179 = vpack.c.b16 %v1155, %v1154
      %v1180 = vpack.c.b16 %v1157, %v1156
      %v1181 = vpack.c.b16 %v1159, %v1158
      %v1182 = vpack.c.b16 %v1161, %v1160
      %v1183 = vpack.c.b16 %v1163, %v1162
      %v1184 = vpack.c.b16 %v1165, %v1164
      %v1185 = vpack.c.b16 %v1167, %v1166
      %v1205 = vsel %vm360, %v1050, 0
      %v1208 = vsel %vm360, %v1053, 0
      %v1211 = vsel %vm360, %v1056, 0
      %v1214 = vsel %vm360, %v1059, 0
      %1216 = vmatprep.subr.bf16.mxu0 0
      %1217 = vmatpush1.bf16.msra.mxu0 %v1168
      %1218 = vmatprep.subr.bf16.mxu0 0
      %1219 = vmatpush1.bf16.msra.mxu0 %v1169
      %1220 = vmatprep.subr.bf16.mxu0 0
      %1221 = vmatpush1.bf16.msra.mxu0 %v1170
      %1222 = vmatprep.subr.bf16.mxu0 0
      %1223 = vmatpush1.bf16.msra.mxu0 %v1171
      %1224 = vmatprep.subr.bf16.mxu0 0
      %1225 = vmatpush1.bf16.msra.mxu0 %v1172
      %1226 = vmatprep.subr.bf16.mxu0 0
      %1227 = vmatpush1.bf16.msra.mxu0 %v1173
      %1228 = vmatprep.subr.bf16.mxu0 0
      %1229 = vmatpush1.bf16.msra.mxu0 %v1174
      %1230 = vmatprep.subr.bf16.mxu0 0
      %1231 = vmatpush1.bf16.msra.mxu0 %v1175
      %1232 = vmatprep.subr.bf16.mxu0 0
      %1233 = vmatpush1.bf16.msra.mxu0 %v1176
      %1234 = vmatprep.subr.bf16.mxu0 0
      %1235 = vmatpush1.bf16.msra.mxu0 %v1177
      %1236 = vmatprep.subr.bf16.mxu0 0
      %1237 = vmatpush1.bf16.msra.mxu0 %v1178
      %1238 = vmatprep.subr.bf16.mxu0 0
      %1239 = vmatpush1.bf16.msra.mxu0 %v1179
      %1240 = vmatprep.subr.bf16.mxu0 0
      %1241 = vmatpush1.bf16.msra.mxu0 %v1180
      %1242 = vmatprep.subr.bf16.mxu0 0
      %1243 = vmatpush1.bf16.msra.mxu0 %v1181
      %1244 = vmatprep.subr.bf16.mxu0 0
      %1245 = vmatpush1.bf16.msra.mxu0 %v1182
      %1246 = vmatprep.subr.bf16.mxu0 0
      %1247 = vmatpush1.bf16.msra.mxu0 %v1183
      %1248 = vmatprep.mubr.bf16.mxu0 %v1049
      %1249 = vmatmul.mubr.bf16.gmra.mrb[0].mxu0 %v1048
      %v1250 = vpop.f32.mrb[0].mxu0
      %v1251 = vadd.f32 0.0, %v1250
      %v1252 = vpop.f32.mrb[0].mxu0
      %v1253 = vpop.f32.mrb[0].mxu0
      %v1254 = vadd.f32 0.0, %v1253
      %v1255 = vpop.f32.mrb[0].mxu0
      %1256 = vmatprep.mubr.bf16.mxu0 %v1052
      %1257 = vmatmul.mubr.bf16.gmra.mrb[0].mxu0 %v1051
      %v1258 = vpop.f32.mrb[0].mxu0
      %v1259 = vadd.f32 0.0, %v1258
      %v1260 = vpop.f32.mrb[0].mxu0
      %v1261 = vpop.f32.mrb[0].mxu0
      %v1262 = vadd.f32 0.0, %v1261
      %v1263 = vpop.f32.mrb[0].mxu0
      %1264 = vmatprep.mubr.bf16.mxu0 %v1055
      %1265 = vmatmul.mubr.bf16.gmra.mrb[0].mxu0 %v1054
      %v1266 = vpop.f32.mrb[0].mxu0
      %v1267 = vadd.f32 0.0, %v1266
      %v1268 = vpop.f32.mrb[0].mxu0
      %v1269 = vpop.f32.mrb[0].mxu0
      %v1270 = vadd.f32 0.0, %v1269
      %v1271 = vpop.f32.mrb[0].mxu0
      %1272 = vmatprep.mubr.bf16.mxu0 %v1058
      %1273 = vmatmul.mubr.bf16.gmra.mrb[0].mxu0 %v1057
      %v1274 = vpop.f32.mrb[0].mxu0
      %v1275 = vadd.f32 0.0, %v1274
      %v1276 = vpop.f32.mrb[0].mxu0
      %v1277 = vpop.f32.mrb[0].mxu0
      %v1278 = vadd.f32 0.0, %v1277
      %v1279 = vpop.f32.mrb[0].mxu0
      %1280 = vdwg.mxu0
      %1281 = vmatprep.subr.bf16.mxu0 0
      %1282 = vmatpush1.bf16.msra.mxu0 %v1184
      %1283 = vmatprep.subr.bf16.mxu0 0
      %1284 = vmatpush1.bf16.msra.mxu0 %v1185
      %1285 = vmatprep.subr.bf16.mxu0 0
      %1286 = vmatpush1.bf16.msra.mxu0 0
      %1287 = vmatprep.subr.bf16.mxu0 0
      %1288 = vmatpush1.bf16.msra.mxu0 0
      %1289 = vmatprep.subr.bf16.mxu0 0
      %1290 = vmatpush1.bf16.msra.mxu0 0
      %1291 = vmatprep.subr.bf16.mxu0 0
      %1292 = vmatpush1.bf16.msra.mxu0 0
      %1293 = vmatprep.subr.bf16.mxu0 0
      %1294 = vmatpush1.bf16.msra.mxu0 0
      %1295 = vmatprep.subr.bf16.mxu0 0
      %1296 = vmatpush1.bf16.msra.mxu0 0
      %1297 = vmatprep.subr.bf16.mxu0 0
      %1298 = vmatpush1.bf16.msra.mxu0 0
      %1299 = vmatprep.subr.bf16.mxu0 0
      %1300 = vmatpush1.bf16.msra.mxu0 0
      %1301 = vmatprep.subr.bf16.mxu0 0
      %1302 = vmatpush1.bf16.msra.mxu0 0
      %1303 = vmatprep.subr.bf16.mxu0 0
      %1304 = vmatpush1.bf16.msra.mxu0 0
      %1305 = vmatprep.subr.bf16.mxu0 0
      %1306 = vmatpush1.bf16.msra.mxu0 0
      %1307 = vmatprep.subr.bf16.mxu0 0
      %1308 = vmatpush1.bf16.msra.mxu0 0
      %1309 = vmatprep.subr.bf16.mxu0 0
      %1310 = vmatpush1.bf16.msra.mxu0 0
      %1311 = vmatprep.subr.bf16.mxu0 0
      %1312 = vmatpush1.bf16.msra.mxu0 0
      %1313 = vmatprep.mubr.bf16.mxu0 0
      %1314 = vmatmul.mubr.bf16.gmra.mrb[0].mxu0 %v1205
      %v1315 = vpop.f32.mrb[0].mxu0
      %v1316 = vadd.f32 %v1251, %v1315
      %v1317 = vpop.f32.mrb[0].mxu0
      %v1318 = vpop.f32.mrb[0].mxu0
      %v1319 = vadd.f32 %v1254, %v1318
      %v1320 = vpop.f32.mrb[0].mxu0
      %1321 = vmatprep.mubr.bf16.mxu0 0
      %1322 = vmatmul.mubr.bf16.gmra.mrb[0].mxu0 %v1208
      %v1323 = vpop.f32.mrb[0].mxu0
      %v1324 = vadd.f32 %v1259, %v1323
      %v1325 = vpop.f32.mrb[0].mxu0
      %v1326 = vpop.f32.mrb[0].mxu0
      %v1327 = vadd.f32 %v1262, %v1326
      %v1328 = vpop.f32.mrb[0].mxu0
      %1329 = vmatprep.mubr.bf16.mxu0 0
      %1330 = vmatmul.mubr.bf16.gmra.mrb[0].mxu0 %v1211
      %v1331 = vpop.f32.mrb[0].mxu0
      %v1332 = vadd.f32 %v1267, %v1331
      %v1333 = vpop.f32.mrb[0].mxu0
      %v1334 = vpop.f32.mrb[0].mxu0
      %v1335 = vadd.f32 %v1270, %v1334
      %v1336 = vpop.f32.mrb[0].mxu0
      %1337 = vmatprep.mubr.bf16.mxu0 0
      %1338 = vmatmul.mubr.bf16.gmra.mrb[0].mxu0 %v1214
      %v1339 = vpop.f32.mrb[0].mxu0
      %v1340 = vadd.f32 %v1275, %v1339
      %v1341 = vpop.f32.mrb[0].mxu0
      %v1342 = vpop.f32.mrb[0].mxu0
      %v1343 = vadd.f32 %v1278, %v1342
      %v1344 = vpop.f32.mrb[0].mxu0
      %1345 = vdwg.mxu0
      %v1346 = vld [vmem:[%s310] sm:$0x1]
      %v1348 = vlaneseq
      %v1349 = vshrl.u32 %v1348, 7
      %v1350 = vsub.s32 0, %v1349
      %v1351 = vrot.slane %v1346, %v1350
      %v1353 = vmul.f32 %v1316, %v1351
      %v1354 = vmul.f32 %v1319, %v1351
      %v1355 = vmul.f32 %v1324, %v1351
      %v1356 = vmul.f32 %v1327, %v1351
      %v1357 = vmul.f32 %v1332, %v1351
      %v1358 = vmul.f32 %v1335, %v1351
      %v1359 = vmul.f32 %v1340, %v1351
      %v1360 = vmul.f32 %v1343, %v1351
      %v1361 = vld [vmem:[%s313] sm:$0x1]
      %v1363 = vlaneseq
      %v1364 = vshrl.u32 %v1363, 7
      %v1365 = vsub.s32 0, %v1364
      %v1366 = vrot.slane %v1361, %v1365
      %v1368 = vadd.f32 %v1353, %v1366
      %v1369 = vadd.f32 %v1354, %v1366
      %v1370 = vadd.f32 %v1355, %v1366
      %v1371 = vadd.f32 %v1356, %v1366
      %v1372 = vadd.f32 %v1357, %v1366
      %v1373 = vadd.f32 %v1358, %v1366
      %v1374 = vadd.f32 %v1359, %v1366
      %v1375 = vadd.f32 %v1360, %v1366
      %v1376 = vmax.f32 %v1368, 0.0
      %v1377 = vmax.f32 %v1369, 0.0
      %v1378 = vmax.f32 %v1370, 0.0
      %v1379 = vmax.f32 %v1371, 0.0
      %v1380 = vmax.f32 %v1372, 0.0
      %v1381 = vmax.f32 %v1373, 0.0
      %v1382 = vmax.f32 %v1374, 0.0
      %v1383 = vmax.f32 %v1375, 0.0
      %v1384 = vpack.c.bf16 %v1376, %v1376
      %v1385 = vpack.c.bf16 %v1377, %v1377
      %v1386 = vpack.c.bf16 %v1378, %v1378
      %v1387 = vpack.c.bf16 %v1379, %v1379
      %v1388 = vpack.c.bf16 %v1380, %v1380
      %v1389 = vpack.c.bf16 %v1381, %v1381
      %v1390 = vpack.c.bf16 %v1382, %v1382
      %v1391 = vpack.c.bf16 %v1383, %v1383
      %vm1392 = vcmask 519168
      %1393 = vst.msk [vmem:[%s325] sm:$0xf] %vm1392, %v1384
      %1394 = vst.msk [vmem:[%s325 + $0x4] sm:$0xf] %vm1392, %v1385
      %1395 = vst.msk [vmem:[%s325 + $0x8] sm:$0xf] %vm1392, %v1386
      %1396 = vst.msk [vmem:[%s325 + $0xc] sm:$0xf] %vm1392, %v1387
      %1397 = vst.msk [vmem:[%s325 + $0x10] sm:$0xf] %vm1392, %v1388
      %1398 = vst.msk [vmem:[%s325 + $0x14] sm:$0xf] %vm1392, %v1389
      %1399 = vst.msk [vmem:[%s325 + $0x18] sm:$0xf] %vm1392, %v1390
      %1400 = vst.msk [vmem:[%s325 + $0x1c] sm:$0xf] %vm1392, %v1391
      %s1401 = smul.u32 8, %s22
      %p1402 = scmp.lt.s32.totalorder %s21, 1
      %s1403 = scalar_select %p1402, %s21, 1
      %p1404 = scmp.lt.s32.totalorder %s1401, 7
      %s1405 = scalar_select %p1404, %s1401, 7
      %p1406 = scmp.lt.s32.totalorder %s23, 0
      %s1407 = scalar_select %p1406, %s23, 0
      %s1408 = sadd.s32 %s1407, %s1405
      %s1409 = smul.addr %s1403, 8
      %s1410 = sadd.s32 %s1408, %s1409
      %s1411 = smul.addr %s1410, 4
      %s1412 = scalar_lea.vmem %s4, %s1411
      // Predicated region
      $region37: #{basic_block_fwd.4} parent=35 // pred_check
        %p1413 = pneg %p173
      $region38: #{basic_block_fwd.4} parent=35 // pred_check_branch
        %1415 = sbr.rel (%p1413) target = $region40
      $region39: #{basic_block_fwd.4} parent=35 // pred_region
        %s1416 = smul.u32 8, %s22
      $region40: #{basic_block_fwd.4} parent=35 // pred_fallthru
        _
    $region36: #{basic_block_fwd.4} parent=5 // pred_fallthru
      _
    %p1417 = scmp.le.s32.totalorder 2, %s10
    // Predicated region
    $region41: #{basic_block_fwd.4} parent=5 // pred_check
      %p1418 = pneg %p1417
    $region42: #{basic_block_fwd.4} parent=5 // pred_check_branch
      %1420 = sbr.rel (%p1418) target = $region44
    $region43: #{basic_block_fwd.4} parent=5 // pred_region
      %s1421 = ssub.s32 %s10, 2
      // Predicated region
      $region45: #{basic_block_fwd.4} parent=43 // pred_check
        %p1422 = pneg %p179
      $region46: #{basic_block_fwd.4} parent=43 // pred_check_branch
        %1424 = sbr.rel (%p1422) target = $region48
      $region47: #{basic_block_fwd.4} parent=43 // pred_region
        %s1425 = smul.u32 8, %s26
        %p1426 = scmp.lt.s32.totalorder %s25, 1
        %s1427 = scalar_select %p1426, %s25, 1
        %p1428 = scmp.lt.s32.totalorder %s1425, 7
        %s1429 = scalar_select %p1428, %s1425, 7
        %p1430 = scmp.lt.s32.totalorder %s27, 0
        %s1431 = scalar_select %p1430, %s27, 0
        %s1432 = sadd.s32 %s1431, %s1429
        %s1433 = smul.addr %s1427, 8
        %s1434 = sadd.s32 %s1432, %s1433
        %s1435 = smul.addr %s1434, 4
        %s1436 = scalar_lea.vmem %s4, %s1435
      $region48: #{basic_block_fwd.4} parent=43 // pred_fallthru
        _
    $region44: #{basic_block_fwd.4} parent=5 // pred_fallthru
      _
  $region6: #{basic_block_fwd.4} parent=0 // loop_footer
    %s14 = sadd.s32 1, %s10
  $region7: #{basic_block_fwd.4} parent=0 // loop_footer_branch
    %9 = sbr.rel target = $region3
  $region8: #{basic_block_fwd.4} parent=0 // loop_exit
    _

// kernel: basic_block_fwd.5
$region0: #{basic_block_fwd.5}
  #allocation0 [shape = 'u32[]', space=smem, size = 0x4, offset = 0x4, fixed_abs, tag = 'smem constant byte address 0x4 - core index']
  #allocation1 [shape = 'u32[144,128]{1,0:T(1,128)}', space=vmem, size = 0x12000, scoped, tag = 'internal scratch']
  #allocation2 [shape = 'bf16[64,576]{1,0:T(16,128)(2,1)}', space=vmem, size = 0x14000, scoped, tag = 'scratch operand']
  %s0 = inlined_call_operand.vmem [shape: bf16[2,1,1,10,10,64], index: 0, kind: input, shape index: {}]
  %s1 = inlined_call_operand.vmem [shape: bf16[1,576,64], index: 1, kind: input, shape index: {}]
  %s2 = inlined_call_operand.vmem [shape: f32[1,64], index: 2, kind: input, shape index: {}]
  %s3 = inlined_call_operand.vmem [shape: f32[1,64], index: 3, kind: input, shape index: {}]
  %s4 = inlined_call_operand.vmem [shape: bf16[2,8,8,64], index: 4, kind: input, shape index: {}]
  %s5 = inlined_call_operand.hbm [shape: f32[2,8,8,64], index: 5, kind: output, shape index: {}]
  %s6 = sld [smem:[#allocation0]]
  $region53: #{basic_block_fwd.5} parent=0
    _
  %s8 = ssub.s32 1, %s6
  %s9 = scalar_select 0, %s8, %s6
  $region1: #{basic_block_fwd.5} parent=0
    #allocation3 [shape = 'u8[65536]{0}', space=vmem, size = 0x10000, scoped, tag = 'output window, operand 0']
    #allocation4 [shape = 's32[2]{0}', space=sflag, size = 0x8, scoped, tag = 'scoped memory for basic_block_fwd.5']
    %10 = vsyncpa [#allocation4], 0
    %s11 = scalar_lea.sflag [#allocation4], 1
    %12 = vsyncpa %s11, 0
    loop: start=0, step=1, limit=4
    $region2: #{basic_block_fwd.5} parent=1 // loop_pre_header
      _
    $region3: #{basic_block_fwd.5} parent=1 // loop_header
      %s14 = sphi 0, %s18
      %p15 = scmp.ge.s32.totalorder %s14, 4
      %s21 = sphi 0, %s47
      %s22 = sphi 0, %s43
      %s23 = sphi 0, %s39
      %s24 = sphi 0, %s35
      %s25 = sphi 0, %s21
      %s26 = sphi 0, %s22
      %s27 = sphi 0, %s23
      %s28 = sphi 0, %s24
      %s29 = sphi 0, %s25
      %s30 = sphi 0, %s26
      %s31 = sphi 0, %s27
      %s32 = sphi 0, %s28
      %s54 = sphi 0, %s56
      %s57 = sphi 0, %s54
      %s58 = sphi 0, %s57
      %s74 = sphi 0, %s58
      %s82 = sphi 0, %s84
      %s85 = sphi 0, %s82
      %s86 = sphi 0, %s85
      %s102 = sphi 0, %s86
      %s108 = sphi 0, %s110
      %s111 = sphi 0, %s108
      %s112 = sphi 0, %s111
      %s128 = sphi 0, %s112
      %s134 = sphi 0, %s136
      %s137 = sphi 0, %s134
      %s138 = sphi 0, %s137
      %s154 = sphi 0, %s138
      %s164 = sphi 0, %s166
      %s167 = sphi 0, %s164
      %s168 = sphi 0, %s167
      %s184 = sphi 0, %s168
      %s194 = sphi 0, %s196
      %s197 = sphi 0, %s194
      %s198 = sphi 0, %s197
      %s214 = sphi 0, %s198
    $region4: #{basic_block_fwd.5} parent=1 // loop_header_branch
      %17 = sbr.rel (%p15) target = $region8
    $region5: #{basic_block_fwd.5} parent=1 // loop_body
      %s19 = ssub.s32 %s14, 1
      %s20 = ssub.s32 %s14, 2
      %s33 = sadd.s32 1, %s24
      %p34 = scmp.ge.s32.totalorder %s33, 1
      %s35 = scalar_select %p34, 0, %s33
      %s36 = sadd.s32 1, %s23
      %s37 = scalar_select %p34, %s36, %s23
      %p38 = scmp.ge.s32.totalorder %s37, 1
      %s39 = scalar_select %p38, 0, %s37
      %s40 = sadd.s32 1, %s22
      %s41 = scalar_select %p38, %s40, %s22
      %p42 = scmp.ge.s32.totalorder %s41, 1
      %s43 = scalar_select %p42, 0, %s41
      %s44 = sadd.s32 1, %s21
      %s45 = scalar_select %p42, %s44, %s21
      %p46 = scmp.ge.s32.totalorder %s45, 2
      %s47 = scalar_select %p46, 0, %s45
      %s48 = ssub.s32 %s21, %s47
      %s49 = ssub.s32 %s22, %s43
      %s50 = sor.u32 %s48, %s49
      %s51 = ssub.s32 %s24, %s35
      %s52 = sor.u32 %s50, %s51
      %p53 = scmp.eq.s32.totalorder %s52, 0
      %s55 = sadd.s32 %s54, 1
      %s56 = scalar_select %p53, %s54, %s55
      %p59 = pneg %p53
      %p60 = scmp.eq.s32.totalorder %s14, 1
      %p61 = por %p59, %p60
      %p62 = scmp.ne.s32.totalorder %s54, %s57
      %p63 = scmp.eq.s32.totalorder %s14, 0
      %p64 = por %p62, %p63
      %p65 = scmp.ne.s32.totalorder %s54, %s57
      %p66 = scmp.eq.s32.totalorder %s19, 1
      %p67 = por %p65, %p66
      %p68 = scmp.ne.s32.totalorder %s57, %s58
      %p69 = scmp.eq.s32.totalorder %s19, 0
      %p70 = por %p68, %p69
      %p71 = scmp.ne.s32.totalorder %s57, %s58
      %p72 = scmp.eq.s32.totalorder %s20, 1
      %p73 = por %p71, %p72
      %p75 = scmp.ne.s32.totalorder %s58, %s74
      %p76 = scmp.eq.s32.totalorder %s20, 0
      %p77 = por %p75, %p76
      %s78 = ssub.s32 %s24, %s35
      %s79 = ssub.s32 %s23, %s39
      %s80 = sor.u32 %s78, %s79
      %p81 = scmp.eq.s32.totalorder %s80, 0
      %s83 = sadd.s32 %s82, 1
      %s84 = scalar_select %p81, %s82, %s83
      %p87 = pneg %p81
      %p88 = scmp.eq.s32.totalorder %s14, 1
      %p89 = por %p87, %p88
      %p90 = scmp.ne.s32.totalorder %s82, %s85
      %p91 = scmp.eq.s32.totalorder %s14, 0
      %p92 = por %p90, %p91
      %p93 = scmp.ne.s32.totalorder %s82, %s85
      %p94 = scmp.eq.s32.totalorder %s19, 1
      %p95 = por %p93, %p94
      %p96 = scmp.ne.s32.totalorder %s85, %s86
      %p97 = scmp.eq.s32.totalorder %s19, 0
      %p98 = por %p96, %p97
      %p99 = scmp.ne.s32.totalorder %s85, %s86
      %p100 = scmp.eq.s32.totalorder %s20, 1
      %p101 = por %p99, %p100
      %p103 = scmp.ne.s32.totalorder %s86, %s102
      %p104 = scmp.eq.s32.totalorder %s20, 0
      %p105 = por %p103, %p104
      %s106 = ssub.s32 %s23, %s39
      %p107 = scmp.eq.s32.totalorder %s106, 0
      %s109 = sadd.s32 %s108, 1
      %s110 = scalar_select %p107, %s108, %s109
      %p113 = pneg %p107
      %p114 = scmp.eq.s32.totalorder %s14, 1
      %p115 = por %p113, %p114
      %p116 = scmp.ne.s32.totalorder %s108, %s111
      %p117 = scmp.eq.s32.totalorder %s14, 0
      %p118 = por %p116, %p117
      %p119 = scmp.ne.s32.totalorder %s108, %s111
      %p120 = scmp.eq.s32.totalorder %s19, 1
      %p121 = por %p119, %p120
      %p122 = scmp.ne.s32.totalorder %s111, %s112
      %p123 = scmp.eq.s32.totalorder %s19, 0
      %p124 = por %p122, %p123
      %p125 = scmp.ne.s32.totalorder %s111, %s112
      %p126 = scmp.eq.s32.totalorder %s20, 1
      %p127 = por %p125, %p126
      %p129 = scmp.ne.s32.totalorder %s112, %s128
      %p130 = scmp.eq.s32.totalorder %s20, 0
      %p131 = por %p129, %p130
      %s132 = ssub.s32 %s23, %s39
      %p133 = scmp.eq.s32.totalorder %s132, 0
      %s135 = sadd.s32 %s134, 1
      %s136 = scalar_select %p133, %s134, %s135
      %p139 = pneg %p133
      %p140 = scmp.eq.s32.totalorder %s14, 1
      %p141 = por %p139, %p140
      %p142 = scmp.ne.s32.totalorder %s134, %s137
      %p143 = scmp.eq.s32.totalorder %s14, 0
      %p144 = por %p142, %p143
      %p145 = scmp.ne.s32.totalorder %s134, %s137
      %p146 = scmp.eq.s32.totalorder %s19, 1
      %p147 = por %p145, %p146
      %p148 = scmp.ne.s32.totalorder %s137, %s138
      %p149 = scmp.eq.s32.totalorder %s19, 0
      %p150 = por %p148, %p149
      %p151 = scmp.ne.s32.totalorder %s137, %s138
      %p152 = scmp.eq.s32.totalorder %s20, 1
      %p153 = por %p151, %p152
      %p155 = scmp.ne.s32.totalorder %s138, %s154
      %p156 = scmp.eq.s32.totalorder %s20, 0
      %p157 = por %p155, %p156
      %s158 = ssub.s32 %s21, %s47
      %s159 = ssub.s32 %s22, %s43
      %s160 = sor.u32 %s158, %s159
      %s161 = ssub.s32 %s23, %s39
      %s162 = sor.u32 %s160, %s161
      %p163 = scmp.eq.s32.totalorder %s162, 0
      %s165 = sadd.s32 %s164, 1
      %s166 = scalar_select %p163, %s164, %s165
      %p169 = pneg %p163
      %p170 = scmp.eq.s32.totalorder %s14, 1
      %p171 = por %p169, %p170
      %p172 = scmp.ne.s32.totalorder %s164, %s167
      %p173 = scmp.eq.s32.totalorder %s14, 0
      %p174 = por %p172, %p173
      %p175 = scmp.ne.s32.totalorder %s164, %s167
      %p176 = scmp.eq.s32.totalorder %s19, 1
      %p177 = por %p175, %p176
      %p178 = scmp.ne.s32.totalorder %s167, %s168
      %p179 = scmp.eq.s32.totalorder %s19, 0
      %p180 = por %p178, %p179
      %p181 = scmp.ne.s32.totalorder %s167, %s168
      %p182 = scmp.eq.s32.totalorder %s20, 1
      %p183 = por %p181, %p182
      %p185 = scmp.ne.s32.totalorder %s168, %s184
      %p186 = scmp.eq.s32.totalorder %s20, 0
      %p187 = por %p185, %p186
      %s188 = ssub.s32 %s21, %s47
      %s189 = ssub.s32 %s22, %s43
      %s190 = sor.u32 %s188, %s189
      %s191 = ssub.s32 %s23, %s39
      %s192 = sor.u32 %s190, %s191
      %p193 = scmp.eq.s32.totalorder %s192, 0
      %s195 = sadd.s32 %s194, 1
      %s196 = scalar_select %p193, %s194, %s195
      %p199 = pneg %p193
      %p200 = scmp.eq.s32.totalorder %s14, 1
      %p201 = por %p199, %p200
      %p202 = scmp.ne.s32.totalorder %s194, %s197
      %p203 = scmp.eq.s32.totalorder %s14, 0
      %p204 = por %p202, %p203
      %p205 = scmp.ne.s32.totalorder %s194, %s197
      %p206 = scmp.eq.s32.totalorder %s19, 1
      %p207 = por %p205, %p206
      %p208 = scmp.ne.s32.totalorder %s197, %s198
      %p209 = scmp.eq.s32.totalorder %s19, 0
      %p210 = por %p208, %p209
      %p211 = scmp.ne.s32.totalorder %s197, %s198
      %p212 = scmp.eq.s32.totalorder %s20, 1
      %p213 = por %p211, %p212
      %p215 = scmp.ne.s32.totalorder %s198, %s214
      %p216 = scmp.eq.s32.totalorder %s20, 0
      %p217 = por %p215, %p216
      %p218 = scmp.le.s32.totalorder 1, %s14
      %p219 = scmp.lt.s32.totalorder %s14, 3
      %p220 = pnand %p218, %p219
      %p221 = pneg %p220
      // Predicated region
      $region9: #{basic_block_fwd.5} parent=5 // pred_check
        _
      $region10: #{basic_block_fwd.5} parent=5 // pred_check_branch
        %223 = sbr.rel (%p220) target = $region12
      $region11: #{basic_block_fwd.5} parent=5 // pred_region
        %s224 = ssub.s32 %s14, 1
        // Predicated region
        $region13: #{basic_block_fwd.5} parent=11 // pred_check
          %p225 = pneg %p98
        $region14: #{basic_block_fwd.5} parent=11 // pred_check_branch
          %227 = sbr.rel (%p225) target = $region16
        $region15: #{basic_block_fwd.5} parent=11 // pred_region
          %p228 = scmp.lt.s32.totalorder %s28, 0
          %s229 = scalar_select %p228, %s28, 0
          %p230 = scmp.lt.s32.totalorder %s27, 0
          %s231 = scalar_select %p230, %s27, 0
          %s232 = smul.addr %s229, 72
          %s233 = sadd.s32 %s231, %s232
          %s234 = smul.addr %s233, 4
          %s235 = scalar_lea.vmem %s1, %s234
        $region16: #{basic_block_fwd.5} parent=11 // pred_fallthru
          _
        // Predicated region
        $region17: #{basic_block_fwd.5} parent=11 // pred_check
          %p236 = pneg %p124
        $region18: #{basic_block_fwd.5} parent=11 // pred_check_branch
          %238 = sbr.rel (%p236) target = $region20
        $region19: #{basic_block_fwd.5} parent=11 // pred_region
          %p239 = scmp.lt.s32.totalorder %s27, 0
          %s240 = scalar_select %p239, %s27, 0
          %s241 = scalar_lea.vmem %s2, %s240
        $region20: #{basic_block_fwd.5} parent=11 // pred_fallthru
          _
        // Predicated region
        $region21: #{basic_block_fwd.5} parent=11 // pred_check
          %p242 = pneg %p150
        $region22: #{basic_block_fwd.5} parent=11 // pred_check_branch
          %244 = sbr.rel (%p242) target = $region24
        $region23: #{basic_block_fwd.5} parent=11 // pred_region
          %p245 = scmp.lt.s32.totalorder %s27, 0
          %s246 = scalar_select %p245, %s27, 0
          %s247 = scalar_lea.vmem %s3, %s246
        $region24: #{basic_block_fwd.5} parent=11 // pred_fallthru
          _
      $region12: #{basic_block_fwd.5} parent=5 // pred_fallthru
        _
      %p248 = scmp.lt.s32.totalorder %s14, 2
      // Predicated region
      $region25: #{basic_block_fwd.5} parent=5 // pred_check
        %p249 = pneg %p248
      $region26: #{basic_block_fwd.5} parent=5 // pred_check_branch
        %251 = sbr.rel (%p249) target = $region28
      $region27: #{basic_block_fwd.5} parent=5 // pred_region
        // Predicated region
        $region29: #{basic_block_fwd.5} parent=27 // pred_check
          %p252 = pneg %p64
        $region30: #{basic_block_fwd.5} parent=27 // pred_check_branch
          %254 = sbr.rel (%p252) target = $region32
        $region31: #{basic_block_fwd.5} parent=27 // pred_region
          %p255 = scmp.lt.s32.totalorder %s21, 1
          %s256 = scalar_select %p255, %s21, 1
          %p257 = scmp.lt.s32.totalorder %s22, 0
          %s258 = scalar_select %p257, %s22, 0
          %p259 = scmp.lt.s32.totalorder %s24, 0
          %s260 = scalar_select %p259, %s24, 0
          %s261 = smul.addr %s258, 20
          %s262 = sadd.s32 %s260, %s261
          %s263 = smul.addr %s256, 20
          %s264 = sadd.s32 %s262, %s263
          %s265 = smul.addr %s264, 4
          %s266 = scalar_lea.vmem %s0, %s265
        $region32: #{basic_block_fwd.5} parent=27 // pred_fallthru
          _
        // Predicated region
        $region33: #{basic_block_fwd.5} parent=27 // pred_check
          %p267 = pneg %p174
        $region34: #{basic_block_fwd.5} parent=27 // pred_check_branch
          %269 = sbr.rel (%p267) target = $region36
        $region35: #{basic_block_fwd.5} parent=27 // pred_region
          %s270 = smul.u32 8, %s22
          %p271 = scmp.lt.s32.totalorder %s21, 1
          %s272 = scalar_select %p271, %s21, 1
          %p273 = scmp.lt.s32.totalorder %s270, 7
          %s274 = scalar_select %p273, %s270, 7
          %p275 = scmp.lt.s32.totalorder %s23, 0
          %s276 = scalar_select %p275, %s23, 0
          %s277 = sadd.s32 %s276, %s274
          %s278 = smul.addr %s272, 8
          %s279 = sadd.s32 %s277, %s278
          %s280 = smul.addr %s279, 4
          %s281 = scalar_lea.vmem %s4, %s280
          %s282 = smul.u32 8, %s22
        $region36: #{basic_block_fwd.5} parent=27 // pred_fallthru
          _
      $region28: #{basic_block_fwd.5} parent=5 // pred_fallthru
        _
      %p283 = scmp.le.s32.totalorder 1, %s14
      %p284 = scmp.lt.s32.totalorder %s14, 3
      %p285 = pnand %p283, %p284
      %p286 = pneg %p285
      // Predicated region
      $region37: #{basic_block_fwd.5} parent=5 // pred_check
        _
      $region38: #{basic_block_fwd.5} parent=5 // pred_check_branch
        %288 = sbr.rel (%p285) target = $region40
      $region39: #{basic_block_fwd.5} parent=5 // pred_region
        %s289 = ssub.s32 %s14, 1
        %p290 = scmp.lt.s32.totalorder %s25, 1
        %s291 = scalar_select %p290, %s25, 1
        %p292 = scmp.lt.s32.totalorder %s26, 0
        %s293 = scalar_select %p292, %s26, 0
        %p294 = scmp.lt.s32.totalorder %s28, 0
        %s295 = scalar_select %p294, %s28, 0
        %s296 = smul.addr %s293, 20
        %s297 = sadd.s32 %s295, %s296
        %s298 = smul.addr %s291, 20
        %s299 = sadd.s32 %s297, %s298
        %s300 = smul.addr %s299, 4
        %s301 = scalar_lea.vmem %s0, %s300
        %p302 = pneg %p70
        %p303 = pneg %p67
        %p304 = scmp.lt.s32.totalorder %s28, 0
        %s305 = scalar_select %p304, %s28, 0
        %p306 = scmp.lt.s32.totalorder %s27, 0
        %s307 = scalar_select %p306, %s27, 0
        %s308 = smul.addr %s305, 72
        %s309 = sadd.s32 %s307, %s308
        %s310 = smul.addr %s309, 4
        %s311 = scalar_lea.vmem %s1, %s310
        %p312 = pneg %p98
        %p313 = pneg %p95
        %p314 = scmp.lt.s32.totalorder %s27, 0
        %s315 = scalar_select %p314, %s27, 0
        %s316 = scalar_lea.vmem %s2, %s315
        %p317 = pneg %p124
        %p318 = pneg %p121
        %p319 = scmp.lt.s32.totalorder %s27, 0
        %s320 = scalar_select %p319, %s27, 0
        %s321 = scalar_lea.vmem %s3, %s320
        %p322 = pneg %p150
        %p323 = pneg %p147
        %s324 = smul.u32 8, %s26
        %p325 = scmp.lt.s32.totalorder %s25, 1
        %s326 = scalar_select %p325, %s25, 1
        %p327 = scmp.lt.s32.totalorder %s324, 7
        %s328 = scalar_select %p327, %s324, 7
        %p329 = scmp.lt.s32.totalorder %s27, 0
        %s330 = scalar_select %p329, %s27, 0
        %s331 = sadd.s32 %s330, %s328
        %s332 = smul.addr %s326, 8
        %s333 = sadd.s32 %s331, %s332
        %s334 = smul.addr %s333, 4
        %s335 = scalar_lea.vmem %s4, %s334
        %p336 = pneg %p180
        %p337 = pneg %p177
        %p338 = pneg %p210
        %p339 = pneg %p207
        %s340 = sand.u32 %s197, 1
        %s341 = scalar_lea.sflag [#allocation4], %s340
        %s342 = sand.u32 %s197, 1
        %s343 = smul.addr %s342, 64
        %s344 = scalar_lea.vmem [#allocation3], %s343
        %p345 = scmp.lt.s32.totalorder %s25, 1
        %s346 = scalar_select %p345, %s25, 1
        %p347 = scmp.lt.s32.totalorder %s26, 0
        %s348 = scalar_select %p347, %s26, 0
        %p349 = scmp.lt.s32.totalorder %s28, 0
        %s350 = scalar_select %p349, %s28, 0
        %s351 = smul.addr %s348, 20
        %s352 = sadd.s32 %s350, %s351
        %s353 = smul.addr %s346, 20
        %s354 = sadd.s32 %s352, %s353
        %s355 = smul.addr %s354, 4
        %s356 = scalar_lea.vmem %s0, %s355
        %p357 = scmp.lt.s32.totalorder %s28, 0
        %s358 = scalar_select %p357, %s28, 0
        %p359 = scmp.lt.s32.totalorder %s27, 0
        %s360 = scalar_select %p359, %s27, 0
        %s361 = smul.addr %s358, 72
        %s362 = sadd.s32 %s360, %s361
        %s363 = smul.addr %s362, 4
        %s364 = scalar_lea.vmem %s1, %s363
        %p365 = scmp.lt.s32.totalorder %s27, 0
        %s366 = scalar_select %p365, %s27, 0
        %s367 = scalar_lea.vmem %s2, %s366
        %p368 = scmp.lt.s32.totalorder %s27, 0
        %s369 = scalar_select %p368, %s27, 0
        %s370 = scalar_lea.vmem %s3, %s369
        %s371 = smul.u32 8, %s26
        %p372 = scmp.lt.s32.totalorder %s25, 1
        %s373 = scalar_select %p372, %s25, 1
        %p374 = scmp.lt.s32.totalorder %s371, 7
        %s375 = scalar_select %p374, %s371, 7
        %p376 = scmp.lt.s32.totalorder %s27, 0
        %s377 = scalar_select %p376, %s27, 0
        %s378 = sadd.s32 %s377, %s375
        %s379 = smul.addr %s373, 8
        %s380 = sadd.s32 %s378, %s379
        %s381 = smul.addr %s380, 4
        %s382 = scalar_lea.vmem %s4, %s381
        %s383 = smul.u32 8, %s26
        %s384 = smul.u32 8, %s26
        %v386 = vld [vmem:[%s356] sm:$0xf]
        %v387 = vld [vmem:[%s356 + $0x8] sm:$0xf]
        %v388 = vld [vmem:[%s356 + $0x10] sm:$0xf]
        %v389 = vld [vmem:[%s356 + $0x18] sm:$0xf]
        %v390 = vld [vmem:[%s356 + $0x20] sm:$0xf]
        %v391 = vld [vmem:[%s356 + $0x28] sm:$0xf]
        %v392 = vld [vmem:[%s356 + $0x30] sm:$0xf]
        %v393 = vld [vmem:[%s356 + $0x38] sm:$0xf]
        %v402 = vunpack.c.l.b16 %v386
        %v403 = vunpack.c.l.b16 %v387
        %v404 = vunpack.c.l.b16 %v388
        %v405 = vunpack.c.l.b16 %v389
        %v406 = vunpack.c.l.b16 %v390
        %v407 = vunpack.c.l.b16 %v391
        %v408 = vunpack.c.l.b16 %v392
        %v409 = vunpack.c.l.b16 %v393
        %v410 = vpack.c.b16 %v403, %v402
        %v411 = vpack.c.b16 %v405, %v404
        %v412 = vpack.c.b16 %v407, %v406
        %v413 = vpack.c.b16 %v409, %v408
        %vm418 = vcmask 523264
        %419 = vst.msk [vmem:[#allocation2] sm:$0xff] %vm418, %v410
        %420 = vst.msk [vmem:[#allocation2 + $0x28] sm:$0xff] %vm418, %v411
        %421 = vst.msk [vmem:[#allocation2 + $0x50] sm:$0xff] %vm418, %v412
        %422 = vst.msk [vmem:[#allocation2 + $0x78] sm:$0xff] %vm418, %v413
        %v423 = vld [vmem:[%s356] sm:$0xf]
        %v424 = vld [vmem:[%s356 + $0x4] sm:$0x1]
        %v425 = vld [vmem:[%s356 + $0x8] sm:$0xf]
        %v426 = vld [vmem:[%s356 + $0xc] sm:$0x1]
        %v427 = vld [vmem:[%s356 + $0x10] sm:$0xf]
        %v428 = vld [vmem:[%s356 + $0x14] sm:$0x1]
        %v429 = vld [vmem:[%s356 + $0x18] sm:$0xf]
        %v430 = vld [vmem:[%s356 + $0x1c] sm:$0x1]
        %v431 = vld [vmem:[%s356 + $0x20] sm:$0xf]
        %v432 = vld [vmem:[%s356 + $0x24] sm:$0x1]
        %v433 = vld [vmem:[%s356 + $0x28] sm:$0xf]
        %v434 = vld [vmem:[%s356 + $0x2c] sm:$0x1]
        %v435 = vld [vmem:[%s356 + $0x30] sm:$0xf]
        %v436 = vld [vmem:[%s356 + $0x34] sm:$0x1]
        %v437 = vld [vmem:[%s356 + $0x38] sm:$0xf]
        %v438 = vld [vmem:[%s356 + $0x3c] sm:$0x1]
        %vm439 = vsmask.f32 3328
        %vm440 = vsmask.f32 7440
        %vm441 = vmor %vm439, %vm440
        %v443 = vshrl.u32 %v423, 16
        %v445 = vrot.slane %v443, 4
        %v446 = vshll.u32 %v423, 16
        %v448 = vrot.slane %v446, 5
        %v449 = vor.u32 %v445, %v448
        %v450 = vrot.slane %v449, 4
        %v452 = vshll.u32 %v424, 16
        %v454 = vrot.slane %v452, 5
        %v455 = vsel %vm441, %v450, %v454
        %v457 = vshrl.u32 %v425, 16
        %v459 = vrot.slane %v457, 4
        %v460 = vshll.u32 %v425, 16
        %v462 = vrot.slane %v460, 5
        %v463 = vor.u32 %v459, %v462
        %v464 = vrot.slane %v463, 4
        %v466 = vshll.u32 %v426, 16
        %v468 = vrot.slane %v466, 5
        %v469 = vsel %vm441, %v464, %v468
        %v471 = vshrl.u32 %v427, 16
        %v473 = vrot.slane %v471, 4
        %v474 = vshll.u32 %v427, 16
        %v476 = vrot.slane %v474, 5
        %v477 = vor.u32 %v473, %v476
        %v478 = vrot.slane %v477, 4
        %v480 = vshll.u32 %v428, 16
        %v482 = vrot.slane %v480, 5
        %v483 = vsel %vm441, %v478, %v482
        %v485 = vshrl.u32 %v429, 16
        %v487 = vrot.slane %v485, 4
        %v488 = vshll.u32 %v429, 16
        %v490 = vrot.slane %v488, 5
        %v491 = vor.u32 %v487, %v490
        %v492 = vrot.slane %v491, 4
        %v494 = vshll.u32 %v430, 16
        %v496 = vrot.slane %v494, 5
        %v497 = vsel %vm441, %v492, %v496
        %v499 = vshrl.u32 %v431, 16
        %v501 = vrot.slane %v499, 4
        %v502 = vshll.u32 %v431, 16
        %v504 = vrot.slane %v502, 5
        %v505 = vor.u32 %v501, %v504
        %v506 = vrot.slane %v505, 4
        %v508 = vshll.u32 %v432, 16
        %v510 = vrot.slane %v508, 5
        %v511 = vsel %vm441, %v506, %v510
        %v513 = vshrl.u32 %v433, 16
        %v515 = vrot.slane %v513, 4
        %v516 = vshll.u32 %v433, 16
        %v518 = vrot.slane %v516, 5
        %v519 = vor.u32 %v515, %v518
        %v520 = vrot.slane %v519, 4
        %v522 = vshll.u32 %v434, 16
        %v524 = vrot.slane %v522, 5
        %v525 = vsel %vm441, %v520, %v524
        %v527 = vshrl.u32 %v435, 16
        %v529 = vrot.slane %v527, 4
        %v530 = vshll.u32 %v435, 16
        %v532 = vrot.slane %v530, 5
        %v533 = vor.u32 %v529, %v532
        %v534 = vrot.slane %v533, 4
        %v536 = vshll.u32 %v436, 16
        %v538 = vrot.slane %v536, 5
        %v539 = vsel %vm441, %v534, %v538
        %v541 = vshrl.u32 %v437, 16
        %v543 = vrot.slane %v541, 4
        %v544 = vshll.u32 %v437, 16
        %v546 = vrot.slane %v544, 5
        %v547 = vor.u32 %v543, %v546
        %v548 = vrot.slane %v547, 4
        %v550 = vshll.u32 %v438, 16
        %v552 = vrot.slane %v550, 5
        %v553 = vsel %vm441, %v548, %v552
        %v554 = vunpack.c.l.b16 %v455
        %v555 = vunpack.c.l.b16 %v469
        %v556 = vunpack.c.l.b16 %v483
        %v557 = vunpack.c.l.b16 %v497
        %v558 = vunpack.c.l.b16 %v511
        %v559 = vunpack.c.l.b16 %v525
        %v560 = vunpack.c.l.b16 %v539
        %v561 = vunpack.c.l.b16 %v553
        %v562 = vpack.c.b16 %v555, %v554
        %v563 = vpack.c.b16 %v557, %v556
        %v564 = vpack.c.b16 %v559, %v558
        %v565 = vpack.c.b16 %v561, %v560
        %566 = vrot.lane.b32.xlu0 %v562, 64
        %v567 = vpop.permute.xlu0 %566
        %568 = vrot.lane.b32.xlu0 %v563, 64
        %v569 = vpop.permute.xlu0 %568
        %570 = vrot.lane.b32.xlu0 %v564, 64
        %v571 = vpop.permute.xlu0 %570
        %572 = vrot.lane.b32.xlu0 %v565, 64
        %v573 = vpop.permute.xlu0 %572
        %vm578 = vcmask 1048064
        %579 = vst.msk [vmem:[#allocation2] sm:$0xff] %vm578, %v567
        %580 = vst.msk [vmem:[#allocation2 + $0x28] sm:$0xff] %vm578, %v569
        %581 = vst.msk [vmem:[#allocation2 + $0x50] sm:$0xff] %vm578, %v571
        %582 = vst.msk [vmem:[#allocation2 + $0x78] sm:$0xff] %vm578, %v573
        %v583 = vld [vmem:[%s356] sm:$0xe]
        %v584 = vld [vmem:[%s356 + $0x4] sm:$0x1]
        %v585 = vld [vmem:[%s356 + $0x8] sm:$0xe]
        %v586 = vld [vmem:[%s356 + $0xc] sm:$0x1]
        %v587 = vld [vmem:[%s356 + $0x10] sm:$0xe]
        %v588 = vld [vmem:[%s356 + $0x14] sm:$0x1]
        %v589 = vld [vmem:[%s356 + $0x18] sm:$0xe]
        %v590 = vld [vmem:[%s356 + $0x1c] sm:$0x1]
        %v591 = vld [vmem:[%s356 + $0x20] sm:$0xe]
        %v592 = vld [vmem:[%s356 + $0x24] sm:$0x1]
        %v593 = vld [vmem:[%s356 + $0x28] sm:$0xe]
        %v594 = vld [vmem:[%s356 + $0x2c] sm:$0x1]
        %v595 = vld [vmem:[%s356 + $0x30] sm:$0xe]
        %v596 = vld [vmem:[%s356 + $0x34] sm:$0x1]
        %v597 = vld [vmem:[%s356 + $0x38] sm:$0xe]
        %v598 = vld [vmem:[%s356 + $0x3c] sm:$0x1]
        %vm615 = vcmask 1042432
        %vm616 = vcmask 1046532
        %vm617 = vmor %vm615, %vm616
        %v618 = vrot.slane %v583, 5
        %v619 = vrot.slane %v618, 4
        %v620 = vrot.slane %v584, 5
        %v621 = vsel %vm617, %v619, %v620
        %v622 = vrot.slane %v585, 5
        %v623 = vrot.slane %v622, 4
        %v624 = vrot.slane %v586, 5
        %v625 = vsel %vm617, %v623, %v624
        %v626 = vrot.slane %v587, 5
        %v627 = vrot.slane %v626, 4
        %v628 = vrot.slane %v588, 5
        %v629 = vsel %vm617, %v627, %v628
        %v630 = vrot.slane %v589, 5
        %v631 = vrot.slane %v630, 4
        %v632 = vrot.slane %v590, 5
        %v633 = vsel %vm617, %v631, %v632
        %v634 = vrot.slane %v591, 5
        %v635 = vrot.slane %v634, 4
        %v636 = vrot.slane %v592, 5
        %v637 = vsel %vm617, %v635, %v636
        %v638 = vrot.slane %v593, 5
        %v639 = vrot.slane %v638, 4
        %v640 = vrot.slane %v594, 5
        %v641 = vsel %vm617, %v639, %v640
        %v642 = vrot.slane %v595, 5
        %v643 = vrot.slane %v642, 4
        %v644 = vrot.slane %v596, 5
        %v645 = vsel %vm617, %v643, %v644
        %v646 = vrot.slane %v597, 5
        %v647 = vrot.slane %v646, 4
        %v648 = vrot.slane %v598, 5
        %v649 = vsel %vm617, %v647, %v648
        %v650 = vunpack.c.l.b16 %v621
        %v651 = vunpack.c.l.b16 %v625
        %v652 = vunpack.c.l.b16 %v629
        %v653 = vunpack.c.l.b16 %v633
        %v654 = vunpack.c.l.b16 %v637
        %v655 = vunpack.c.l.b16 %v641
        %v656 = vunpack.c.l.b16 %v645
        %v657 = vunpack.c.l.b16 %v649
        %v658 = vpack.c.b16 %v651, %v650
        %v659 = vpack.c.b16 %v653, %v652
        %v660 = vpack.c.b16 %v655, %v654
        %v661 = vpack.c.b16 %v657, %v656
        %666 = vst.msk [vmem:[#allocation2 + $0x8] sm:$0xff] %vm418, %v658
        %667 = vst.msk [vmem:[#allocation2 + $0x30] sm:$0xff] %vm418, %v659
        %668 = vst.msk [vmem:[#allocation2 + $0x58] sm:$0xff] %vm418, %v660
        %669 = vst.msk [vmem:[#allocation2 + $0x80] sm:$0xff] %vm418, %v661
        %s670 = scalar_lea.vmem %s356, 8
        %v671 = vld [vmem:[%s670] sm:$0xf]
        %v672 = vld [vmem:[%s670 + $0x8] sm:$0xf]
        %v673 = vld [vmem:[%s670 + $0x10] sm:$0xf]
        %v674 = vld [vmem:[%s670 + $0x18] sm:$0xf]
        %v675 = vld [vmem:[%s670 + $0x20] sm:$0xf]
        %v676 = vld [vmem:[%s670 + $0x28] sm:$0xf]
        %v677 = vld [vmem:[%s670 + $0x30] sm:$0xf]
        %v678 = vld [vmem:[%s670 + $0x38] sm:$0xf]
        %v687 = vunpack.c.l.b16 %v671
        %v688 = vunpack.c.l.b16 %v672
        %v689 = vunpack.c.l.b16 %v673
        %v690 = vunpack.c.l.b16 %v674
        %v691 = vunpack.c.l.b16 %v675
        %v692 = vunpack.c.l.b16 %v676
        %v693 = vunpack.c.l.b16 %v677
        %v694 = vunpack.c.l.b16 %v678
        %v695 = vpack.c.b16 %v688, %v687
        %v696 = vpack.c.b16 %v690, %v689
        %v697 = vpack.c.b16 %v692, %v691
        %v698 = vpack.c.b16 %v694, %v693
        %699 = vrot.lane.b32.xlu0 %v695, 64
        %v700 = vpop.permute.xlu0 %699
        %701 = vrot.lane.b32.xlu0 %v696, 64
        %v702 = vpop.permute.xlu0 %701
        %703 = vrot.lane.b32.xlu0 %v697, 64
        %v704 = vpop.permute.xlu0 %703
        %705 = vrot.lane.b32.xlu0 %v698, 64
        %v706 = vpop.permute.xlu0 %705
        %711 = vst.msk [vmem:[#allocation2 + $0x8] sm:$0xff] %vm578, %v700
        %712 = vst.msk [vmem:[#allocation2 + $0x30] sm:$0xff] %vm578, %v702
        %713 = vst.msk [vmem:[#allocation2 + $0x58] sm:$0xff] %vm578, %v704
        %714 = vst.msk [vmem:[#allocation2 + $0x80] sm:$0xff] %vm578, %v706
        %v715 = vld [vmem:[%s670] sm:$0xf]
        %v716 = vld [vmem:[%s670 + $0x4] sm:$0x1]
        %v717 = vld [vmem:[%s670 + $0x8] sm:$0xf]
        %v718 = vld [vmem:[%s670 + $0xc] sm:$0x1]
        %v719 = vld [vmem:[%s670 + $0x10] sm:$0xf]
        %v720 = vld [vmem:[%s670 + $0x14] sm:$0x1]
        %v721 = vld [vmem:[%s670 + $0x18] sm:$0xf]
        %v722 = vld [vmem:[%s670 + $0x1c] sm:$0x1]
        %v723 = vld [vmem:[%s670 + $0x20] sm:$0xf]
        %v724 = vld [vmem:[%s670 + $0x24] sm:$0x1]
        %v725 = vld [vmem:[%s670 + $0x28] sm:$0xf]
        %v726 = vld [vmem:[%s670 + $0x2c] sm:$0x1]
        %v727 = vld [vmem:[%s670 + $0x30] sm:$0xf]
        %v728 = vld [vmem:[%s670 + $0x34] sm:$0x1]
        %v729 = vld [vmem:[%s670 + $0x38] sm:$0xf]
        %v730 = vld [vmem:[%s670 + $0x3c] sm:$0x1]
        %v732 = vshrl.u32 %v715, 16
        %v734 = vrot.slane %v732, 4
        %v735 = vshll.u32 %v715, 16
        %v737 = vrot.slane %v735, 5
        %v738 = vor.u32 %v734, %v737
        %v739 = vrot.slane %v738, 4
        %v741 = vshll.u32 %v716, 16
        %v743 = vrot.slane %v741, 5
        %v744 = vsel %vm441, %v739, %v743
        %v746 = vshrl.u32 %v717, 16
        %v748 = vrot.slane %v746, 4
        %v749 = vshll.u32 %v717, 16
        %v751 = vrot.slane %v749, 5
        %v752 = vor.u32 %v748, %v751
        %v753 = vrot.slane %v752, 4
        %v755 = vshll.u32 %v718, 16
        %v757 = vrot.slane %v755, 5
        %v758 = vsel %vm441, %v753, %v757
        %v760 = vshrl.u32 %v719, 16
        %v762 = vrot.slane %v760, 4
        %v763 = vshll.u32 %v719, 16
        %v765 = vrot.slane %v763, 5
        %v766 = vor.u32 %v762, %v765
        %v767 = vrot.slane %v766, 4
        %v769 = vshll.u32 %v720, 16
        %v771 = vrot.slane %v769, 5
        %v772 = vsel %vm441, %v767, %v771
        %v774 = vshrl.u32 %v721, 16
        %v776 = vrot.slane %v774, 4
        %v777 = vshll.u32 %v721, 16
        %v779 = vrot.slane %v777, 5
        %v780 = vor.u32 %v776, %v779
        %v781 = vrot.slane %v780, 4
        %v783 = vshll.u32 %v722, 16
        %v785 = vrot.slane %v783, 5
        %v786 = vsel %vm441, %v781, %v785
        %v788 = vshrl.u32 %v723, 16
        %v790 = vrot.slane %v788, 4
        %v791 = vshll.u32 %v723, 16
        %v793 = vrot.slane %v791, 5
        %v794 = vor.u32 %v790, %v793
        %v795 = vrot.slane %v794, 4
        %v797 = vshll.u32 %v724, 16
        %v799 = vrot.slane %v797, 5
        %v800 = vsel %vm441, %v795, %v799
        %v802 = vshrl.u32 %v725, 16
        %v804 = vrot.slane %v802, 4
        %v805 = vshll.u32 %v725, 16
        %v807 = vrot.slane %v805, 5
        %v808 = vor.u32 %v804, %v807
        %v809 = vrot.slane %v808, 4
        %v811 = vshll.u32 %v726, 16
        %v813 = vrot.slane %v811, 5
        %v814 = vsel %vm441, %v809, %v813
        %v816 = vshrl.u32 %v727, 16
        %v818 = vrot.slane %v816, 4
        %v819 = vshll.u32 %v727, 16
        %v821 = vrot.slane %v819, 5
        %v822 = vor.u32 %v818, %v821
        %v823 = vrot.slane %v822, 4
        %v825 = vshll.u32 %v728, 16
        %v827 = vrot.slane %v825, 5
        %v828 = vsel %vm441, %v823, %v827
        %v830 = vshrl.u32 %v729, 16
        %v832 = vrot.slane %v830, 4
        %v833 = vshll.u32 %v729, 16
        %v835 = vrot.slane %v833, 5
        %v836 = vor.u32 %v832, %v835
        %v837 = vrot.slane %v836, 4
        %v839 = vshll.u32 %v730, 16
        %v841 = vrot.slane %v839, 5
        %v842 = vsel %vm441, %v837, %v841
        %v843 = vunpack.c.l.b16 %v744
        %v844 = vunpack.c.l.b16 %v758
        %v845 = vunpack.c.l.b16 %v772
        %v846 = vunpack.c.l.b16 %v786
        %v847 = vunpack.c.l.b16 %v800
        %v848 = vunpack.c.l.b16 %v814
        %v849 = vunpack.c.l.b16 %v828
        %v850 = vunpack.c.l.b16 %v842
        %v851 = vpack.c.b16 %v844, %v843
        %v852 = vpack.c.b16 %v846, %v845
        %v853 = vpack.c.b16 %v848, %v847
        %v854 = vpack.c.b16 %v850, %v849
        %859 = vst.msk [vmem:[#allocation2 + $0x10] sm:$0xff] %vm418, %v851
        %860 = vst.msk [vmem:[#allocation2 + $0x38] sm:$0xff] %vm418, %v852
        %861 = vst.msk [vmem:[#allocation2 + $0x60] sm:$0xff] %vm418, %v853
        %862 = vst.msk [vmem:[#allocation2 + $0x88] sm:$0xff] %vm418, %v854
        %v863 = vld [vmem:[%s670] sm:$0xe]
        %v864 = vld [vmem:[%s670 + $0x4] sm:$0x1]
        %v865 = vld [vmem:[%s670 + $0x8] sm:$0xe]
        %v866 = vld [vmem:[%s670 + $0xc] sm:$0x1]
        %v867 = vld [vmem:[%s670 + $0x10] sm:$0xe]
        %v868 = vld [vmem:[%s670 + $0x14] sm:$0x1]
        %v869 = vld [vmem:[%s670 + $0x18] sm:$0xe]
        %v870 = vld [vmem:[%s670 + $0x1c] sm:$0x1]
        %v871 = vld [vmem:[%s670 + $0x20] sm:$0xe]
        %v872 = vld [vmem:[%s670 + $0x24] sm:$0x1]
        %v873 = vld [vmem:[%s670 + $0x28] sm:$0xe]
        %v874 = vld [vmem:[%s670 + $0x2c] sm:$0x1]
        %v875 = vld [vmem:[%s670 + $0x30] sm:$0xe]
        %v876 = vld [vmem:[%s670 + $0x34] sm:$0x1]
        %v877 = vld [vmem:[%s670 + $0x38] sm:$0xe]
        %v878 = vld [vmem:[%s670 + $0x3c] sm:$0x1]
        %v895 = vrot.slane %v863, 5
        %v896 = vrot.slane %v895, 4
        %v897 = vrot.slane %v864, 5
        %v898 = vsel %vm617, %v896, %v897
        %v899 = vrot.slane %v865, 5
        %v900 = vrot.slane %v899, 4
        %v901 = vrot.slane %v866, 5
        %v902 = vsel %vm617, %v900, %v901
        %v903 = vrot.slane %v867, 5
        %v904 = vrot.slane %v903, 4
        %v905 = vrot.slane %v868, 5
        %v906 = vsel %vm617, %v904, %v905
        %v907 = vrot.slane %v869, 5
        %v908 = vrot.slane %v907, 4
        %v909 = vrot.slane %v870, 5
        %v910 = vsel %vm617, %v908, %v909
        %v911 = vrot.slane %v871, 5
        %v912 = vrot.slane %v911, 4
        %v913 = vrot.slane %v872, 5
        %v914 = vsel %vm617, %v912, %v913
        %v915 = vrot.slane %v873, 5
        %v916 = vrot.slane %v915, 4
        %v917 = vrot.slane %v874, 5
        %v918 = vsel %vm617, %v916, %v917
        %v919 = vrot.slane %v875, 5
        %v920 = vrot.slane %v919, 4
        %v921 = vrot.slane %v876, 5
        %v922 = vsel %vm617, %v920, %v921
        %v923 = vrot.slane %v877, 5
        %v924 = vrot.slane %v923, 4
        %v925 = vrot.slane %v878, 5
        %v926 = vsel %vm617, %v924, %v925
        %v927 = vunpack.c.l.b16 %v898
        %v928 = vunpack.c.l.b16 %v902
        %v929 = vunpack.c.l.b16 %v906
        %v930 = vunpack.c.l.b16 %v910
        %v931 = vunpack.c.l.b16 %v914
        %v932 = vunpack.c.l.b16 %v918
        %v933 = vunpack.c.l.b16 %v922
        %v934 = vunpack.c.l.b16 %v926
        %v935 = vpack.c.b16 %v928, %v927
        %v936 = vpack.c.b16 %v930, %v929
        %v937 = vpack.c.b16 %v932, %v931
        %v938 = vpack.c.b16 %v934, %v933
        %939 = vrot.lane.b32.xlu0 %v935, 64
        %v940 = vpop.permute.xlu0 %939
        %941 = vrot.lane.b32.xlu0 %v936, 64
        %v942 = vpop.permute.xlu0 %941
        %943 = vrot.lane.b32.xlu0 %v937, 64
        %v944 = vpop.permute.xlu0 %943
        %945 = vrot.lane.b32.xlu0 %v938, 64
        %v946 = vpop.permute.xlu0 %945
        %951 = vst.msk [vmem:[#allocation2 + $0x10] sm:$0xff] %vm578, %v940
        %952 = vst.msk [vmem:[#allocation2 + $0x38] sm:$0xff] %vm578, %v942
        %953 = vst.msk [vmem:[#allocation2 + $0x60] sm:$0xff] %vm578, %v944
        %954 = vst.msk [vmem:[#allocation2 + $0x88] sm:$0xff] %vm578, %v946
        %s955 = scalar_lea.vmem %s356, 16
        %v956 = vld [vmem:[%s955] sm:$0xf]
        %v957 = vld [vmem:[%s955 + $0x8] sm:$0xf]
        %v958 = vld [vmem:[%s955 + $0x10] sm:$0xf]
        %v959 = vld [vmem:[%s955 + $0x18] sm:$0xf]
        %v960 = vld [vmem:[%s955 + $0x20] sm:$0xf]
        %v961 = vld [vmem:[%s955 + $0x28] sm:$0xf]
        %v962 = vld [vmem:[%s955 + $0x30] sm:$0xf]
        %v963 = vld [vmem:[%s955 + $0x38] sm:$0xf]
        %v972 = vunpack.c.l.b16 %v956
        %v973 = vunpack.c.l.b16 %v957
        %v974 = vunpack.c.l.b16 %v958
        %v975 = vunpack.c.l.b16 %v959
        %v976 = vunpack.c.l.b16 %v960
        %v977 = vunpack.c.l.b16 %v961
        %v978 = vunpack.c.l.b16 %v962
        %v979 = vunpack.c.l.b16 %v963
        %v980 = vpack.c.b16 %v973, %v972
        %v981 = vpack.c.b16 %v975, %v974
        %v982 = vpack.c.b16 %v977, %v976
        %v983 = vpack.c.b16 %v979, %v978
        %988 = vst.msk [vmem:[#allocation2 + $0x18] sm:$0xff] %vm418, %v980
        %989 = vst.msk [vmem:[#allocation2 + $0x40] sm:$0xff] %vm418, %v981
        %990 = vst.msk [vmem:[#allocation2 + $0x68] sm:$0xff] %vm418, %v982
        %991 = vst.msk [vmem:[#allocation2 + $0x90] sm:$0xff] %vm418, %v983
        %v992 = vld [vmem:[%s955] sm:$0xf]
        %v993 = vld [vmem:[%s955 + $0x4] sm:$0x1]
        %v994 = vld [vmem:[%s955 + $0x8] sm:$0xf]
        %v995 = vld [vmem:[%s955 + $0xc] sm:$0x1]
        %v996 = vld [vmem:[%s955 + $0x10] sm:$0xf]
        %v997 = vld [vmem:[%s955 + $0x14] sm:$0x1]
        %v998 = vld [vmem:[%s955 + $0x18] sm:$0xf]
        %v999 = vld [vmem:[%s955 + $0x1c] sm:$0x1]
        %v1000 = vld [vmem:[%s955 + $0x20] sm:$0xf]
        %v1001 = vld [vmem:[%s955 + $0x24] sm:$0x1]
        %v1002 = vld [vmem:[%s955 + $0x28] sm:$0xf]
        %v1003 = vld [vmem:[%s955 + $0x2c] sm:$0x1]
        %v1004 = vld [vmem:[%s955 + $0x30] sm:$0xf]
        %v1005 = vld [vmem:[%s955 + $0x34] sm:$0x1]
        %v1006 = vld [vmem:[%s955 + $0x38] sm:$0xf]
        %v1007 = vld [vmem:[%s955 + $0x3c] sm:$0x1]
        %v1009 = vshrl.u32 %v992, 16
        %v1011 = vrot.slane %v1009, 4
        %v1012 = vshll.u32 %v992, 16
        %v1014 = vrot.slane %v1012, 5
        %v1015 = vor.u32 %v1011, %v1014
        %v1016 = vrot.slane %v1015, 4
        %v1018 = vshll.u32 %v993, 16
        %v1020 = vrot.slane %v1018, 5
        %v1021 = vsel %vm441, %v1016, %v1020
        %v1023 = vshrl.u32 %v994, 16
        %v1025 = vrot.slane %v1023, 4
        %v1026 = vshll.u32 %v994, 16
        %v1028 = vrot.slane %v1026, 5
        %v1029 = vor.u32 %v1025, %v1028
        %v1030 = vrot.slane %v1029, 4
        %v1032 = vshll.u32 %v995, 16
        %v1034 = vrot.slane %v1032, 5
        %v1035 = vsel %vm441, %v1030, %v1034
        %v1037 = vshrl.u32 %v996, 16
        %v1039 = vrot.slane %v1037, 4
        %v1040 = vshll.u32 %v996, 16
        %v1042 = vrot.slane %v1040, 5
        %v1043 = vor.u32 %v1039, %v1042
        %v1044 = vrot.slane %v1043, 4
        %v1046 = vshll.u32 %v997, 16
        %v1048 = vrot.slane %v1046, 5
        %v1049 = vsel %vm441, %v1044, %v1048
        %v1051 = vshrl.u32 %v998, 16
        %v1053 = vrot.slane %v1051, 4
        %v1054 = vshll.u32 %v998, 16
        %v1056 = vrot.slane %v1054, 5
        %v1057 = vor.u32 %v1053, %v1056
        %v1058 = vrot.slane %v1057, 4
        %v1060 = vshll.u32 %v999, 16
        %v1062 = vrot.slane %v1060, 5
        %v1063 = vsel %vm441, %v1058, %v1062
        %v1065 = vshrl.u32 %v1000, 16
        %v1067 = vrot.slane %v1065, 4
        %v1068 = vshll.u32 %v1000, 16
        %v1070 = vrot.slane %v1068, 5
        %v1071 = vor.u32 %v1067, %v1070
        %v1072 = vrot.slane %v1071, 4
        %v1074 = vshll.u32 %v1001, 16
        %v1076 = vrot.slane %v1074, 5
        %v1077 = vsel %vm441, %v1072, %v1076
        %v1079 = vshrl.u32 %v1002, 16
        %v1081 = vrot.slane %v1079, 4
        %v1082 = vshll.u32 %v1002, 16
        %v1084 = vrot.slane %v1082, 5
        %v1085 = vor.u32 %v1081, %v1084
        %v1086 = vrot.slane %v1085, 4
        %v1088 = vshll.u32 %v1003, 16
        %v1090 = vrot.slane %v1088, 5
        %v1091 = vsel %vm441, %v1086, %v1090
        %v1093 = vshrl.u32 %v1004, 16
        %v1095 = vrot.slane %v1093, 4
        %v1096 = vshll.u32 %v1004, 16
        %v1098 = vrot.slane %v1096, 5
        %v1099 = vor.u32 %v1095, %v1098
        %v1100 = vrot.slane %v1099, 4
        %v1102 = vshll.u32 %v1005, 16
        %v1104 = vrot.slane %v1102, 5
        %v1105 = vsel %vm441, %v1100, %v1104
        %v1107 = vshrl.u32 %v1006, 16
        %v1109 = vrot.slane %v1107, 4
        %v1110 = vshll.u32 %v1006, 16
        %v1112 = vrot.slane %v1110, 5
        %v1113 = vor.u32 %v1109, %v1112
        %v1114 = vrot.slane %v1113, 4
        %v1116 = vshll.u32 %v1007, 16
        %v1118 = vrot.slane %v1116, 5
        %v1119 = vsel %vm441, %v1114, %v1118
        %v1120 = vunpack.c.l.b16 %v1021
        %v1121 = vunpack.c.l.b16 %v1035
        %v1122 = vunpack.c.l.b16 %v1049
        %v1123 = vunpack.c.l.b16 %v1063
        %v1124 = vunpack.c.l.b16 %v1077
        %v1125 = vunpack.c.l.b16 %v1091
        %v1126 = vunpack.c.l.b16 %v1105
        %v1127 = vunpack.c.l.b16 %v1119
        %v1128 = vpack.c.b16 %v1121, %v1120
        %v1129 = vpack.c.b16 %v1123, %v1122
        %v1130 = vpack.c.b16 %v1125, %v1124
        %v1131 = vpack.c.b16 %v1127, %v1126
        %1132 = vrot.lane.b32.xlu0 %v1128, 64
        %v1133 = vpop.permute.xlu0 %1132
        %1134 = vrot.lane.b32.xlu0 %v1129, 64
        %v1135 = vpop.permute.xlu0 %1134
        %1136 = vrot.lane.b32.xlu0 %v1130, 64
        %v1137 = vpop.permute.xlu0 %1136
        %1138 = vrot.lane.b32.xlu0 %v1131, 64
        %v1139 = vpop.permute.xlu0 %1138
        %1144 = vst.msk [vmem:[#allocation2 + $0x18] sm:$0xff] %vm578, %v1133
        %1145 = vst.msk [vmem:[#allocation2 + $0x40] sm:$0xff] %vm578, %v1135
        %1146 = vst.msk [vmem:[#allocation2 + $0x68] sm:$0xff] %vm578, %v1137
        %1147 = vst.msk [vmem:[#allocation2 + $0x90] sm:$0xff] %vm578, %v1139
        %v1148 = vld [vmem:[%s955] sm:$0xe]
        %v1149 = vld [vmem:[%s955 + $0x4] sm:$0x1]
        %v1150 = vld [vmem:[%s955 + $0x8] sm:$0xe]
        %v1151 = vld [vmem:[%s955 + $0xc] sm:$0x1]
        %v1152 = vld [vmem:[%s955 + $0x10] sm:$0xe]
        %v1153 = vld [vmem:[%s955 + $0x14] sm:$0x1]
        %v1154 = vld [vmem:[%s955 + $0x18] sm:$0xe]
        %v1155 = vld [vmem:[%s955 + $0x1c] sm:$0x1]
        %v1156 = vld [vmem:[%s955 + $0x20] sm:$0xe]
        %v1157 = vld [vmem:[%s955 + $0x24] sm:$0x1]
        %v1158 = vld [vmem:[%s955 + $0x28] sm:$0xe]
        %v1159 = vld [vmem:[%s955 + $0x2c] sm:$0x1]
        %v1160 = vld [vmem:[%s955 + $0x30] sm:$0xe]
        %v1161 = vld [vmem:[%s955 + $0x34] sm:$0x1]
        %v1162 = vld [vmem:[%s955 + $0x38] sm:$0xe]
        %v1163 = vld [vmem:[%s955 + $0x3c] sm:$0x1]
        %v1180 = vrot.slane %v1148, 5
        %v1181 = vrot.slane %v1180, 4
        %v1182 = vrot.slane %v1149, 5
        %v1183 = vsel %vm617, %v1181, %v1182
        %v1184 = vrot.slane %v1150, 5
        %v1185 = vrot.slane %v1184, 4
        %v1186 = vrot.slane %v1151, 5
        %v1187 = vsel %vm617, %v1185, %v1186
        %v1188 = vrot.slane %v1152, 5
        %v1189 = vrot.slane %v1188, 4
        %v1190 = vrot.slane %v1153, 5
        %v1191 = vsel %vm617, %v1189, %v1190
        %v1192 = vrot.slane %v1154, 5
        %v1193 = vrot.slane %v1192, 4
        %v1194 = vrot.slane %v1155, 5
        %v1195 = vsel %vm617, %v1193, %v1194
        %v1196 = vrot.slane %v1156, 5
        %v1197 = vrot.slane %v1196, 4
        %v1198 = vrot.slane %v1157, 5
        %v1199 = vsel %vm617, %v1197, %v1198
        %v1200 = vrot.slane %v1158, 5
        %v1201 = vrot.slane %v1200, 4
        %v1202 = vrot.slane %v1159, 5
        %v1203 = vsel %vm617, %v1201, %v1202
        %v1204 = vrot.slane %v1160, 5
        %v1205 = vrot.slane %v1204, 4
        %v1206 = vrot.slane %v1161, 5
        %v1207 = vsel %vm617, %v1205, %v1206
        %v1208 = vrot.slane %v1162, 5
        %v1209 = vrot.slane %v1208, 4
        %v1210 = vrot.slane %v1163, 5
        %v1211 = vsel %vm617, %v1209, %v1210
        %v1212 = vunpack.c.l.b16 %v1183
        %v1213 = vunpack.c.l.b16 %v1187
        %v1214 = vunpack.c.l.b16 %v1191
        %v1215 = vunpack.c.l.b16 %v1195
        %v1216 = vunpack.c.l.b16 %v1199
        %v1217 = vunpack.c.l.b16 %v1203
        %v1218 = vunpack.c.l.b16 %v1207
        %v1219 = vunpack.c.l.b16 %v1211
        %v1220 = vpack.c.b16 %v1213, %v1212
        %v1221 = vpack.c.b16 %v1215, %v1214
        %v1222 = vpack.c.b16 %v1217, %v1216
        %v1223 = vpack.c.b16 %v1219, %v1218
        %1228 = vst.msk [vmem:[#allocation2 + $0x20] sm:$0xff] %vm418, %v1220
        %1229 = vst.msk [vmem:[#allocation2 + $0x48] sm:$0xff] %vm418, %v1221
        %1230 = vst.msk [vmem:[#allocation2 + $0x70] sm:$0xff] %vm418, %v1222
        %1231 = vst.msk [vmem:[#allocation2 + $0x98] sm:$0xff] %vm418, %v1223
        %v1232 = vld [vmem:[#allocation2] sm:$0xff]
        %v1233 = vld [vmem:[#allocation2 + $0x8] sm:$0xff]
        %v1234 = vld [vmem:[#allocation2 + $0x10] sm:$0xff]
        %v1235 = vld [vmem:[#allocation2 + $0x18] sm:$0xff]
        %v1236 = vld [vmem:[#allocation2 + $0x20] sm:$0xff]
        %v1237 = vld [vmem:[#allocation2 + $0x28] sm:$0xff]
        %v1238 = vld [vmem:[#allocation2 + $0x30] sm:$0xff]
        %v1239 = vld [vmem:[#allocation2 + $0x38] sm:$0xff]
        %v1240 = vld [vmem:[#allocation2 + $0x40] sm:$0xff]
        %v1241 = vld [vmem:[#allocation2 + $0x48] sm:$0xff]
        %v1242 = vld [vmem:[#allocation2 + $0x50] sm:$0xff]
        %v1243 = vld [vmem:[#allocation2 + $0x58] sm:$0xff]
        %v1244 = vld [vmem:[#allocation2 + $0x60] sm:$0xff]
        %v1245 = vld [vmem:[#allocation2 + $0x68] sm:$0xff]
        %v1246 = vld [vmem:[#allocation2 + $0x70] sm:$0xff]
        %v1247 = vld [vmem:[#allocation2 + $0x78] sm:$0xff]
        %v1248 = vld [vmem:[#allocation2 + $0x80] sm:$0xff]
        %v1249 = vld [vmem:[#allocation2 + $0x88] sm:$0xff]
        %v1250 = vld [vmem:[#allocation2 + $0x90] sm:$0xff]
        %v1251 = vld [vmem:[#allocation2 + $0x98] sm:$0xff]
        %v1252 = vld [vmem:[%s364] sm:$0xf]
        %v1253 = vld [vmem:[%s364 + $0x4] sm:$0xf]
        %v1254 = vld [vmem:[%s364 + $0x8] sm:$0xf]
        %v1255 = vld [vmem:[%s364 + $0xc] sm:$0xf]
        %v1256 = vld [vmem:[%s364 + $0x10] sm:$0xf]
        %v1257 = vld [vmem:[%s364 + $0x14] sm:$0xf]
        %v1258 = vld [vmem:[%s364 + $0x18] sm:$0xf]
        %v1259 = vld [vmem:[%s364 + $0x1c] sm:$0xf]
        %v1260 = vld [vmem:[%s364 + $0x20] sm:$0xf]
        %v1261 = vld [vmem:[%s364 + $0x24] sm:$0xf]
        %v1262 = vld [vmem:[%s364 + $0x28] sm:$0xf]
        %v1263 = vld [vmem:[%s364 + $0x2c] sm:$0xf]
        %v1264 = vld [vmem:[%s364 + $0x30] sm:$0xf]
        %v1265 = vld [vmem:[%s364 + $0x34] sm:$0xf]
        %v1266 = vld [vmem:[%s364 + $0x38] sm:$0xf]
        %v1267 = vld [vmem:[%s364 + $0x3c] sm:$0xf]
        %v1268 = vld [vmem:[%s364 + $0x40] sm:$0xf]
        %v1269 = vld [vmem:[%s364 + $0x44] sm:$0xf]
        %v1270 = vld [vmem:[%s364 + $0x48] sm:$0xf]
        %v1271 = vld [vmem:[%s364 + $0x4c] sm:$0xf]
        %v1272 = vld [vmem:[%s364 + $0x50] sm:$0xf]
        %v1273 = vld [vmem:[%s364 + $0x54] sm:$0xf]
        %v1274 = vld [vmem:[%s364 + $0x58] sm:$0xf]
        %v1275 = vld [vmem:[%s364 + $0x5c] sm:$0xf]
        %v1276 = vld [vmem:[%s364 + $0x60] sm:$0xf]
        %v1277 = vld [vmem:[%s364 + $0x64] sm:$0xf]
        %v1278 = vld [vmem:[%s364 + $0x68] sm:$0xf]
        %v1279 = vld [vmem:[%s364 + $0x6c] sm:$0xf]
        %v1280 = vld [vmem:[%s364 + $0x70] sm:$0xf]
        %v1281 = vld [vmem:[%s364 + $0x74] sm:$0xf]
        %v1282 = vld [vmem:[%s364 + $0x78] sm:$0xf]
        %v1283 = vld [vmem:[%s364 + $0x7c] sm:$0xf]
        %v1284 = vld [vmem:[%s364 + $0x80] sm:$0xf]
        %v1285 = vld [vmem:[%s364 + $0x84] sm:$0xf]
        %v1286 = vld [vmem:[%s364 + $0x88] sm:$0xf]
        %v1287 = vld [vmem:[%s364 + $0x8c] sm:$0xf]
        %v1288 = vld [vmem:[%s364 + $0x90] sm:$0xf]
        %v1289 = vld [vmem:[%s364 + $0x94] sm:$0xf]
        %v1290 = vld [vmem:[%s364 + $0x98] sm:$0xf]
        %v1291 = vld [vmem:[%s364 + $0x9c] sm:$0xf]
        %v1292 = vld [vmem:[%s364 + $0xa0] sm:$0xf]
        %v1293 = vld [vmem:[%s364 + $0xa4] sm:$0xf]
        %v1294 = vld [vmem:[%s364 + $0xa8] sm:$0xf]
        %v1295 = vld [vmem:[%s364 + $0xac] sm:$0xf]
        %v1296 = vld [vmem:[%s364 + $0xb0] sm:$0xf]
        %v1297 = vld [vmem:[%s364 + $0xb4] sm:$0xf]
        %v1298 = vld [vmem:[%s364 + $0xb8] sm:$0xf]
        %v1299 = vld [vmem:[%s364 + $0xbc] sm:$0xf]
        %v1300 = vld [vmem:[%s364 + $0xc0] sm:$0xf]
        %v1301 = vld [vmem:[%s364 + $0xc4] sm:$0xf]
        %v1302 = vld [vmem:[%s364 + $0xc8] sm:$0xf]
        %v1303 = vld [vmem:[%s364 + $0xcc] sm:$0xf]
        %v1304 = vld [vmem:[%s364 + $0xd0] sm:$0xf]
        %v1305 = vld [vmem:[%s364 + $0xd4] sm:$0xf]
        %v1306 = vld [vmem:[%s364 + $0xd8] sm:$0xf]
        %v1307 = vld [vmem:[%s364 + $0xdc] sm:$0xf]
        %v1308 = vld [vmem:[%s364 + $0xe0] sm:$0xf]
        %v1309 = vld [vmem:[%s364 + $0xe4] sm:$0xf]
        %v1310 = vld [vmem:[%s364 + $0xe8] sm:$0xf]
        %v1311 = vld [vmem:[%s364 + $0xec] sm:$0xf]
        %v1312 = vld [vmem:[%s364 + $0xf0] sm:$0xf]
        %v1313 = vld [vmem:[%s364 + $0xf4] sm:$0xf]
        %v1314 = vld [vmem:[%s364 + $0xf8] sm:$0xf]
        %v1315 = vld [vmem:[%s364 + $0xfc] sm:$0xf]
        %v1316 = vld [vmem:[%s364 + $0x100] sm:$0xf]
        %v1317 = vld [vmem:[%s364 + $0x104] sm:$0xf]
        %v1318 = vld [vmem:[%s364 + $0x108] sm:$0xf]
        %v1319 = vld [vmem:[%s364 + $0x10c] sm:$0xf]
        %v1320 = vld [vmem:[%s364 + $0x110] sm:$0xf]
        %v1321 = vld [vmem:[%s364 + $0x114] sm:$0xf]
        %v1322 = vld [vmem:[%s364 + $0x118] sm:$0xf]
        %v1323 = vld [vmem:[%s364 + $0x11c] sm:$0xf]
        %v1396 = vunpack.c.l.b16 %v1252
        %v1397 = vunpack.c.l.b16 %v1253
        %v1398 = vunpack.c.l.b16 %v1254
        %v1399 = vunpack.c.l.b16 %v1255
        %v1400 = vunpack.c.l.b16 %v1256
        %v1401 = vunpack.c.l.b16 %v1257
        %v1402 = vunpack.c.l.b16 %v1258
        %v1403 = vunpack.c.l.b16 %v1259
        %v1404 = vunpack.c.l.b16 %v1260
        %v1405 = vunpack.c.l.b16 %v1261
        %v1406 = vunpack.c.l.b16 %v1262
        %v1407 = vunpack.c.l.b16 %v1263
        %v1408 = vunpack.c.l.b16 %v1264
        %v1409 = vunpack.c.l.b16 %v1265
        %v1410 = vunpack.c.l.b16 %v1266
        %v1411 = vunpack.c.l.b16 %v1267
        %v1412 = vunpack.c.l.b16 %v1268
        %v1413 = vunpack.c.l.b16 %v1269
        %v1414 = vunpack.c.l.b16 %v1270
        %v1415 = vunpack.c.l.b16 %v1271
        %v1416 = vunpack.c.l.b16 %v1272
        %v1417 = vunpack.c.l.b16 %v1273
        %v1418 = vunpack.c.l.b16 %v1274
        %v1419 = vunpack.c.l.b16 %v1275
        %v1420 = vunpack.c.l.b16 %v1276
        %v1421 = vunpack.c.l.b16 %v1277
        %v1422 = vunpack.c.l.b16 %v1278
        %v1423 = vunpack.c.l.b16 %v1279
        %v1424 = vunpack.c.l.b16 %v1280
        %v1425 = vunpack.c.l.b16 %v1281
        %v1426 = vunpack.c.l.b16 %v1282
        %v1427 = vunpack.c.l.b16 %v1283
        %v1428 = vunpack.c.l.b16 %v1284
        %v1429 = vunpack.c.l.b16 %v1285
        %v1430 = vunpack.c.l.b16 %v1286
        %v1431 = vunpack.c.l.b16 %v1287
        %v1432 = vunpack.c.l.b16 %v1288
        %v1433 = vunpack.c.l.b16 %v1289
        %v1434 = vunpack.c.l.b16 %v1290
        %v1435 = vunpack.c.l.b16 %v1291
        %v1436 = vunpack.c.l.b16 %v1292
        %v1437 = vunpack.c.l.b16 %v1293
        %v1438 = vunpack.c.l.b16 %v1294
        %v1439 = vunpack.c.l.b16 %v1295
        %v1440 = vunpack.c.l.b16 %v1296
        %v1441 = vunpack.c.l.b16 %v1297
        %v1442 = vunpack.c.l.b16 %v1298
        %v1443 = vunpack.c.l.b16 %v1299
        %v1444 = vunpack.c.l.b16 %v1300
        %v1445 = vunpack.c.l.b16 %v1301
        %v1446 = vunpack.c.l.b16 %v1302
        %v1447 = vunpack.c.l.b16 %v1303
        %v1448 = vunpack.c.l.b16 %v1304
        %v1449 = vunpack.c.l.b16 %v1305
        %v1450 = vunpack.c.l.b16 %v1306
        %v1451 = vunpack.c.l.b16 %v1307
        %v1452 = vunpack.c.l.b16 %v1308
        %v1453 = vunpack.c.l.b16 %v1309
        %v1454 = vunpack.c.l.b16 %v1310
        %v1455 = vunpack.c.l.b16 %v1311
        %v1456 = vunpack.c.l.b16 %v1312
        %v1457 = vunpack.c.l.b16 %v1313
        %v1458 = vunpack.c.l.b16 %v1314
        %v1459 = vunpack.c.l.b16 %v1315
        %v1460 = vunpack.c.l.b16 %v1316
        %v1461 = vunpack.c.l.b16 %v1317
        %v1462 = vunpack.c.l.b16 %v1318
        %v1463 = vunpack.c.l.b16 %v1319
        %v1464 = vunpack.c.l.b16 %v1320
        %v1465 = vunpack.c.l.b16 %v1321
        %v1466 = vunpack.c.l.b16 %v1322
        %v1467 = vunpack.c.l.b16 %v1323
        %v1468 = vpack.c.b16 %v1397, %v1396
        %v1469 = vpack.c.b16 %v1399, %v1398
        %v1470 = vpack.c.b16 %v1401, %v1400
        %v1471 = vpack.c.b16 %v1403, %v1402
        %v1472 = vpack.c.b16 %v1405, %v1404
        %v1473 = vpack.c.b16 %v1407, %v1406
        %v1474 = vpack.c.b16 %v1409, %v1408
        %v1475 = vpack.c.b16 %v1411, %v1410
        %v1476 = vpack.c.b16 %v1413, %v1412
        %v1477 = vpack.c.b16 %v1415, %v1414
        %v1478 = vpack.c.b16 %v1417, %v1416
        %v1479 = vpack.c.b16 %v1419, %v1418
        %v1480 = vpack.c.b16 %v1421, %v1420
        %v1481 = vpack.c.b16 %v1423, %v1422
        %v1482 = vpack.c.b16 %v1425, %v1424
        %v1483 = vpack.c.b16 %v1427, %v1426
        %v1484 = vpack.c.b16 %v1429, %v1428
        %v1485 = vpack.c.b16 %v1431, %v1430
        %v1486 = vpack.c.b16 %v1433, %v1432
        %v1487 = vpack.c.b16 %v1435, %v1434
        %v1488 = vpack.c.b16 %v1437, %v1436
        %v1489 = vpack.c.b16 %v1439, %v1438
        %v1490 = vpack.c.b16 %v1441, %v1440
        %v1491 = vpack.c.b16 %v1443, %v1442
        %v1492 = vpack.c.b16 %v1445, %v1444
        %v1493 = vpack.c.b16 %v1447, %v1446
        %v1494 = vpack.c.b16 %v1449, %v1448
        %v1495 = vpack.c.b16 %v1451, %v1450
        %v1496 = vpack.c.b16 %v1453, %v1452
        %v1497 = vpack.c.b16 %v1455, %v1454
        %v1498 = vpack.c.b16 %v1457, %v1456
        %v1499 = vpack.c.b16 %v1459, %v1458
        %v1500 = vpack.c.b16 %v1461, %v1460
        %v1501 = vpack.c.b16 %v1463, %v1462
        %v1502 = vpack.c.b16 %v1465, %v1464
        %v1503 = vpack.c.b16 %v1467, %v1466
        %v1541 = vsel %vm418, %v1236, 0
        %v1544 = vsel %vm418, %v1241, 0
        %v1547 = vsel %vm418, %v1246, 0
        %v1550 = vsel %vm418, %v1251, 0
        %1552 = vmatprep.subr.bf16.mxu0 0
        %1553 = vmatpush1.bf16.msra.mxu0 %v1468
        %1554 = vmatprep.subr.bf16.mxu0 0
        %1555 = vmatpush1.bf16.msra.mxu0 %v1469
        %1556 = vmatprep.subr.bf16.mxu0 0
        %1557 = vmatpush1.bf16.msra.mxu0 %v1470
        %1558 = vmatprep.subr.bf16.mxu0 0
        %1559 = vmatpush1.bf16.msra.mxu0 %v1471
        %1560 = vmatprep.subr.bf16.mxu0 0
        %1561 = vmatpush1.bf16.msra.mxu0 %v1472
        %1562 = vmatprep.subr.bf16.mxu0 0
        %1563 = vmatpush1.bf16.msra.mxu0 %v1473
        %1564 = vmatprep.subr.bf16.mxu0 0
        %1565 = vmatpush1.bf16.msra.mxu0 %v1474
        %1566 = vmatprep.subr.bf16.mxu0 0
        %1567 = vmatpush1.bf16.msra.mxu0 %v1475
        %1568 = vmatprep.subr.bf16.mxu0 0
        %1569 = vmatpush1.bf16.msra.mxu0 %v1476
        %1570 = vmatprep.subr.bf16.mxu0 0
        %1571 = vmatpush1.bf16.msra.mxu0 %v1477
        %1572 = vmatprep.subr.bf16.mxu0 0
        %1573 = vmatpush1.bf16.msra.mxu0 %v1478
        %1574 = vmatprep.subr.bf16.mxu0 0
        %1575 = vmatpush1.bf16.msra.mxu0 %v1479
        %1576 = vmatprep.subr.bf16.mxu0 0
        %1577 = vmatpush1.bf16.msra.mxu0 %v1480
        %1578 = vmatprep.subr.bf16.mxu0 0
        %1579 = vmatpush1.bf16.msra.mxu0 %v1481
        %1580 = vmatprep.subr.bf16.mxu0 0
        %1581 = vmatpush1.bf16.msra.mxu0 %v1482
        %1582 = vmatprep.subr.bf16.mxu0 0
        %1583 = vmatpush1.bf16.msra.mxu0 %v1483
        %1584 = vmatprep.mubr.bf16.mxu0 %v1233
        %1585 = vmatmul.mubr.bf16.gmra.mrb[0].mxu0 %v1232
        %v1586 = vpop.f32.mrb[0].mxu0
        %v1587 = vadd.f32 0.0, %v1586
        %v1588 = vpop.f32.mrb[0].mxu0
        %v1589 = vpop.f32.mrb[0].mxu0
        %v1590 = vadd.f32 0.0, %v1589
        %v1591 = vpop.f32.mrb[0].mxu0
        %1592 = vmatprep.mubr.bf16.mxu0 %v1238
        %1593 = vmatmul.mubr.bf16.gmra.mrb[0].mxu0 %v1237
        %v1594 = vpop.f32.mrb[0].mxu0
        %v1595 = vadd.f32 0.0, %v1594
        %v1596 = vpop.f32.mrb[0].mxu0
        %v1597 = vpop.f32.mrb[0].mxu0
        %v1598 = vadd.f32 0.0, %v1597
        %v1599 = vpop.f32.mrb[0].mxu0
        %1600 = vmatprep.mubr.bf16.mxu0 %v1243
        %1601 = vmatmul.mubr.bf16.gmra.mrb[0].mxu0 %v1242
        %v1602 = vpop.f32.mrb[0].mxu0
        %v1603 = vadd.f32 0.0, %v1602
        %v1604 = vpop.f32.mrb[0].mxu0
        %v1605 = vpop.f32.mrb[0].mxu0
        %v1606 = vadd.f32 0.0, %v1605
        %v1607 = vpop.f32.mrb[0].mxu0
        %1608 = vmatprep.mubr.bf16.mxu0 %v1248
        %1609 = vmatmul.mubr.bf16.gmra.mrb[0].mxu0 %v1247
        %v1610 = vpop.f32.mrb[0].mxu0
        %v1611 = vadd.f32 0.0, %v1610
        %v1612 = vpop.f32.mrb[0].mxu0
        %v1613 = vpop.f32.mrb[0].mxu0
        %v1614 = vadd.f32 0.0, %v1613
        %v1615 = vpop.f32.mrb[0].mxu0
        %1616 = vdwg.mxu0
        %1617 = vmatprep.subr.bf16.mxu0 0
        %1618 = vmatpush1.bf16.msra.mxu0 %v1484
        %1619 = vmatprep.subr.bf16.mxu0 0
        %1620 = vmatpush1.bf16.msra.mxu0 %v1485
        %1621 = vmatprep.subr.bf16.mxu0 0
        %1622 = vmatpush1.bf16.msra.mxu0 %v1486
        %1623 = vmatprep.subr.bf16.mxu0 0
        %1624 = vmatpush1.bf16.msra.mxu0 %v1487
        %1625 = vmatprep.subr.bf16.mxu0 0
        %1626 = vmatpush1.bf16.msra.mxu0 %v1488
        %1627 = vmatprep.subr.bf16.mxu0 0
        %1628 = vmatpush1.bf16.msra.mxu0 %v1489
        %1629 = vmatprep.subr.bf16.mxu0 0
        %1630 = vmatpush1.bf16.msra.mxu0 %v1490
        %1631 = vmatprep.subr.bf16.mxu0 0
        %1632 = vmatpush1.bf16.msra.mxu0 %v1491
        %1633 = vmatprep.subr.bf16.mxu0 0
        %1634 = vmatpush1.bf16.msra.mxu0 %v1492
        %1635 = vmatprep.subr.bf16.mxu0 0
        %1636 = vmatpush1.bf16.msra.mxu0 %v1493
        %1637 = vmatprep.subr.bf16.mxu0 0
        %1638 = vmatpush1.bf16.msra.mxu0 %v1494
        %1639 = vmatprep.subr.bf16.mxu0 0
        %1640 = vmatpush1.bf16.msra.mxu0 %v1495
        %1641 = vmatprep.subr.bf16.mxu0 0
        %1642 = vmatpush1.bf16.msra.mxu0 %v1496
        %1643 = vmatprep.subr.bf16.mxu0 0
        %1644 = vmatpush1.bf16.msra.mxu0 %v1497
        %1645 = vmatprep.subr.bf16.mxu0 0
        %1646 = vmatpush1.bf16.msra.mxu0 %v1498
        %1647 = vmatprep.subr.bf16.mxu0 0
        %1648 = vmatpush1.bf16.msra.mxu0 %v1499
        %1649 = vmatprep.mubr.bf16.mxu0 %v1235
        %1650 = vmatmul.mubr.bf16.gmra.mrb[0].mxu0 %v1234
        %v1651 = vpop.f32.mrb[0].mxu0
        %v1652 = vadd.f32 %v1587, %v1651
        %v1653 = vpop.f32.mrb[0].mxu0
        %v1654 = vpop.f32.mrb[0].mxu0
        %v1655 = vadd.f32 %v1590, %v1654
        %v1656 = vpop.f32.mrb[0].mxu0
        %1657 = vmatprep.mubr.bf16.mxu0 %v1240
        %1658 = vmatmul.mubr.bf16.gmra.mrb[0].mxu0 %v1239
        %v1659 = vpop.f32.mrb[0].mxu0
        %v1660 = vadd.f32 %v1595, %v1659
        %v1661 = vpop.f32.mrb[0].mxu0
        %v1662 = vpop.f32.mrb[0].mxu0
        %v1663 = vadd.f32 %v1598, %v1662
        %v1664 = vpop.f32.mrb[0].mxu0
        %1665 = vmatprep.mubr.bf16.mxu0 %v1245
        %1666 = vmatmul.mubr.bf16.gmra.mrb[0].mxu0 %v1244
        %v1667 = vpop.f32.mrb[0].mxu0
        %v1668 = vadd.f32 %v1603, %v1667
        %v1669 = vpop.f32.mrb[0].mxu0
        %v1670 = vpop.f32.mrb[0].mxu0
        %v1671 = vadd.f32 %v1606, %v1670
        %v1672 = vpop.f32.mrb[0].mxu0
        %1673 = vmatprep.mubr.bf16.mxu0 %v1250
        %1674 = vmatmul.mubr.bf16.gmra.mrb[0].mxu0 %v1249
        %v1675 = vpop.f32.mrb[0].mxu0
        %v1676 = vadd.f32 %v1611, %v1675
        %v1677 = vpop.f32.mrb[0].mxu0
        %v1678 = vpop.f32.mrb[0].mxu0
        %v1679 = vadd.f32 %v1614, %v1678
        %v1680 = vpop.f32.mrb[0].mxu0
        %1681 = vdwg.mxu0
        %1682 = vmatprep.subr.bf16.mxu0 0
        %1683 = vmatpush1.bf16.msra.mxu0 %v1500
        %1684 = vmatprep.subr.bf16.mxu0 0
        %1685 = vmatpush1.bf16.msra.mxu0 %v1501
        %1686 = vmatprep.subr.bf16.mxu0 0
        %1687 = vmatpush1.bf16.msra.mxu0 %v1502
        %1688 = vmatprep.subr.bf16.mxu0 0
        %1689 = vmatpush1.bf16.msra.mxu0 %v1503
        %1690 = vmatprep.subr.bf16.mxu0 0
        %1691 = vmatpush1.bf16.msra.mxu0 0
        %1692 = vmatprep.subr.bf16.mxu0 0
        %1693 = vmatpush1.bf16.msra.mxu0 0
        %1694 = vmatprep.subr.bf16.mxu0 0
        %1695 = vmatpush1.bf16.msra.mxu0 0
        %1696 = vmatprep.subr.bf16.mxu0 0
        %1697 = vmatpush1.bf16.msra.mxu0 0
        %1698 = vmatprep.subr.bf16.mxu0 0
        %1699 = vmatpush1.bf16.msra.mxu0 0
        %1700 = vmatprep.subr.bf16.mxu0 0
        %1701 = vmatpush1.bf16.msra.mxu0 0
        %1702 = vmatprep.subr.bf16.mxu0 0
        %1703 = vmatpush1.bf16.msra.mxu0 0
        %1704 = vmatprep.subr.bf16.mxu0 0
        %1705 = vmatpush1.bf16.msra.mxu0 0
        %1706 = vmatprep.subr.bf16.mxu0 0
        %1707 = vmatpush1.bf16.msra.mxu0 0
        %1708 = vmatprep.subr.bf16.mxu0 0
        %1709 = vmatpush1.bf16.msra.mxu0 0
        %1710 = vmatprep.subr.bf16.mxu0 0
        %1711 = vmatpush1.bf16.msra.mxu0 0
        %1712 = vmatprep.subr.bf16.mxu0 0
        %1713 = vmatpush1.bf16.msra.mxu0 0
        %1714 = vmatprep.mubr.bf16.mxu0 0
        %1715 = vmatmul.mubr.bf16.gmra.mrb[0].mxu0 %v1541
        %v1716 = vpop.f32.mrb[0].mxu0
        %v1717 = vadd.f32 %v1652, %v1716
        %v1718 = vpop.f32.mrb[0].mxu0
        %v1719 = vpop.f32.mrb[0].mxu0
        %v1720 = vadd.f32 %v1655, %v1719
        %v1721 = vpop.f32.mrb[0].mxu0
        %1722 = vmatprep.mubr.bf16.mxu0 0
        %1723 = vmatmul.mubr.bf16.gmra.mrb[0].mxu0 %v1544
        %v1724 = vpop.f32.mrb[0].mxu0
        %v1725 = vadd.f32 %v1660, %v1724
        %v1726 = vpop.f32.mrb[0].mxu0
        %v1727 = vpop.f32.mrb[0].mxu0
        %v1728 = vadd.f32 %v1663, %v1727
        %v1729 = vpop.f32.mrb[0].mxu0
        %1730 = vmatprep.mubr.bf16.mxu0 0
        %1731 = vmatmul.mubr.bf16.gmra.mrb[0].mxu0 %v1547
        %v1732 = vpop.f32.mrb[0].mxu0
        %v1733 = vadd.f32 %v1668, %v1732
        %v1734 = vpop.f32.mrb[0].mxu0
        %v1735 = vpop.f32.mrb[0].mxu0
        %v1736 = vadd.f32 %v1671, %v1735
        %v1737 = vpop.f32.mrb[0].mxu0
        %1738 = vmatprep.mubr.bf16.mxu0 0
        %1739 = vmatmul.mubr.bf16.gmra.mrb[0].mxu0 %v1550
        %v1740 = vpop.f32.mrb[0].mxu0
        %v1741 = vadd.f32 %v1676, %v1740
        %v1742 = vpop.f32.mrb[0].mxu0
        %v1743 = vpop.f32.mrb[0].mxu0
        %v1744 = vadd.f32 %v1679, %v1743
        %v1745 = vpop.f32.mrb[0].mxu0
        %1746 = vdwg.mxu0
        %v1747 = vld [vmem:[%s367] sm:$0x1]
        %v1749 = vlaneseq
        %v1750 = vshrl.u32 %v1749, 7
        %v1751 = vsub.s32 0, %v1750
        %v1752 = vrot.slane %v1747, %v1751
        %v1754 = vmul.f32 %v1717, %v1752
        %v1755 = vmul.f32 %v1720, %v1752
        %v1756 = vmul.f32 %v1725, %v1752
        %v1757 = vmul.f32 %v1728, %v1752
        %v1758 = vmul.f32 %v1733, %v1752
        %v1759 = vmul.f32 %v1736, %v1752
        %v1760 = vmul.f32 %v1741, %v1752
        %v1761 = vmul.f32 %v1744, %v1752
        %v1762 = vld [vmem:[%s370] sm:$0x1]
        %v1764 = vlaneseq
        %v1765 = vshrl.u32 %v1764, 7
        %v1766 = vsub.s32 0, %v1765
        %v1767 = vrot.slane %v1762, %v1766
        %v1769 = vadd.f32 %v1754, %v1767
        %v1770 = vadd.f32 %v1755, %v1767
        %v1771 = vadd.f32 %v1756, %v1767
        %v1772 = vadd.f32 %v1757, %v1767
        %v1773 = vadd.f32 %v1758, %v1767
        %v1774 = vadd.f32 %v1759, %v1767
        %v1775 = vadd.f32 %v1760, %v1767
        %v1776 = vadd.f32 %v1761, %v1767
        %v1777 = vld [vmem:[%s382] sm:$0xf]
        %v1778 = vld [vmem:[%s382 + $0x4] sm:$0xf]
        %v1779 = vld [vmem:[%s382 + $0x8] sm:$0xf]
        %v1780 = vld [vmem:[%s382 + $0xc] sm:$0xf]
        %v1781 = vld [vmem:[%s382 + $0x10] sm:$0xf]
        %v1782 = vld [vmem:[%s382 + $0x14] sm:$0xf]
        %v1783 = vld [vmem:[%s382 + $0x18] sm:$0xf]
        %v1784 = vld [vmem:[%s382 + $0x1c] sm:$0xf]
        %v1785 = vunpack.c.l.bf16 %v1777
        %v1786 = vunpack.c.l.bf16 %v1778
        %v1787 = vunpack.c.l.bf16 %v1779
        %v1788 = vunpack.c.l.bf16 %v1780
        %v1789 = vunpack.c.l.bf16 %v1781
        %v1790 = vunpack.c.l.bf16 %v1782
        %v1791 = vunpack.c.l.bf16 %v1783
        %v1792 = vunpack.c.l.bf16 %v1784
        %v1793 = vadd.f32 %v1769, %v1785
        %v1794 = vadd.f32 %v1770, %v1786
        %v1795 = vadd.f32 %v1771, %v1787
        %v1796 = vadd.f32 %v1772, %v1788
        %v1797 = vadd.f32 %v1773, %v1789
        %v1798 = vadd.f32 %v1774, %v1790
        %v1799 = vadd.f32 %v1775, %v1791
        %v1800 = vadd.f32 %v1776, %v1792
        %v1801 = vmax.f32 %v1793, 0.0
        %v1802 = vmax.f32 %v1794, 0.0
        %v1803 = vmax.f32 %v1795, 0.0
        %v1804 = vmax.f32 %v1796, 0.0
        %v1805 = vmax.f32 %v1797, 0.0
        %v1806 = vmax.f32 %v1798, 0.0
        %v1807 = vmax.f32 %v1799, 0.0
        %v1808 = vmax.f32 %v1800, 0.0
        %1809 = vst.msk [vmem:[%s344] sm:$0xff] %vm418, %v1801
        %1810 = vst.msk [vmem:[%s344 + $0x8] sm:$0xff] %vm418, %v1802
        %1811 = vst.msk [vmem:[%s344 + $0x10] sm:$0xff] %vm418, %v1803
        %1812 = vst.msk [vmem:[%s344 + $0x18] sm:$0xff] %vm418, %v1804
        %1813 = vst.msk [vmem:[%s344 + $0x20] sm:$0xff] %vm418, %v1805
        %1814 = vst.msk [vmem:[%s344 + $0x28] sm:$0xff] %vm418, %v1806
        %1815 = vst.msk [vmem:[%s344 + $0x30] sm:$0xff] %vm418, %v1807
        %1816 = vst.msk [vmem:[%s344 + $0x38] sm:$0xff] %vm418, %v1808
        %s1817 = sand.u32 %s197, 1
        %s1818 = scalar_lea.sflag [#allocation4], %s1817
        %s1819 = sand.u32 %s197, 1
        %s1820 = smul.addr %s1819, 64
        %s1821 = scalar_lea.vmem [#allocation3], %s1820
        // Predicated region
        $region41: #{basic_block_fwd.5} parent=39 // pred_check
          %p1822 = pneg %p207
        $region42: #{basic_block_fwd.5} parent=39 // pred_check_branch
          %1824 = sbr.rel (%p1822) target = $region44
        $region43: #{basic_block_fwd.5} parent=39 // pred_region
          %s1825 = smul.u32 8, %s26
          %s1827 = ssub.s32 1024, 1024
          %1828 = vsyncadd %s1818, %s1827
          %s1829 = sadd.s32 %s27, %s1825
          %s1830 = smul.addr %s25, 8
          %s1831 = sadd.s32 %s1829, %s1830
          %s1832 = smul.addr %s1831, 128
          %s1833 = scalar_lea.hbm %s5, %s1832
          %s1834 = sshll.u32 %s1821, 4
          %s1835 = int_to_ptr.vmem [resolvable:$true] %s1834
          %1840 = dma.vmem_to_hbm [thread:$0]  %s1835, 1024, %s1833, %s1818, 128, 128, 8
        $region44: #{basic_block_fwd.5} parent=39 // pred_fallthru
          _
      $region40: #{basic_block_fwd.5} parent=5 // pred_fallthru
        _
      %p1841 = scmp.le.s32.totalorder 2, %s14
      // Predicated region
      $region45: #{basic_block_fwd.5} parent=5 // pred_check
        %p1842 = pneg %p1841
      $region46: #{basic_block_fwd.5} parent=5 // pred_check_branch
        %1844 = sbr.rel (%p1842) target = $region48
      $region47: #{basic_block_fwd.5} parent=5 // pred_region
        %s1845 = ssub.s32 %s14, 2
        // Predicated region
        $region49: #{basic_block_fwd.5} parent=47 // pred_check
          %p1846 = pneg %p213
        $region50: #{basic_block_fwd.5} parent=47 // pred_check_branch
          %1848 = sbr.rel (%p1846) target = $region52
        $region51: #{basic_block_fwd.5} parent=47 // pred_region
          %s1849 = sand.u32 %s198, 1
          %s1850 = scalar_lea.sflag [#allocation4], %s1849
          %s1851 = sand.u32 %s198, 1
          %s1852 = smul.addr %s1851, 64
          %s1853 = scalar_lea.vmem [#allocation3], %s1852
          %1854 = dma.done %s1850, 1024
        $region52: #{basic_block_fwd.5} parent=47 // pred_fallthru
          _
      $region48: #{basic_block_fwd.5} parent=5 // pred_fallthru
        _
    $region6: #{basic_block_fwd.5} parent=1 // loop_footer
      %s18 = sadd.s32 1, %s14
    $region7: #{basic_block_fwd.5} parent=1 // loop_footer_branch
      %13 = sbr.rel target = $region3
    $region8: #{basic_block_fwd.5} parent=1 // loop_exit
      _
    %1855 = vsyncpa [#allocation4], 1
    %s1856 = scalar_lea.sflag [#allocation4], 1
    %1857 = vsyncpa %s1856, 1

</llo_original>
